<compile_context>
chip_gen: v5e
topology: v5e:2x2
jax: 0.10.0
libtpu: 0.0.40
codegen_flags: <defaults>
</compile_context>

<pallas_src>
import math
import jax
import jax.numpy as jnp
from jax.experimental import pallas as pl
from jax.experimental.pallas import tpu as pltpu

# ---------------- small, module-consistent config ----------------
B = 2            # batch
L = 16           # seq_len (== T fed to GPT2 in the imputation branch)
M = 4            # enc_in == c_out (imputation reconstructs the input channels)
F_MARK = 4       # time-feature dim (embed='timeF', freq='h')
D_MODEL = 32     # GPT2 hidden size (synthetic small GPT2 instead of pretrained 768)
N_HEAD = 4
HEAD_DIM = D_MODEL // N_HEAD
D_INNER = 4 * D_MODEL
N_LAYERS = 2     # configs.gpt_layers
EPS = 1e-5
MASK_VALUE = -1e9   # finite large-negative additive mask

# static row offsets inside the packed parameter slabs
S32_WO, S32_WPR, S32_VEC = 0, D_MODEL, D_MODEL + D_INNER      # width-32 slab: 0 / 32 / 160
S32_ROWS = S32_VEC + 8                                        # 168 (8-row padded)
S96_WQKV, S96_BQKV, S96_ROWS = 0, D_MODEL, 40                 # width-96 slab
S128_WFC, S128_BFC, S128_ROWS = 0, D_MODEL, 40                # width-128 slab
EMB_WTOK, EMB_WTIME, EMB_POS = 0, 3 * M, 3 * M + F_MARK       # embedding slab: 0 / 12 / 16
EMB_ROWS = EMB_POS + L                                        # 32
HEAD_WOUT, HEAD_ROWS = 8, 40                                  # head slab


# ---------------- in-kernel helpers (pure jnp, traced inside the kernel) ----------------
def _layernorm(x, g, b):
    mu = jnp.mean(x, axis=-1, keepdims=True)
    xc = x - mu
    var = jnp.mean(xc * xc, axis=-1, keepdims=True)
    return xc * jax.lax.rsqrt(var + EPS) * g + b


def _gelu_new(x):
    # GPT2 "gelu_new": 0.5*x*(1+tanh(sqrt(2/pi)*(x+0.044715*x^3)))
    return 0.5 * x * (1.0 + jnp.tanh(0.7978845608028654 * (x + 0.044715 * x * x * x)))


# ---------------- the single fused kernel (shape-generic over the batch block nb) ----------------
def fused_gpt4ts_kernel(x_ref, xm_ref, msk_ref,            # data blocks: (nb,L,M) (nb,L,F) (nb,L,M)
                        abias_ref,                         # (nb*L, nb*L) causal/block-diag bias
                        emb_ref,                           # (32, D): w_tok3 | w_time | pos_add
                        s32_ref, s96_ref, s128_ref,        # per-layer weight slabs
                        head_ref,                          # (40, D): ln_f/ln_proj/out-layer
                        out_ref):                          # (nb, L, M)
    nb, seq, mch = x_ref.shape
    n = nb * seq

    # ---- phase A: masked normalization (batch-vectorized) + DataEmbedding ----
    x3 = x_ref[...]
    m3 = msk_ref[...]
    # NOTE: matches the reference module exactly -- it assumes the caller already zeroed
    # masked entries of x_enc (standard imputation data pipeline).
    nor = jnp.maximum(jnp.sum((m3 == 1.0).astype(jnp.float32), axis=1, keepdims=True), 1.0)
    means = jnp.sum(x3, axis=1, keepdims=True) / nor              # (nb,1,M)
    xc = jnp.where(m3 == 0.0, 0.0, x3 - means)
    var = jnp.sum(xc * xc, axis=1, keepdims=True) / nor
    stdev = jnp.sqrt(jnp.maximum(var, 1e-5))                      # torch.sqrt(clamp(var,1e-5))
    xn3 = xc / stdev                                              # (nb, L, M)

    # circular conv (k=3): time shifts via sublane slice+concat (no MXU pushes),
    # the 3 taps folded into ONE matmul against the stacked (3M, D) tap weight.
    x_prev = jnp.concatenate([xn3[:, seq - 1:, :], xn3[:, :seq - 1, :]], axis=1)   # x[t-1]
    x_next = jnp.concatenate([xn3[:, 1:, :], xn3[:, :1, :]], axis=1)               # x[t+1]
    xcat = jnp.concatenate([x_prev, xn3, x_next], axis=-1).reshape(n, 3 * mch)

    w_tok3 = emb_ref[EMB_WTOK:EMB_WTIME, :]                       # (3M, D) stacked conv taps
    w_time = emb_ref[EMB_WTIME:EMB_POS, :]                        # (F, D)
    pos_add = emb_ref[EMB_POS:EMB_POS + seq, :]                   # (L, D): sin PE + GPT2 wpe

    v_tok = jnp.dot(xcat, w_tok3, preferred_element_type=jnp.float32)
    t_emb = jnp.dot(xm_ref[...].reshape(n, xm_ref.shape[-1]), w_time,
                    preferred_element_type=jnp.float32)
    pos_full = pos_add if nb == 1 else jnp.concatenate([pos_add] * nb, axis=0)
    h = v_tok + t_emb + pos_full                                  # (n, D) flattened hidden state

    abias = abias_ref[...]
    scale = 1.0 / math.sqrt(HEAD_DIM)

    # ---- phase B: GPT2 blocks (static unroll over layers & heads) ----
    for l in range(N_LAYERS):
        w_o   = s32_ref[l, S32_WO:S32_WO + D_MODEL, :]            # (D, D)   attn c_proj
        w_pr  = s32_ref[l, S32_WPR:S32_WPR + D_INNER, :]          # (4D, D)  mlp c_proj
        ln1_g = s32_ref[l, S32_VEC + 0:S32_VEC + 1, :]
        ln1_b = s32_ref[l, S32_VEC + 1:S32_VEC + 2, :]
        ln2_g = s32_ref[l, S32_VEC + 2:S32_VEC + 3, :]
        ln2_b = s32_ref[l, S32_VEC + 3:S32_VEC + 4, :]
        b_o   = s32_ref[l, S32_VEC + 4:S32_VEC + 5, :]
        b_pr  = s32_ref[l, S32_VEC + 5:S32_VEC + 6, :]
        w_qkv = s96_ref[l, S96_WQKV:S96_WQKV + D_MODEL, :]        # (D, 3D)  c_attn
        b_qkv = s96_ref[l, S96_BQKV:S96_BQKV + 1, :]
        w_fc  = s128_ref[l, S128_WFC:S128_WFC + D_MODEL, :]       # (D, 4D)  mlp c_fc
        b_fc  = s128_ref[l, S128_BFC:S128_BFC + 1, :]

        # attention: ONE fused QKV matmul, then static 8-lane-aligned head slices
        x1 = _layernorm(h, ln1_g, ln1_b)
        qkv = jnp.dot(x1, w_qkv, preferred_element_type=jnp.float32) + b_qkv    # (n, 3D)
        ctxs = []
        for hh in range(N_HEAD):
            q = qkv[:, hh * HEAD_DIM:(hh + 1) * HEAD_DIM]
            k = qkv[:, D_MODEL + hh * HEAD_DIM:D_MODEL + (hh + 1) * HEAD_DIM]
            v = qkv[:, 2 * D_MODEL + hh * HEAD_DIM:2 * D_MODEL + (hh + 1) * HEAD_DIM]
            s = jax.lax.dot_general(q, k, (((1,), (1,)), ((), ())),
                                    preferred_element_type=jnp.float32) * scale + abias
            s = s - jnp.max(s, axis=-1, keepdims=True)
            e = jnp.exp(s)
            p = e / jnp.sum(e, axis=-1, keepdims=True)            # exact softmax denominator
            ctxs.append(jnp.dot(p, v, preferred_element_type=jnp.float32))      # (n, hd)
        ctx = jnp.concatenate(ctxs, axis=-1)                      # (n, D) merged heads
        h = h + jnp.dot(ctx, w_o, preferred_element_type=jnp.float32) + b_o

        # MLP
        x2 = _layernorm(h, ln2_g, ln2_b)
        ff = _gelu_new(jnp.dot(x2, w_fc, preferred_element_type=jnp.float32) + b_fc)
        h = h + jnp.dot(ff, w_pr, preferred_element_type=jnp.float32) + b_pr

    # ---- phase C: ln_f -> ln_proj -> out Linear -> de-normalize, one lane-dense store ----
    lnf_g = head_ref[0:1, :]
    lnf_b = head_ref[1:2, :]
    lnp_g = head_ref[2:3, :]
    lnp_b = head_ref[3:4, :]
    b_out = head_ref[4:5, :]
    w_out = head_ref[HEAD_WOUT:HEAD_WOUT + D_MODEL, :]            # (D, D), zero-padded past M
    hf = _layernorm(h, lnf_g, lnf_b)
    hf = _layernorm(hf, lnp_g, lnp_b)
    y = jnp.dot(hf, w_out, preferred_element_type=jnp.float32) + b_out          # (n, D)
    y3 = y[:, 0:mch].reshape(nb, seq, mch)
    out_ref[...] = y3 * stdev + means


# ---------------- wrapper: exactly one pallas_call ----------------
def _batch_block_for_device():
    """Per-item grid on 2-TensorCore chips (v7x); whole-batch single step otherwise."""
    try:
        kind = jax.devices()[0].device_kind.lower().replace(" ", "")
    except Exception:
        return B
    if ("v7" in kind) or ("tpu7" in kind):
        return 1
    return B


def _causal_block_bias(nb):
    # additive attention bias: causal within a batch item, MASK_VALUE across items
    n = nb * L
    bidx = jnp.arange(n) // L
    tidx = jnp.arange(n) % L
    allowed = (bidx[:, None] == bidx[None, :]) & (tidx[None, :] <= tidx[:, None])
    return jnp.where(allowed, 0.0, MASK_VALUE).astype(jnp.float32)


def imputation_forward(x_enc, x_mark_enc, mask, params, batch_block=None):
    nb = B if batch_block is None else batch_block
    assert B % nb == 0
    attn_bias = _causal_block_bias(nb)
    emb_slab = params["emb_slab"]
    slab32, slab96, slab128 = params["slab32"], params["slab96"], params["slab128"]
    head_slab = params["head_slab"]

    in_specs = [
        pl.BlockSpec((nb, L, M), lambda g: (g, 0, 0)),        # x_enc
        pl.BlockSpec((nb, L, F_MARK), lambda g: (g, 0, 0)),   # x_mark_enc
        pl.BlockSpec((nb, L, M), lambda g: (g, 0, 0)),        # mask
        pl.BlockSpec(attn_bias.shape, lambda g: (0, 0)),      # attention bias
        pl.BlockSpec(emb_slab.shape, lambda g: (0, 0)),       # embedding slab
        pl.BlockSpec(slab32.shape, lambda g: (0, 0, 0)),      # width-32 weight slab
        pl.BlockSpec(slab96.shape, lambda g: (0, 0, 0)),      # width-96 weight slab
        pl.BlockSpec(slab128.shape, lambda g: (0, 0, 0)),     # width-128 weight slab
        pl.BlockSpec(head_slab.shape, lambda g: (0, 0)),      # head slab
    ]
    out_specs = pl.BlockSpec((nb, L, M), lambda g: (g, 0, 0))

    return pl.pallas_call(
        fused_gpt4ts_kernel,
        grid=(B // nb,),
        in_specs=in_specs,
        out_specs=out_specs,
        out_shape=jax.ShapeDtypeStruct((B, L, M), jnp.float32),
        compiler_params=pltpu.CompilerParams(dimension_semantics=("parallel",)),
    )(x_enc, x_mark_enc, mask, attn_bias, emb_slab, slab32, slab96, slab128, head_slab)


if __name__ == "__main__":
    key = jax.random.PRNGKey(0)
    keys = jax.random.split(key, 64)
    _ki = iter(keys)

    def nrm(shape, scale=0.02):
        return (scale * jax.random.normal(next(_ki), shape)).astype(jnp.float32)

    # ---- deterministic example inputs ----
    x_enc = jax.random.normal(next(_ki), (B, L, M), jnp.float32)
    x_mark_enc = jax.random.normal(next(_ki), (B, L, F_MARK), jnp.float32)
    mask = (jax.random.uniform(next(_ki), (B, L, M)) > 0.2).astype(jnp.float32)
    x_enc = x_enc * mask     # caller pre-zeros masked entries (reference data pipeline)

    # ---- deterministic synthetic parameters, packed into contiguous slabs ----
    # TokenEmbedding: Conv1d(M, D, k=3, circular, no bias); torch weight is (D, M, 3).
    w_conv = nrm((D_MODEL, M, 3))
    # stacked per-tap weights ordered to match the [x(t-1) | x(t) | x(t+1)] lane concat
    w_tok3 = jnp.concatenate([w_conv[:, :, 0].T, w_conv[:, :, 1].T, w_conv[:, :, 2].T], axis=0)
    w_time = nrm((F_MARK, D_MODEL))              # TimeFeatureEmbedding (no bias)
    wpe = nrm((L, D_MODEL))                      # GPT2 learned position embedding rows

    # fixed sinusoidal PositionalEmbedding of DataEmbedding + GPT2 wpe (both pure adds)
    pos = jnp.arange(L, dtype=jnp.float32)[:, None]
    div = jnp.exp(jnp.arange(0, D_MODEL, 2, dtype=jnp.float32) * (-math.log(10000.0) / D_MODEL))
    pe = jnp.zeros((L, D_MODEL), jnp.float32)
    pe = pe.at[:, 0::2].set(jnp.sin(pos * div)).at[:, 1::2].set(jnp.cos(pos * div))
    pos_add = (pe + wpe).astype(jnp.float32)

    emb_slab = jnp.concatenate([w_tok3, w_time, pos_add], axis=0)     # (32, 32)
    assert emb_slab.shape == (EMB_ROWS, D_MODEL)

    def ln_params():
        return 1.0 + nrm((1, D_MODEL), 0.01), nrm((1, D_MODEL), 0.01)

    s32_layers, s96_layers, s128_layers = [], [], []
    for _ in range(N_LAYERS):
        g1, b1 = ln_params()
        g2, b2 = ln_params()
        w_qkv = nrm((D_MODEL, 3 * D_MODEL)); b_qkv = nrm((1, 3 * D_MODEL))   # GPT2 c_attn
        w_o = nrm((D_MODEL, D_MODEL)); b_o = nrm((1, D_MODEL))               # attn c_proj
        w_fc = nrm((D_MODEL, D_INNER)); b_fc = nrm((1, D_INNER))             # mlp c_fc
        w_pr = nrm((D_INNER, D_MODEL)); b_pr = nrm((1, D_MODEL))             # mlp c_proj
        s32_layers.append(jnp.concatenate(
            [w_o, w_pr, g1, b1, g2, b2, b_o, b_pr,
             jnp.zeros((S32_ROWS - S32_VEC - 6, D_MODEL), jnp.float32)], axis=0))
        s96_layers.append(jnp.concatenate(
            [w_qkv, b_qkv,
             jnp.zeros((S96_ROWS - D_MODEL - 1, 3 * D_MODEL), jnp.float32)], axis=0))
        s128_layers.append(jnp.concatenate(
            [w_fc, b_fc,
             jnp.zeros((S128_ROWS - D_MODEL - 1, D_INNER), jnp.float32)], axis=0))
    slab32 = jnp.stack(s32_layers)     # (NL, 168, 32)
    slab96 = jnp.stack(s96_layers)     # (NL, 40, 96)
    slab128 = jnp.stack(s128_layers)   # (NL, 40, 128)

    lnf_g, lnf_b = ln_params()         # GPT2 ln_f
    lnp_g, lnp_b = ln_params()         # model ln_proj
    w_out = nrm((D_MODEL, M))          # out_layer Linear(d_model, c_out), stored (in, out)
    b_out = nrm((1, M))
    w_out_pad = jnp.concatenate([w_out, jnp.zeros((D_MODEL, D_MODEL - M), jnp.float32)], axis=1)
    b_out_pad = jnp.concatenate([b_out, jnp.zeros((1, D_MODEL - M), jnp.float32)], axis=1)
    head_slab = jnp.concatenate(
        [lnf_g, lnf_b, lnp_g, lnp_b, b_out_pad,
         jnp.zeros((HEAD_WOUT - 5, D_MODEL), jnp.float32), w_out_pad], axis=0)   # (40, 32)
    assert head_slab.shape == (HEAD_ROWS, D_MODEL)

    params = dict(emb_slab=emb_slab, slab32=slab32, slab96=slab96,
                  slab128=slab128, head_slab=head_slab)

    # TODO(synk): pretrained GPT2 checkpoint loading / requires_grad freezing has no kernel
    # equivalent; weights above are synthetic.  Dropout layers are identity (eval mode).

    dec_out = imputation_forward(x_enc, x_mark_enc, mask, params,
                                 batch_block=_batch_block_for_device())
    dec_out = jax.block_until_ready(dec_out)
    assert dec_out.shape == (B, L, M) and dec_out.dtype == jnp.float32
    assert bool(jnp.all(jnp.isfinite(dec_out)))
    print("KERNEL_OK")
</pallas_src>

<mosaic_0001>
module attributes {stable_mosaic.version = 11 : i64} {
  func.func @fused_gpt4ts_kernel(%arg0: i32, %arg1: memref<2x16x4xf32, #tpu.memory_space<vmem>>, %arg2: memref<2x16x4xf32, #tpu.memory_space<vmem>>, %arg3: memref<2x16x4xf32, #tpu.memory_space<vmem>>, %arg4: memref<32x32xf32, #tpu.memory_space<vmem>>, %arg5: memref<32x32xf32, #tpu.memory_space<vmem>>, %arg6: memref<2x168x32xf32, #tpu.memory_space<vmem>>, %arg7: memref<2x40x96xf32, #tpu.memory_space<vmem>>, %arg8: memref<2x40x128xf32, #tpu.memory_space<vmem>>, %arg9: memref<40x32xf32, #tpu.memory_space<vmem>>, %arg10: memref<2x16x4xf32, #tpu.memory_space<vmem>>) attributes {dimension_semantics = [#tpu.dimension_semantics<parallel>], iteration_bounds = array<i64: 1>, scalar_prefetch = 0 : i64, scratch_operands = 0 : i64, tpu.core_type = #tpu.core_type<tc>, window_params = [{transform_indices = @transform_0, window_bounds = array<i64: 2, 16, 4>}, {transform_indices = @transform_1, window_bounds = array<i64: 2, 16, 4>}, {transform_indices = @transform_2, window_bounds = array<i64: 2, 16, 4>}, {pipeline_mode = #tpu.pipeline_mode<synchronous>, transform_indices = @transform_3, window_bounds = array<i64: 32, 32>}, {pipeline_mode = #tpu.pipeline_mode<synchronous>, transform_indices = @transform_4, window_bounds = array<i64: 32, 32>}, {pipeline_mode = #tpu.pipeline_mode<synchronous>, transform_indices = @transform_5, window_bounds = array<i64: 2, 168, 32>}, {pipeline_mode = #tpu.pipeline_mode<synchronous>, transform_indices = @transform_6, window_bounds = array<i64: 2, 40, 96>}, {pipeline_mode = #tpu.pipeline_mode<synchronous>, transform_indices = @transform_7, window_bounds = array<i64: 2, 40, 128>}, {pipeline_mode = #tpu.pipeline_mode<synchronous>, transform_indices = @transform_8, window_bounds = array<i64: 40, 32>}, {transform_indices = @transform_9, window_bounds = array<i64: 2, 16, 4>}]} {
    %c0 = arith.constant 0 : index
    %c0_0 = arith.constant 0 : index
    %c0_1 = arith.constant 0 : index
    %0 = vector.load %arg1[%c0, %c0_0, %c0_1] : memref<2x16x4xf32, #tpu.memory_space<vmem>>, vector<2x16x4xf32>
    %c0_2 = arith.constant 0 : index
    %c0_3 = arith.constant 0 : index
    %c0_4 = arith.constant 0 : index
    %1 = vector.load %arg3[%c0_2, %c0_3, %c0_4] : memref<2x16x4xf32, #tpu.memory_space<vmem>>, vector<2x16x4xf32>
    %cst = arith.constant 1.000000e+00 : f32
    %2 = vector.broadcast %cst : f32 to vector<2x16x4xf32>
    %3 = arith.cmpf oeq, %1, %2 : vector<2x16x4xf32>
    %4 = arith.extui %3 : vector<2x16x4xi1> to vector<2x16x4xi32>
    %5 = arith.sitofp %4 : vector<2x16x4xi32> to vector<2x16x4xf32>
    %cst_5 = arith.constant dense<0.000000e+00> : vector<2x4xf32>
    %6 = vector.multi_reduction <add>, %5, %cst_5 [1] : vector<2x16x4xf32> to vector<2x4xf32>
    %7 = vector.shape_cast %6 : vector<2x4xf32> to vector<2x1x4xf32>
    %cst_6 = arith.constant 1.000000e+00 : f32
    %8 = vector.broadcast %cst_6 : f32 to vector<2x1x4xf32>
    %9 = arith.maximumf %7, %8 : vector<2x1x4xf32>
    %cst_7 = arith.constant dense<0.000000e+00> : vector<2x4xf32>
    %10 = vector.multi_reduction <add>, %0, %cst_7 [1] : vector<2x16x4xf32> to vector<2x4xf32>
    %11 = vector.shape_cast %10 : vector<2x4xf32> to vector<2x1x4xf32>
    %12 = arith.divf %11, %9 : vector<2x1x4xf32>
    %cst_8 = arith.constant 0.000000e+00 : f32
    %13 = vector.broadcast %cst_8 : f32 to vector<2x16x4xf32>
    %14 = arith.cmpf oeq, %1, %13 : vector<2x16x4xf32>
    %15 = vector.broadcast %12 : vector<2x1x4xf32> to vector<2x16x4xf32>
    %16 = arith.subf %0, %15 : vector<2x16x4xf32>
    %cst_9 = arith.constant 0.000000e+00 : f32
    %17 = vector.broadcast %cst_9 : f32 to vector<2x16x4xf32>
    %18 = arith.select %14, %17, %16 : vector<2x16x4xi1>, vector<2x16x4xf32>
    %19 = arith.mulf %18, %18 : vector<2x16x4xf32>
    %cst_10 = arith.constant dense<0.000000e+00> : vector<2x4xf32>
    %20 = vector.multi_reduction <add>, %19, %cst_10 [1] : vector<2x16x4xf32> to vector<2x4xf32>
    %21 = vector.shape_cast %20 : vector<2x4xf32> to vector<2x1x4xf32>
    %22 = arith.divf %21, %9 : vector<2x1x4xf32>
    %cst_11 = arith.constant 9.99999974E-6 : f32
    %23 = vector.broadcast %cst_11 : f32 to vector<2x1x4xf32>
    %24 = arith.maximumf %22, %23 : vector<2x1x4xf32>
    %25 = math.sqrt %24 : vector<2x1x4xf32>
    %26 = vector.broadcast %25 : vector<2x1x4xf32> to vector<2x16x4xf32>
    %27 = arith.divf %18, %26 : vector<2x16x4xf32>
    %28 = vector.extract_strided_slice %27 {offsets = [0, 15, 0], sizes = [2, 1, 4], strides = [1, 1, 1]} : vector<2x16x4xf32> to vector<2x1x4xf32>
    %29 = vector.extract_strided_slice %27 {offsets = [0, 0, 0], sizes = [2, 15, 4], strides = [1, 1, 1]} : vector<2x16x4xf32> to vector<2x15x4xf32>
    %30 = tpu.concatenate %28, %29 in 1 : vector<2x1x4xf32>, vector<2x15x4xf32> -> vector<2x16x4xf32>
    %31 = vector.extract_strided_slice %27 {offsets = [0, 1, 0], sizes = [2, 15, 4], strides = [1, 1, 1]} : vector<2x16x4xf32> to vector<2x15x4xf32>
    %32 = vector.extract_strided_slice %27 {offsets = [0, 0, 0], sizes = [2, 1, 4], strides = [1, 1, 1]} : vector<2x16x4xf32> to vector<2x1x4xf32>
    %33 = tpu.concatenate %31, %32 in 1 : vector<2x15x4xf32>, vector<2x1x4xf32> -> vector<2x16x4xf32>
    %34 = tpu.concatenate %30, %27, %33 in 2 : vector<2x16x4xf32>, vector<2x16x4xf32>, vector<2x16x4xf32> -> vector<2x16x12xf32>
    %35 = vector.shape_cast %34 : vector<2x16x12xf32> to vector<32x12xf32>
    %c0_12 = arith.constant 0 : index
    %c0_13 = arith.constant 0 : index
    %36 = vector.load %arg5[%c0_12, %c0_13] : memref<32x32xf32, #tpu.memory_space<vmem>>, vector<12x32xf32>
    %c12 = arith.constant 12 : index
    %c0_14 = arith.constant 0 : index
    %37 = vector.load %arg5[%c12, %c0_14] : memref<32x32xf32, #tpu.memory_space<vmem>>, vector<4x32xf32>
    %c16 = arith.constant 16 : index
    %c0_15 = arith.constant 0 : index
    %38 = vector.load %arg5[%c16, %c0_15] : memref<32x32xf32, #tpu.memory_space<vmem>>, vector<16x32xf32>
    %cst_16 = arith.constant dense<0.000000e+00> : vector<32x32xf32>
    %39 = tpu.matmul %35, %36, %cst_16 {dimension_numbers = #tpu.dot_dimension_numbers<[1], [0], [0], [1], [0, 0, 1, 1], [], []>} : vector<32x12xf32>, vector<12x32xf32>, vector<32x32xf32> -> vector<32x32xf32>
    %c0_17 = arith.constant 0 : index
    %c0_18 = arith.constant 0 : index
    %c0_19 = arith.constant 0 : index
    %40 = vector.load %arg2[%c0_17, %c0_18, %c0_19] : memref<2x16x4xf32, #tpu.memory_space<vmem>>, vector<2x16x4xf32>
    %41 = vector.shape_cast %40 : vector<2x16x4xf32> to vector<32x4xf32>
    %cst_20 = arith.constant dense<0.000000e+00> : vector<32x32xf32>
    %42 = tpu.matmul %41, %37, %cst_20 {dimension_numbers = #tpu.dot_dimension_numbers<[1], [0], [0], [1], [0, 0, 1, 1], [], []>} : vector<32x4xf32>, vector<4x32xf32>, vector<32x32xf32> -> vector<32x32xf32>
    %43 = tpu.concatenate %38, %38 in 0 : vector<16x32xf32>, vector<16x32xf32> -> vector<32x32xf32>
    %44 = arith.addf %39, %42 : vector<32x32xf32>
    %45 = arith.addf %44, %43 : vector<32x32xf32>
    %c0_21 = arith.constant 0 : index
    %c0_22 = arith.constant 0 : index
    %46 = vector.load %arg4[%c0_21, %c0_22] : memref<32x32xf32, #tpu.memory_space<vmem>>, vector<32x32xf32>
    %c0_23 = arith.constant 0 : index
    %c0_24 = arith.constant 0 : index
    %c0_25 = arith.constant 0 : index
    %47 = vector.load %arg6[%c0_23, %c0_24, %c0_25] : memref<2x168x32xf32, #tpu.memory_space<vmem>>, vector<1x32x32xf32>
    %48 = vector.shape_cast %47 : vector<1x32x32xf32> to vector<32x32xf32>
    %c0_26 = arith.constant 0 : index
    %c32 = arith.constant 32 : index
    %c0_27 = arith.constant 0 : index
    %49 = vector.load %arg6[%c0_26, %c32, %c0_27] : memref<2x168x32xf32, #tpu.memory_space<vmem>>, vector<1x128x32xf32>
    %50 = vector.shape_cast %49 : vector<1x128x32xf32> to vector<128x32xf32>
    %c0_28 = arith.constant 0 : index
    %c160 = arith.constant 160 : index
    %c0_29 = arith.constant 0 : index
    %51 = vector.load %arg6[%c0_28, %c160, %c0_29] : memref<2x168x32xf32, #tpu.memory_space<vmem>>, vector<1x1x32xf32>
    %52 = vector.shape_cast %51 : vector<1x1x32xf32> to vector<1x32xf32>
    %c0_30 = arith.constant 0 : index
    %c161 = arith.constant 161 : index
    %c0_31 = arith.constant 0 : index
    %53 = vector.load %arg6[%c0_30, %c161, %c0_31] : memref<2x168x32xf32, #tpu.memory_space<vmem>>, vector<1x1x32xf32>
    %54 = vector.shape_cast %53 : vector<1x1x32xf32> to vector<1x32xf32>
    %c0_32 = arith.constant 0 : index
    %c162 = arith.constant 162 : index
    %c0_33 = arith.constant 0 : index
    %55 = vector.load %arg6[%c0_32, %c162, %c0_33] : memref<2x168x32xf32, #tpu.memory_space<vmem>>, vector<1x1x32xf32>
    %56 = vector.shape_cast %55 : vector<1x1x32xf32> to vector<1x32xf32>
    %c0_34 = arith.constant 0 : index
    %c163 = arith.constant 163 : index
    %c0_35 = arith.constant 0 : index
    %57 = vector.load %arg6[%c0_34, %c163, %c0_35] : memref<2x168x32xf32, #tpu.memory_space<vmem>>, vector<1x1x32xf32>
    %58 = vector.shape_cast %57 : vector<1x1x32xf32> to vector<1x32xf32>
    %c0_36 = arith.constant 0 : index
    %c164 = arith.constant 164 : index
    %c0_37 = arith.constant 0 : index
    %59 = vector.load %arg6[%c0_36, %c164, %c0_37] : memref<2x168x32xf32, #tpu.memory_space<vmem>>, vector<1x1x32xf32>
    %60 = vector.shape_cast %59 : vector<1x1x32xf32> to vector<1x32xf32>
    %c0_38 = arith.constant 0 : index
    %c165 = arith.constant 165 : index
    %c0_39 = arith.constant 0 : index
    %61 = vector.load %arg6[%c0_38, %c165, %c0_39] : memref<2x168x32xf32, #tpu.memory_space<vmem>>, vector<1x1x32xf32>
    %62 = vector.shape_cast %61 : vector<1x1x32xf32> to vector<1x32xf32>
    %c0_40 = arith.constant 0 : index
    %c0_41 = arith.constant 0 : index
    %c0_42 = arith.constant 0 : index
    %63 = vector.load %arg7[%c0_40, %c0_41, %c0_42] : memref<2x40x96xf32, #tpu.memory_space<vmem>>, vector<1x32x96xf32>
    %64 = vector.shape_cast %63 : vector<1x32x96xf32> to vector<32x96xf32>
    %c0_43 = arith.constant 0 : index
    %c32_44 = arith.constant 32 : index
    %c0_45 = arith.constant 0 : index
    %65 = vector.load %arg7[%c0_43, %c32_44, %c0_45] : memref<2x40x96xf32, #tpu.memory_space<vmem>>, vector<1x1x96xf32>
    %66 = vector.shape_cast %65 : vector<1x1x96xf32> to vector<1x96xf32>
    %c0_46 = arith.constant 0 : index
    %c0_47 = arith.constant 0 : index
    %c0_48 = arith.constant 0 : index
    %67 = vector.load %arg8[%c0_46, %c0_47, %c0_48] : memref<2x40x128xf32, #tpu.memory_space<vmem>>, vector<1x32x128xf32>
    %68 = vector.shape_cast %67 : vector<1x32x128xf32> to vector<32x128xf32>
    %c0_49 = arith.constant 0 : index
    %c32_50 = arith.constant 32 : index
    %c0_51 = arith.constant 0 : index
    %69 = vector.load %arg8[%c0_49, %c32_50, %c0_51] : memref<2x40x128xf32, #tpu.memory_space<vmem>>, vector<1x1x128xf32>
    %70 = vector.shape_cast %69 : vector<1x1x128xf32> to vector<1x128xf32>
    %cst_52 = arith.constant dense<0.000000e+00> : vector<32xf32>
    %71 = vector.multi_reduction <add>, %45, %cst_52 [1] : vector<32x32xf32> to vector<32xf32>
    %72 = vector.shape_cast %71 : vector<32xf32> to vector<32x1xf32>
    %cst_53 = arith.constant 3.200000e+01 : f32
    %73 = vector.broadcast %cst_53 : f32 to vector<32x1xf32>
    %74 = arith.divf %72, %73 : vector<32x1xf32>
    %75 = vector.broadcast %74 : vector<32x1xf32> to vector<32x32xf32>
    %76 = arith.subf %45, %75 : vector<32x32xf32>
    %77 = arith.mulf %76, %76 : vector<32x32xf32>
    %cst_54 = arith.constant dense<0.000000e+00> : vector<32xf32>
    %78 = vector.multi_reduction <add>, %77, %cst_54 [1] : vector<32x32xf32> to vector<32xf32>
    %79 = vector.shape_cast %78 : vector<32xf32> to vector<32x1xf32>
    %cst_55 = arith.constant 3.200000e+01 : f32
    %80 = vector.broadcast %cst_55 : f32 to vector<32x1xf32>
    %81 = arith.divf %79, %80 : vector<32x1xf32>
    %cst_56 = arith.constant 9.99999974E-6 : f32
    %82 = vector.broadcast %cst_56 : f32 to vector<32x1xf32>
    %83 = arith.addf %81, %82 : vector<32x1xf32>
    %84 = math.rsqrt %83 : vector<32x1xf32>
    %85 = vector.broadcast %84 : vector<32x1xf32> to vector<32x32xf32>
    %86 = arith.mulf %76, %85 : vector<32x32xf32>
    %87 = vector.broadcast %52 : vector<1x32xf32> to vector<32x32xf32>
    %88 = arith.mulf %86, %87 : vector<32x32xf32>
    %89 = vector.broadcast %54 : vector<1x32xf32> to vector<32x32xf32>
    %90 = arith.addf %88, %89 : vector<32x32xf32>
    %cst_57 = arith.constant dense<0.000000e+00> : vector<32x96xf32>
    %91 = tpu.matmul %90, %64, %cst_57 {dimension_numbers = #tpu.dot_dimension_numbers<[1], [0], [0], [1], [0, 0, 1, 1], [], []>} : vector<32x32xf32>, vector<32x96xf32>, vector<32x96xf32> -> vector<32x96xf32>
    %92 = vector.broadcast %66 : vector<1x96xf32> to vector<32x96xf32>
    %93 = arith.addf %91, %92 : vector<32x96xf32>
    %94 = vector.extract_strided_slice %93 {offsets = [0, 0], sizes = [32, 8], strides = [1, 1]} : vector<32x96xf32> to vector<32x8xf32>
    %95 = vector.extract_strided_slice %93 {offsets = [0, 32], sizes = [32, 8], strides = [1, 1]} : vector<32x96xf32> to vector<32x8xf32>
    %96 = vector.extract_strided_slice %93 {offsets = [0, 64], sizes = [32, 8], strides = [1, 1]} : vector<32x96xf32> to vector<32x8xf32>
    %cst_58 = arith.constant dense<0.000000e+00> : vector<32x32xf32>
    %97 = tpu.matmul %94, %95, %cst_58 {dimension_numbers = #tpu.dot_dimension_numbers<[1], [1], [0], [0], [0, 0, 1, 0], [], []>} : vector<32x8xf32>, vector<32x8xf32>, vector<32x32xf32> -> vector<32x32xf32>
    %cst_59 = arith.constant 0.353553385 : f32
    %98 = vector.broadcast %cst_59 : f32 to vector<32x32xf32>
    %99 = arith.mulf %97, %98 : vector<32x32xf32>
    %100 = arith.addf %99, %46 : vector<32x32xf32>
    %cst_60 = arith.constant dense<0xFF800000> : vector<32xf32>
    %101 = vector.multi_reduction <maximumf>, %100, %cst_60 [1] : vector<32x32xf32> to vector<32xf32>
    %102 = vector.shape_cast %101 : vector<32xf32> to vector<32x1xf32>
    %103 = vector.broadcast %102 : vector<32x1xf32> to vector<32x32xf32>
    %104 = arith.subf %100, %103 : vector<32x32xf32>
    %105 = math.exp %104 : vector<32x32xf32>
    %cst_61 = arith.constant dense<0.000000e+00> : vector<32xf32>
    %106 = vector.multi_reduction <add>, %105, %cst_61 [1] : vector<32x32xf32> to vector<32xf32>
    %107 = vector.shape_cast %106 : vector<32xf32> to vector<32x1xf32>
    %108 = vector.broadcast %107 : vector<32x1xf32> to vector<32x32xf32>
    %109 = arith.divf %105, %108 : vector<32x32xf32>
    %cst_62 = arith.constant dense<0.000000e+00> : vector<32x8xf32>
    %110 = tpu.matmul %109, %96, %cst_62 {dimension_numbers = #tpu.dot_dimension_numbers<[1], [0], [0], [1], [0, 0, 1, 1], [], []>} : vector<32x32xf32>, vector<32x8xf32>, vector<32x8xf32> -> vector<32x8xf32>
    %111 = vector.extract_strided_slice %93 {offsets = [0, 8], sizes = [32, 8], strides = [1, 1]} : vector<32x96xf32> to vector<32x8xf32>
    %112 = vector.extract_strided_slice %93 {offsets = [0, 40], sizes = [32, 8], strides = [1, 1]} : vector<32x96xf32> to vector<32x8xf32>
    %113 = vector.extract_strided_slice %93 {offsets = [0, 72], sizes = [32, 8], strides = [1, 1]} : vector<32x96xf32> to vector<32x8xf32>
    %cst_63 = arith.constant dense<0.000000e+00> : vector<32x32xf32>
    %114 = tpu.matmul %111, %112, %cst_63 {dimension_numbers = #tpu.dot_dimension_numbers<[1], [1], [0], [0], [0, 0, 1, 0], [], []>} : vector<32x8xf32>, vector<32x8xf32>, vector<32x32xf32> -> vector<32x32xf32>
    %cst_64 = arith.constant 0.353553385 : f32
    %115 = vector.broadcast %cst_64 : f32 to vector<32x32xf32>
    %116 = arith.mulf %114, %115 : vector<32x32xf32>
    %117 = arith.addf %116, %46 : vector<32x32xf32>
    %cst_65 = arith.constant dense<0xFF800000> : vector<32xf32>
    %118 = vector.multi_reduction <maximumf>, %117, %cst_65 [1] : vector<32x32xf32> to vector<32xf32>
    %119 = vector.shape_cast %118 : vector<32xf32> to vector<32x1xf32>
    %120 = vector.broadcast %119 : vector<32x1xf32> to vector<32x32xf32>
    %121 = arith.subf %117, %120 : vector<32x32xf32>
    %122 = math.exp %121 : vector<32x32xf32>
    %cst_66 = arith.constant dense<0.000000e+00> : vector<32xf32>
    %123 = vector.multi_reduction <add>, %122, %cst_66 [1] : vector<32x32xf32> to vector<32xf32>
    %124 = vector.shape_cast %123 : vector<32xf32> to vector<32x1xf32>
    %125 = vector.broadcast %124 : vector<32x1xf32> to vector<32x32xf32>
    %126 = arith.divf %122, %125 : vector<32x32xf32>
    %cst_67 = arith.constant dense<0.000000e+00> : vector<32x8xf32>
    %127 = tpu.matmul %126, %113, %cst_67 {dimension_numbers = #tpu.dot_dimension_numbers<[1], [0], [0], [1], [0, 0, 1, 1], [], []>} : vector<32x32xf32>, vector<32x8xf32>, vector<32x8xf32> -> vector<32x8xf32>
    %128 = vector.extract_strided_slice %93 {offsets = [0, 16], sizes = [32, 8], strides = [1, 1]} : vector<32x96xf32> to vector<32x8xf32>
    %129 = vector.extract_strided_slice %93 {offsets = [0, 48], sizes = [32, 8], strides = [1, 1]} : vector<32x96xf32> to vector<32x8xf32>
    %130 = vector.extract_strided_slice %93 {offsets = [0, 80], sizes = [32, 8], strides = [1, 1]} : vector<32x96xf32> to vector<32x8xf32>
    %cst_68 = arith.constant dense<0.000000e+00> : vector<32x32xf32>
    %131 = tpu.matmul %128, %129, %cst_68 {dimension_numbers = #tpu.dot_dimension_numbers<[1], [1], [0], [0], [0, 0, 1, 0], [], []>} : vector<32x8xf32>, vector<32x8xf32>, vector<32x32xf32> -> vector<32x32xf32>
    %cst_69 = arith.constant 0.353553385 : f32
    %132 = vector.broadcast %cst_69 : f32 to vector<32x32xf32>
    %133 = arith.mulf %131, %132 : vector<32x32xf32>
    %134 = arith.addf %133, %46 : vector<32x32xf32>
    %cst_70 = arith.constant dense<0xFF800000> : vector<32xf32>
    %135 = vector.multi_reduction <maximumf>, %134, %cst_70 [1] : vector<32x32xf32> to vector<32xf32>
    %136 = vector.shape_cast %135 : vector<32xf32> to vector<32x1xf32>
    %137 = vector.broadcast %136 : vector<32x1xf32> to vector<32x32xf32>
    %138 = arith.subf %134, %137 : vector<32x32xf32>
    %139 = math.exp %138 : vector<32x32xf32>
    %cst_71 = arith.constant dense<0.000000e+00> : vector<32xf32>
    %140 = vector.multi_reduction <add>, %139, %cst_71 [1] : vector<32x32xf32> to vector<32xf32>
    %141 = vector.shape_cast %140 : vector<32xf32> to vector<32x1xf32>
    %142 = vector.broadcast %141 : vector<32x1xf32> to vector<32x32xf32>
    %143 = arith.divf %139, %142 : vector<32x32xf32>
    %cst_72 = arith.constant dense<0.000000e+00> : vector<32x8xf32>
    %144 = tpu.matmul %143, %130, %cst_72 {dimension_numbers = #tpu.dot_dimension_numbers<[1], [0], [0], [1], [0, 0, 1, 1], [], []>} : vector<32x32xf32>, vector<32x8xf32>, vector<32x8xf32> -> vector<32x8xf32>
    %145 = vector.extract_strided_slice %93 {offsets = [0, 24], sizes = [32, 8], strides = [1, 1]} : vector<32x96xf32> to vector<32x8xf32>
    %146 = vector.extract_strided_slice %93 {offsets = [0, 56], sizes = [32, 8], strides = [1, 1]} : vector<32x96xf32> to vector<32x8xf32>
    %147 = vector.extract_strided_slice %93 {offsets = [0, 88], sizes = [32, 8], strides = [1, 1]} : vector<32x96xf32> to vector<32x8xf32>
    %cst_73 = arith.constant dense<0.000000e+00> : vector<32x32xf32>
    %148 = tpu.matmul %145, %146, %cst_73 {dimension_numbers = #tpu.dot_dimension_numbers<[1], [1], [0], [0], [0, 0, 1, 0], [], []>} : vector<32x8xf32>, vector<32x8xf32>, vector<32x32xf32> -> vector<32x32xf32>
    %cst_74 = arith.constant 0.353553385 : f32
    %149 = vector.broadcast %cst_74 : f32 to vector<32x32xf32>
    %150 = arith.mulf %148, %149 : vector<32x32xf32>
    %151 = arith.addf %150, %46 : vector<32x32xf32>
    %cst_75 = arith.constant dense<0xFF800000> : vector<32xf32>
    %152 = vector.multi_reduction <maximumf>, %151, %cst_75 [1] : vector<32x32xf32> to vector<32xf32>
    %153 = vector.shape_cast %152 : vector<32xf32> to vector<32x1xf32>
    %154 = vector.broadcast %153 : vector<32x1xf32> to vector<32x32xf32>
    %155 = arith.subf %151, %154 : vector<32x32xf32>
    %156 = math.exp %155 : vector<32x32xf32>
    %cst_76 = arith.constant dense<0.000000e+00> : vector<32xf32>
    %157 = vector.multi_reduction <add>, %156, %cst_76 [1] : vector<32x32xf32> to vector<32xf32>
    %158 = vector.shape_cast %157 : vector<32xf32> to vector<32x1xf32>
    %159 = vector.broadcast %158 : vector<32x1xf32> to vector<32x32xf32>
    %160 = arith.divf %156, %159 : vector<32x32xf32>
    %cst_77 = arith.constant dense<0.000000e+00> : vector<32x8xf32>
    %161 = tpu.matmul %160, %147, %cst_77 {dimension_numbers = #tpu.dot_dimension_numbers<[1], [0], [0], [1], [0, 0, 1, 1], [], []>} : vector<32x32xf32>, vector<32x8xf32>, vector<32x8xf32> -> vector<32x8xf32>
    %162 = tpu.concatenate %110, %127, %144, %161 in 1 : vector<32x8xf32>, vector<32x8xf32>, vector<32x8xf32>, vector<32x8xf32> -> vector<32x32xf32>
    %cst_78 = arith.constant dense<0.000000e+00> : vector<32x32xf32>
    %163 = tpu.matmul %162, %48, %cst_78 {dimension_numbers = #tpu.dot_dimension_numbers<[1], [0], [0], [1], [0, 0, 1, 1], [], []>} : vector<32x32xf32>, vector<32x32xf32>, vector<32x32xf32> -> vector<32x32xf32>
    %164 = arith.addf %45, %163 : vector<32x32xf32>
    %165 = vector.broadcast %60 : vector<1x32xf32> to vector<32x32xf32>
    %166 = arith.addf %164, %165 : vector<32x32xf32>
    %cst_79 = arith.constant dense<0.000000e+00> : vector<32xf32>
    %167 = vector.multi_reduction <add>, %166, %cst_79 [1] : vector<32x32xf32> to vector<32xf32>
    %168 = vector.shape_cast %167 : vector<32xf32> to vector<32x1xf32>
    %cst_80 = arith.constant 3.200000e+01 : f32
    %169 = vector.broadcast %cst_80 : f32 to vector<32x1xf32>
    %170 = arith.divf %168, %169 : vector<32x1xf32>
    %171 = vector.broadcast %170 : vector<32x1xf32> to vector<32x32xf32>
    %172 = arith.subf %166, %171 : vector<32x32xf32>
    %173 = arith.mulf %172, %172 : vector<32x32xf32>
    %cst_81 = arith.constant dense<0.000000e+00> : vector<32xf32>
    %174 = vector.multi_reduction <add>, %173, %cst_81 [1] : vector<32x32xf32> to vector<32xf32>
    %175 = vector.shape_cast %174 : vector<32xf32> to vector<32x1xf32>
    %cst_82 = arith.constant 3.200000e+01 : f32
    %176 = vector.broadcast %cst_82 : f32 to vector<32x1xf32>
    %177 = arith.divf %175, %176 : vector<32x1xf32>
    %cst_83 = arith.constant 9.99999974E-6 : f32
    %178 = vector.broadcast %cst_83 : f32 to vector<32x1xf32>
    %179 = arith.addf %177, %178 : vector<32x1xf32>
    %180 = math.rsqrt %179 : vector<32x1xf32>
    %181 = vector.broadcast %180 : vector<32x1xf32> to vector<32x32xf32>
    %182 = arith.mulf %172, %181 : vector<32x32xf32>
    %183 = vector.broadcast %56 : vector<1x32xf32> to vector<32x32xf32>
    %184 = arith.mulf %182, %183 : vector<32x32xf32>
    %185 = vector.broadcast %58 : vector<1x32xf32> to vector<32x32xf32>
    %186 = arith.addf %184, %185 : vector<32x32xf32>
    %cst_84 = arith.constant dense<0.000000e+00> : vector<32x128xf32>
    %187 = tpu.matmul %186, %68, %cst_84 {dimension_numbers = #tpu.dot_dimension_numbers<[1], [0], [0], [1], [0, 0, 1, 1], [], []>} : vector<32x32xf32>, vector<32x128xf32>, vector<32x128xf32> -> vector<32x128xf32>
    %188 = vector.broadcast %70 : vector<1x128xf32> to vector<32x128xf32>
    %189 = arith.addf %187, %188 : vector<32x128xf32>
    %cst_85 = arith.constant 5.000000e-01 : f32
    %190 = vector.broadcast %cst_85 : f32 to vector<32x128xf32>
    %191 = arith.mulf %190, %189 : vector<32x128xf32>
    %cst_86 = arith.constant 4.471500e-02 : f32
    %192 = vector.broadcast %cst_86 : f32 to vector<32x128xf32>
    %193 = arith.mulf %192, %189 : vector<32x128xf32>
    %194 = arith.mulf %193, %189 : vector<32x128xf32>
    %195 = arith.mulf %194, %189 : vector<32x128xf32>
    %196 = arith.addf %189, %195 : vector<32x128xf32>
    %cst_87 = arith.constant 0.797884583 : f32
    %197 = vector.broadcast %cst_87 : f32 to vector<32x128xf32>
    %198 = arith.mulf %197, %196 : vector<32x128xf32>
    %199 = math.tanh %198 : vector<32x128xf32>
    %cst_88 = arith.constant 1.000000e+00 : f32
    %200 = vector.broadcast %cst_88 : f32 to vector<32x128xf32>
    %201 = arith.addf %200, %199 : vector<32x128xf32>
    %202 = arith.mulf %191, %201 : vector<32x128xf32>
    %cst_89 = arith.constant dense<0.000000e+00> : vector<32x32xf32>
    %203 = tpu.matmul %202, %50, %cst_89 {dimension_numbers = #tpu.dot_dimension_numbers<[1], [0], [0], [1], [0, 0, 1, 1], [], []>} : vector<32x128xf32>, vector<128x32xf32>, vector<32x32xf32> -> vector<32x32xf32>
    %204 = arith.addf %166, %203 : vector<32x32xf32>
    %205 = vector.broadcast %62 : vector<1x32xf32> to vector<32x32xf32>
    %206 = arith.addf %204, %205 : vector<32x32xf32>
    %c1 = arith.constant 1 : index
    %c0_90 = arith.constant 0 : index
    %c0_91 = arith.constant 0 : index
    %207 = vector.load %arg6[%c1, %c0_90, %c0_91] : memref<2x168x32xf32, #tpu.memory_space<vmem>>, vector<1x32x32xf32>
    %208 = vector.shape_cast %207 : vector<1x32x32xf32> to vector<32x32xf32>
    %c1_92 = arith.constant 1 : index
    %c32_93 = arith.constant 32 : index
    %c0_94 = arith.constant 0 : index
    %209 = vector.load %arg6[%c1_92, %c32_93, %c0_94] : memref<2x168x32xf32, #tpu.memory_space<vmem>>, vector<1x128x32xf32>
    %210 = vector.shape_cast %209 : vector<1x128x32xf32> to vector<128x32xf32>
    %c1_95 = arith.constant 1 : index
    %c160_96 = arith.constant 160 : index
    %c0_97 = arith.constant 0 : index
    %211 = vector.load %arg6[%c1_95, %c160_96, %c0_97] : memref<2x168x32xf32, #tpu.memory_space<vmem>>, vector<1x1x32xf32>
    %212 = vector.shape_cast %211 : vector<1x1x32xf32> to vector<1x32xf32>
    %c1_98 = arith.constant 1 : index
    %c161_99 = arith.constant 161 : index
    %c0_100 = arith.constant 0 : index
    %213 = vector.load %arg6[%c1_98, %c161_99, %c0_100] : memref<2x168x32xf32, #tpu.memory_space<vmem>>, vector<1x1x32xf32>
    %214 = vector.shape_cast %213 : vector<1x1x32xf32> to vector<1x32xf32>
    %c1_101 = arith.constant 1 : index
    %c162_102 = arith.constant 162 : index
    %c0_103 = arith.constant 0 : index
    %215 = vector.load %arg6[%c1_101, %c162_102, %c0_103] : memref<2x168x32xf32, #tpu.memory_space<vmem>>, vector<1x1x32xf32>
    %216 = vector.shape_cast %215 : vector<1x1x32xf32> to vector<1x32xf32>
    %c1_104 = arith.constant 1 : index
    %c163_105 = arith.constant 163 : index
    %c0_106 = arith.constant 0 : index
    %217 = vector.load %arg6[%c1_104, %c163_105, %c0_106] : memref<2x168x32xf32, #tpu.memory_space<vmem>>, vector<1x1x32xf32>
    %218 = vector.shape_cast %217 : vector<1x1x32xf32> to vector<1x32xf32>
    %c1_107 = arith.constant 1 : index
    %c164_108 = arith.constant 164 : index
    %c0_109 = arith.constant 0 : index
    %219 = vector.load %arg6[%c1_107, %c164_108, %c0_109] : memref<2x168x32xf32, #tpu.memory_space<vmem>>, vector<1x1x32xf32>
    %220 = vector.shape_cast %219 : vector<1x1x32xf32> to vector<1x32xf32>
    %c1_110 = arith.constant 1 : index
    %c165_111 = arith.constant 165 : index
    %c0_112 = arith.constant 0 : index
    %221 = vector.load %arg6[%c1_110, %c165_111, %c0_112] : memref<2x168x32xf32, #tpu.memory_space<vmem>>, vector<1x1x32xf32>
    %222 = vector.shape_cast %221 : vector<1x1x32xf32> to vector<1x32xf32>
    %c1_113 = arith.constant 1 : index
    %c0_114 = arith.constant 0 : index
    %c0_115 = arith.constant 0 : index
    %223 = vector.load %arg7[%c1_113, %c0_114, %c0_115] : memref<2x40x96xf32, #tpu.memory_space<vmem>>, vector<1x32x96xf32>
    %224 = vector.shape_cast %223 : vector<1x32x96xf32> to vector<32x96xf32>
    %c1_116 = arith.constant 1 : index
    %c32_117 = arith.constant 32 : index
    %c0_118 = arith.constant 0 : index
    %225 = vector.load %arg7[%c1_116, %c32_117, %c0_118] : memref<2x40x96xf32, #tpu.memory_space<vmem>>, vector<1x1x96xf32>
    %226 = vector.shape_cast %225 : vector<1x1x96xf32> to vector<1x96xf32>
    %c1_119 = arith.constant 1 : index
    %c0_120 = arith.constant 0 : index
    %c0_121 = arith.constant 0 : index
    %227 = vector.load %arg8[%c1_119, %c0_120, %c0_121] : memref<2x40x128xf32, #tpu.memory_space<vmem>>, vector<1x32x128xf32>
    %228 = vector.shape_cast %227 : vector<1x32x128xf32> to vector<32x128xf32>
    %c1_122 = arith.constant 1 : index
    %c32_123 = arith.constant 32 : index
    %c0_124 = arith.constant 0 : index
    %229 = vector.load %arg8[%c1_122, %c32_123, %c0_124] : memref<2x40x128xf32, #tpu.memory_space<vmem>>, vector<1x1x128xf32>
    %230 = vector.shape_cast %229 : vector<1x1x128xf32> to vector<1x128xf32>
    %cst_125 = arith.constant dense<0.000000e+00> : vector<32xf32>
    %231 = vector.multi_reduction <add>, %206, %cst_125 [1] : vector<32x32xf32> to vector<32xf32>
    %232 = vector.shape_cast %231 : vector<32xf32> to vector<32x1xf32>
    %cst_126 = arith.constant 3.200000e+01 : f32
    %233 = vector.broadcast %cst_126 : f32 to vector<32x1xf32>
    %234 = arith.divf %232, %233 : vector<32x1xf32>
    %235 = vector.broadcast %234 : vector<32x1xf32> to vector<32x32xf32>
    %236 = arith.subf %206, %235 : vector<32x32xf32>
    %237 = arith.mulf %236, %236 : vector<32x32xf32>
    %cst_127 = arith.constant dense<0.000000e+00> : vector<32xf32>
    %238 = vector.multi_reduction <add>, %237, %cst_127 [1] : vector<32x32xf32> to vector<32xf32>
    %239 = vector.shape_cast %238 : vector<32xf32> to vector<32x1xf32>
    %cst_128 = arith.constant 3.200000e+01 : f32
    %240 = vector.broadcast %cst_128 : f32 to vector<32x1xf32>
    %241 = arith.divf %239, %240 : vector<32x1xf32>
    %cst_129 = arith.constant 9.99999974E-6 : f32
    %242 = vector.broadcast %cst_129 : f32 to vector<32x1xf32>
    %243 = arith.addf %241, %242 : vector<32x1xf32>
    %244 = math.rsqrt %243 : vector<32x1xf32>
    %245 = vector.broadcast %244 : vector<32x1xf32> to vector<32x32xf32>
    %246 = arith.mulf %236, %245 : vector<32x32xf32>
    %247 = vector.broadcast %212 : vector<1x32xf32> to vector<32x32xf32>
    %248 = arith.mulf %246, %247 : vector<32x32xf32>
    %249 = vector.broadcast %214 : vector<1x32xf32> to vector<32x32xf32>
    %250 = arith.addf %248, %249 : vector<32x32xf32>
    %cst_130 = arith.constant dense<0.000000e+00> : vector<32x96xf32>
    %251 = tpu.matmul %250, %224, %cst_130 {dimension_numbers = #tpu.dot_dimension_numbers<[1], [0], [0], [1], [0, 0, 1, 1], [], []>} : vector<32x32xf32>, vector<32x96xf32>, vector<32x96xf32> -> vector<32x96xf32>
    %252 = vector.broadcast %226 : vector<1x96xf32> to vector<32x96xf32>
    %253 = arith.addf %251, %252 : vector<32x96xf32>
    %254 = vector.extract_strided_slice %253 {offsets = [0, 0], sizes = [32, 8], strides = [1, 1]} : vector<32x96xf32> to vector<32x8xf32>
    %255 = vector.extract_strided_slice %253 {offsets = [0, 32], sizes = [32, 8], strides = [1, 1]} : vector<32x96xf32> to vector<32x8xf32>
    %256 = vector.extract_strided_slice %253 {offsets = [0, 64], sizes = [32, 8], strides = [1, 1]} : vector<32x96xf32> to vector<32x8xf32>
    %cst_131 = arith.constant dense<0.000000e+00> : vector<32x32xf32>
    %257 = tpu.matmul %254, %255, %cst_131 {dimension_numbers = #tpu.dot_dimension_numbers<[1], [1], [0], [0], [0, 0, 1, 0], [], []>} : vector<32x8xf32>, vector<32x8xf32>, vector<32x32xf32> -> vector<32x32xf32>
    %cst_132 = arith.constant 0.353553385 : f32
    %258 = vector.broadcast %cst_132 : f32 to vector<32x32xf32>
    %259 = arith.mulf %257, %258 : vector<32x32xf32>
    %260 = arith.addf %259, %46 : vector<32x32xf32>
    %cst_133 = arith.constant dense<0xFF800000> : vector<32xf32>
    %261 = vector.multi_reduction <maximumf>, %260, %cst_133 [1] : vector<32x32xf32> to vector<32xf32>
    %262 = vector.shape_cast %261 : vector<32xf32> to vector<32x1xf32>
    %263 = vector.broadcast %262 : vector<32x1xf32> to vector<32x32xf32>
    %264 = arith.subf %260, %263 : vector<32x32xf32>
    %265 = math.exp %264 : vector<32x32xf32>
    %cst_134 = arith.constant dense<0.000000e+00> : vector<32xf32>
    %266 = vector.multi_reduction <add>, %265, %cst_134 [1] : vector<32x32xf32> to vector<32xf32>
    %267 = vector.shape_cast %266 : vector<32xf32> to vector<32x1xf32>
    %268 = vector.broadcast %267 : vector<32x1xf32> to vector<32x32xf32>
    %269 = arith.divf %265, %268 : vector<32x32xf32>
    %cst_135 = arith.constant dense<0.000000e+00> : vector<32x8xf32>
    %270 = tpu.matmul %269, %256, %cst_135 {dimension_numbers = #tpu.dot_dimension_numbers<[1], [0], [0], [1], [0, 0, 1, 1], [], []>} : vector<32x32xf32>, vector<32x8xf32>, vector<32x8xf32> -> vector<32x8xf32>
    %271 = vector.extract_strided_slice %253 {offsets = [0, 8], sizes = [32, 8], strides = [1, 1]} : vector<32x96xf32> to vector<32x8xf32>
    %272 = vector.extract_strided_slice %253 {offsets = [0, 40], sizes = [32, 8], strides = [1, 1]} : vector<32x96xf32> to vector<32x8xf32>
    %273 = vector.extract_strided_slice %253 {offsets = [0, 72], sizes = [32, 8], strides = [1, 1]} : vector<32x96xf32> to vector<32x8xf32>
    %cst_136 = arith.constant dense<0.000000e+00> : vector<32x32xf32>
    %274 = tpu.matmul %271, %272, %cst_136 {dimension_numbers = #tpu.dot_dimension_numbers<[1], [1], [0], [0], [0, 0, 1, 0], [], []>} : vector<32x8xf32>, vector<32x8xf32>, vector<32x32xf32> -> vector<32x32xf32>
    %cst_137 = arith.constant 0.353553385 : f32
    %275 = vector.broadcast %cst_137 : f32 to vector<32x32xf32>
    %276 = arith.mulf %274, %275 : vector<32x32xf32>
    %277 = arith.addf %276, %46 : vector<32x32xf32>
    %cst_138 = arith.constant dense<0xFF800000> : vector<32xf32>
    %278 = vector.multi_reduction <maximumf>, %277, %cst_138 [1] : vector<32x32xf32> to vector<32xf32>
    %279 = vector.shape_cast %278 : vector<32xf32> to vector<32x1xf32>
    %280 = vector.broadcast %279 : vector<32x1xf32> to vector<32x32xf32>
    %281 = arith.subf %277, %280 : vector<32x32xf32>
    %282 = math.exp %281 : vector<32x32xf32>
    %cst_139 = arith.constant dense<0.000000e+00> : vector<32xf32>
    %283 = vector.multi_reduction <add>, %282, %cst_139 [1] : vector<32x32xf32> to vector<32xf32>
    %284 = vector.shape_cast %283 : vector<32xf32> to vector<32x1xf32>
    %285 = vector.broadcast %284 : vector<32x1xf32> to vector<32x32xf32>
    %286 = arith.divf %282, %285 : vector<32x32xf32>
    %cst_140 = arith.constant dense<0.000000e+00> : vector<32x8xf32>
    %287 = tpu.matmul %286, %273, %cst_140 {dimension_numbers = #tpu.dot_dimension_numbers<[1], [0], [0], [1], [0, 0, 1, 1], [], []>} : vector<32x32xf32>, vector<32x8xf32>, vector<32x8xf32> -> vector<32x8xf32>
    %288 = vector.extract_strided_slice %253 {offsets = [0, 16], sizes = [32, 8], strides = [1, 1]} : vector<32x96xf32> to vector<32x8xf32>
    %289 = vector.extract_strided_slice %253 {offsets = [0, 48], sizes = [32, 8], strides = [1, 1]} : vector<32x96xf32> to vector<32x8xf32>
    %290 = vector.extract_strided_slice %253 {offsets = [0, 80], sizes = [32, 8], strides = [1, 1]} : vector<32x96xf32> to vector<32x8xf32>
    %cst_141 = arith.constant dense<0.000000e+00> : vector<32x32xf32>
    %291 = tpu.matmul %288, %289, %cst_141 {dimension_numbers = #tpu.dot_dimension_numbers<[1], [1], [0], [0], [0, 0, 1, 0], [], []>} : vector<32x8xf32>, vector<32x8xf32>, vector<32x32xf32> -> vector<32x32xf32>
    %cst_142 = arith.constant 0.353553385 : f32
    %292 = vector.broadcast %cst_142 : f32 to vector<32x32xf32>
    %293 = arith.mulf %291, %292 : vector<32x32xf32>
    %294 = arith.addf %293, %46 : vector<32x32xf32>
    %cst_143 = arith.constant dense<0xFF800000> : vector<32xf32>
    %295 = vector.multi_reduction <maximumf>, %294, %cst_143 [1] : vector<32x32xf32> to vector<32xf32>
    %296 = vector.shape_cast %295 : vector<32xf32> to vector<32x1xf32>
    %297 = vector.broadcast %296 : vector<32x1xf32> to vector<32x32xf32>
    %298 = arith.subf %294, %297 : vector<32x32xf32>
    %299 = math.exp %298 : vector<32x32xf32>
    %cst_144 = arith.constant dense<0.000000e+00> : vector<32xf32>
    %300 = vector.multi_reduction <add>, %299, %cst_144 [1] : vector<32x32xf32> to vector<32xf32>
    %301 = vector.shape_cast %300 : vector<32xf32> to vector<32x1xf32>
    %302 = vector.broadcast %301 : vector<32x1xf32> to vector<32x32xf32>
    %303 = arith.divf %299, %302 : vector<32x32xf32>
    %cst_145 = arith.constant dense<0.000000e+00> : vector<32x8xf32>
    %304 = tpu.matmul %303, %290, %cst_145 {dimension_numbers = #tpu.dot_dimension_numbers<[1], [0], [0], [1], [0, 0, 1, 1], [], []>} : vector<32x32xf32>, vector<32x8xf32>, vector<32x8xf32> -> vector<32x8xf32>
    %305 = vector.extract_strided_slice %253 {offsets = [0, 24], sizes = [32, 8], strides = [1, 1]} : vector<32x96xf32> to vector<32x8xf32>
    %306 = vector.extract_strided_slice %253 {offsets = [0, 56], sizes = [32, 8], strides = [1, 1]} : vector<32x96xf32> to vector<32x8xf32>
    %307 = vector.extract_strided_slice %253 {offsets = [0, 88], sizes = [32, 8], strides = [1, 1]} : vector<32x96xf32> to vector<32x8xf32>
    %cst_146 = arith.constant dense<0.000000e+00> : vector<32x32xf32>
    %308 = tpu.matmul %305, %306, %cst_146 {dimension_numbers = #tpu.dot_dimension_numbers<[1], [1], [0], [0], [0, 0, 1, 0], [], []>} : vector<32x8xf32>, vector<32x8xf32>, vector<32x32xf32> -> vector<32x32xf32>
    %cst_147 = arith.constant 0.353553385 : f32
    %309 = vector.broadcast %cst_147 : f32 to vector<32x32xf32>
    %310 = arith.mulf %308, %309 : vector<32x32xf32>
    %311 = arith.addf %310, %46 : vector<32x32xf32>
    %cst_148 = arith.constant dense<0xFF800000> : vector<32xf32>
    %312 = vector.multi_reduction <maximumf>, %311, %cst_148 [1] : vector<32x32xf32> to vector<32xf32>
    %313 = vector.shape_cast %312 : vector<32xf32> to vector<32x1xf32>
    %314 = vector.broadcast %313 : vector<32x1xf32> to vector<32x32xf32>
    %315 = arith.subf %311, %314 : vector<32x32xf32>
    %316 = math.exp %315 : vector<32x32xf32>
    %cst_149 = arith.constant dense<0.000000e+00> : vector<32xf32>
    %317 = vector.multi_reduction <add>, %316, %cst_149 [1] : vector<32x32xf32> to vector<32xf32>
    %318 = vector.shape_cast %317 : vector<32xf32> to vector<32x1xf32>
    %319 = vector.broadcast %318 : vector<32x1xf32> to vector<32x32xf32>
    %320 = arith.divf %316, %319 : vector<32x32xf32>
    %cst_150 = arith.constant dense<0.000000e+00> : vector<32x8xf32>
    %321 = tpu.matmul %320, %307, %cst_150 {dimension_numbers = #tpu.dot_dimension_numbers<[1], [0], [0], [1], [0, 0, 1, 1], [], []>} : vector<32x32xf32>, vector<32x8xf32>, vector<32x8xf32> -> vector<32x8xf32>
    %322 = tpu.concatenate %270, %287, %304, %321 in 1 : vector<32x8xf32>, vector<32x8xf32>, vector<32x8xf32>, vector<32x8xf32> -> vector<32x32xf32>
    %cst_151 = arith.constant dense<0.000000e+00> : vector<32x32xf32>
    %323 = tpu.matmul %322, %208, %cst_151 {dimension_numbers = #tpu.dot_dimension_numbers<[1], [0], [0], [1], [0, 0, 1, 1], [], []>} : vector<32x32xf32>, vector<32x32xf32>, vector<32x32xf32> -> vector<32x32xf32>
    %324 = arith.addf %206, %323 : vector<32x32xf32>
    %325 = vector.broadcast %220 : vector<1x32xf32> to vector<32x32xf32>
    %326 = arith.addf %324, %325 : vector<32x32xf32>
    %cst_152 = arith.constant dense<0.000000e+00> : vector<32xf32>
    %327 = vector.multi_reduction <add>, %326, %cst_152 [1] : vector<32x32xf32> to vector<32xf32>
    %328 = vector.shape_cast %327 : vector<32xf32> to vector<32x1xf32>
    %cst_153 = arith.constant 3.200000e+01 : f32
    %329 = vector.broadcast %cst_153 : f32 to vector<32x1xf32>
    %330 = arith.divf %328, %329 : vector<32x1xf32>
    %331 = vector.broadcast %330 : vector<32x1xf32> to vector<32x32xf32>
    %332 = arith.subf %326, %331 : vector<32x32xf32>
    %333 = arith.mulf %332, %332 : vector<32x32xf32>
    %cst_154 = arith.constant dense<0.000000e+00> : vector<32xf32>
    %334 = vector.multi_reduction <add>, %333, %cst_154 [1] : vector<32x32xf32> to vector<32xf32>
    %335 = vector.shape_cast %334 : vector<32xf32> to vector<32x1xf32>
    %cst_155 = arith.constant 3.200000e+01 : f32
    %336 = vector.broadcast %cst_155 : f32 to vector<32x1xf32>
    %337 = arith.divf %335, %336 : vector<32x1xf32>
    %cst_156 = arith.constant 9.99999974E-6 : f32
    %338 = vector.broadcast %cst_156 : f32 to vector<32x1xf32>
    %339 = arith.addf %337, %338 : vector<32x1xf32>
    %340 = math.rsqrt %339 : vector<32x1xf32>
    %341 = vector.broadcast %340 : vector<32x1xf32> to vector<32x32xf32>
    %342 = arith.mulf %332, %341 : vector<32x32xf32>
    %343 = vector.broadcast %216 : vector<1x32xf32> to vector<32x32xf32>
    %344 = arith.mulf %342, %343 : vector<32x32xf32>
    %345 = vector.broadcast %218 : vector<1x32xf32> to vector<32x32xf32>
    %346 = arith.addf %344, %345 : vector<32x32xf32>
    %cst_157 = arith.constant dense<0.000000e+00> : vector<32x128xf32>
    %347 = tpu.matmul %346, %228, %cst_157 {dimension_numbers = #tpu.dot_dimension_numbers<[1], [0], [0], [1], [0, 0, 1, 1], [], []>} : vector<32x32xf32>, vector<32x128xf32>, vector<32x128xf32> -> vector<32x128xf32>
    %348 = vector.broadcast %230 : vector<1x128xf32> to vector<32x128xf32>
    %349 = arith.addf %347, %348 : vector<32x128xf32>
    %cst_158 = arith.constant 5.000000e-01 : f32
    %350 = vector.broadcast %cst_158 : f32 to vector<32x128xf32>
    %351 = arith.mulf %350, %349 : vector<32x128xf32>
    %cst_159 = arith.constant 4.471500e-02 : f32
    %352 = vector.broadcast %cst_159 : f32 to vector<32x128xf32>
    %353 = arith.mulf %352, %349 : vector<32x128xf32>
    %354 = arith.mulf %353, %349 : vector<32x128xf32>
    %355 = arith.mulf %354, %349 : vector<32x128xf32>
    %356 = arith.addf %349, %355 : vector<32x128xf32>
    %cst_160 = arith.constant 0.797884583 : f32
    %357 = vector.broadcast %cst_160 : f32 to vector<32x128xf32>
    %358 = arith.mulf %357, %356 : vector<32x128xf32>
    %359 = math.tanh %358 : vector<32x128xf32>
    %cst_161 = arith.constant 1.000000e+00 : f32
    %360 = vector.broadcast %cst_161 : f32 to vector<32x128xf32>
    %361 = arith.addf %360, %359 : vector<32x128xf32>
    %362 = arith.mulf %351, %361 : vector<32x128xf32>
    %cst_162 = arith.constant dense<0.000000e+00> : vector<32x32xf32>
    %363 = tpu.matmul %362, %210, %cst_162 {dimension_numbers = #tpu.dot_dimension_numbers<[1], [0], [0], [1], [0, 0, 1, 1], [], []>} : vector<32x128xf32>, vector<128x32xf32>, vector<32x32xf32> -> vector<32x32xf32>
    %364 = arith.addf %326, %363 : vector<32x32xf32>
    %365 = vector.broadcast %222 : vector<1x32xf32> to vector<32x32xf32>
    %366 = arith.addf %364, %365 : vector<32x32xf32>
    %c0_163 = arith.constant 0 : index
    %c0_164 = arith.constant 0 : index
    %367 = vector.load %arg9[%c0_163, %c0_164] : memref<40x32xf32, #tpu.memory_space<vmem>>, vector<1x32xf32>
    %c1_165 = arith.constant 1 : index
    %c0_166 = arith.constant 0 : index
    %368 = vector.load %arg9[%c1_165, %c0_166] : memref<40x32xf32, #tpu.memory_space<vmem>>, vector<1x32xf32>
    %c2 = arith.constant 2 : index
    %c0_167 = arith.constant 0 : index
    %369 = vector.load %arg9[%c2, %c0_167] : memref<40x32xf32, #tpu.memory_space<vmem>>, vector<1x32xf32>
    %c3 = arith.constant 3 : index
    %c0_168 = arith.constant 0 : index
    %370 = vector.load %arg9[%c3, %c0_168] : memref<40x32xf32, #tpu.memory_space<vmem>>, vector<1x32xf32>
    %c4 = arith.constant 4 : index
    %c0_169 = arith.constant 0 : index
    %371 = vector.load %arg9[%c4, %c0_169] : memref<40x32xf32, #tpu.memory_space<vmem>>, vector<1x32xf32>
    %c8 = arith.constant 8 : index
    %c0_170 = arith.constant 0 : index
    %372 = vector.load %arg9[%c8, %c0_170] : memref<40x32xf32, #tpu.memory_space<vmem>>, vector<32x32xf32>
    %cst_171 = arith.constant dense<0.000000e+00> : vector<32xf32>
    %373 = vector.multi_reduction <add>, %366, %cst_171 [1] : vector<32x32xf32> to vector<32xf32>
    %374 = vector.shape_cast %373 : vector<32xf32> to vector<32x1xf32>
    %cst_172 = arith.constant 3.200000e+01 : f32
    %375 = vector.broadcast %cst_172 : f32 to vector<32x1xf32>
    %376 = arith.divf %374, %375 : vector<32x1xf32>
    %377 = vector.broadcast %376 : vector<32x1xf32> to vector<32x32xf32>
    %378 = arith.subf %366, %377 : vector<32x32xf32>
    %379 = arith.mulf %378, %378 : vector<32x32xf32>
    %cst_173 = arith.constant dense<0.000000e+00> : vector<32xf32>
    %380 = vector.multi_reduction <add>, %379, %cst_173 [1] : vector<32x32xf32> to vector<32xf32>
    %381 = vector.shape_cast %380 : vector<32xf32> to vector<32x1xf32>
    %cst_174 = arith.constant 3.200000e+01 : f32
    %382 = vector.broadcast %cst_174 : f32 to vector<32x1xf32>
    %383 = arith.divf %381, %382 : vector<32x1xf32>
    %cst_175 = arith.constant 9.99999974E-6 : f32
    %384 = vector.broadcast %cst_175 : f32 to vector<32x1xf32>
    %385 = arith.addf %383, %384 : vector<32x1xf32>
    %386 = math.rsqrt %385 : vector<32x1xf32>
    %387 = vector.broadcast %386 : vector<32x1xf32> to vector<32x32xf32>
    %388 = arith.mulf %378, %387 : vector<32x32xf32>
    %389 = vector.broadcast %367 : vector<1x32xf32> to vector<32x32xf32>
    %390 = arith.mulf %388, %389 : vector<32x32xf32>
    %391 = vector.broadcast %368 : vector<1x32xf32> to vector<32x32xf32>
    %392 = arith.addf %390, %391 : vector<32x32xf32>
    %cst_176 = arith.constant dense<0.000000e+00> : vector<32xf32>
    %393 = vector.multi_reduction <add>, %392, %cst_176 [1] : vector<32x32xf32> to vector<32xf32>
    %394 = vector.shape_cast %393 : vector<32xf32> to vector<32x1xf32>
    %cst_177 = arith.constant 3.200000e+01 : f32
    %395 = vector.broadcast %cst_177 : f32 to vector<32x1xf32>
    %396 = arith.divf %394, %395 : vector<32x1xf32>
    %397 = vector.broadcast %396 : vector<32x1xf32> to vector<32x32xf32>
    %398 = arith.subf %392, %397 : vector<32x32xf32>
    %399 = arith.mulf %398, %398 : vector<32x32xf32>
    %cst_178 = arith.constant dense<0.000000e+00> : vector<32xf32>
    %400 = vector.multi_reduction <add>, %399, %cst_178 [1] : vector<32x32xf32> to vector<32xf32>
    %401 = vector.shape_cast %400 : vector<32xf32> to vector<32x1xf32>
    %cst_179 = arith.constant 3.200000e+01 : f32
    %402 = vector.broadcast %cst_179 : f32 to vector<32x1xf32>
    %403 = arith.divf %401, %402 : vector<32x1xf32>
    %cst_180 = arith.constant 9.99999974E-6 : f32
    %404 = vector.broadcast %cst_180 : f32 to vector<32x1xf32>
    %405 = arith.addf %403, %404 : vector<32x1xf32>
    %406 = math.rsqrt %405 : vector<32x1xf32>
    %407 = vector.broadcast %406 : vector<32x1xf32> to vector<32x32xf32>
    %408 = arith.mulf %398, %407 : vector<32x32xf32>
    %409 = vector.broadcast %369 : vector<1x32xf32> to vector<32x32xf32>
    %410 = arith.mulf %408, %409 : vector<32x32xf32>
    %411 = vector.broadcast %370 : vector<1x32xf32> to vector<32x32xf32>
    %412 = arith.addf %410, %411 : vector<32x32xf32>
    %cst_181 = arith.constant dense<0.000000e+00> : vector<32x32xf32>
    %413 = tpu.matmul %412, %372, %cst_181 {dimension_numbers = #tpu.dot_dimension_numbers<[1], [0], [0], [1], [0, 0, 1, 1], [], []>} : vector<32x32xf32>, vector<32x32xf32>, vector<32x32xf32> -> vector<32x32xf32>
    %414 = vector.broadcast %371 : vector<1x32xf32> to vector<32x32xf32>
    %415 = arith.addf %413, %414 : vector<32x32xf32>
    %416 = vector.extract_strided_slice %415 {offsets = [0, 0], sizes = [32, 4], strides = [1, 1]} : vector<32x32xf32> to vector<32x4xf32>
    %417 = vector.shape_cast %416 : vector<32x4xf32> to vector<2x16x4xf32>
    %418 = vector.broadcast %25 : vector<2x1x4xf32> to vector<2x16x4xf32>
    %419 = arith.mulf %417, %418 : vector<2x16x4xf32>
    %420 = vector.broadcast %12 : vector<2x1x4xf32> to vector<2x16x4xf32>
    %421 = arith.addf %419, %420 : vector<2x16x4xf32>
    %c0_182 = arith.constant 0 : index
    %c0_183 = arith.constant 0 : index
    %c0_184 = arith.constant 0 : index
    %422 = vector.load %arg10[%c0_182, %c0_183, %c0_184] : memref<2x16x4xf32, #tpu.memory_space<vmem>>, vector<2x16x4xf32>
    tpu.vector_store %arg10[%c0_182, %c0_183, %c0_184], %421 {strides = array<i32>} : memref<2x16x4xf32, #tpu.memory_space<vmem>>, vector<2x16x4xf32>,
    return
  }
  func.func @transform_0(%arg0: i32) -> (i32, i32, i32) {
    %c0_i32 = arith.constant 0 : i32
    %c0_i32_0 = arith.constant 0 : i32
    %c0_i32_1 = arith.constant 0 : i32
    return %arg0, %c0_i32, %c0_i32_0 : i32, i32, i32
  }
  func.func @transform_1(%arg0: i32) -> (i32, i32, i32) {
    %c0_i32 = arith.constant 0 : i32
    %c0_i32_0 = arith.constant 0 : i32
    %c0_i32_1 = arith.constant 0 : i32
    return %arg0, %c0_i32, %c0_i32_0 : i32, i32, i32
  }
  func.func @transform_2(%arg0: i32) -> (i32, i32, i32) {
    %c0_i32 = arith.constant 0 : i32
    %c0_i32_0 = arith.constant 0 : i32
    %c0_i32_1 = arith.constant 0 : i32
    return %arg0, %c0_i32, %c0_i32_0 : i32, i32, i32
  }
  func.func @transform_3(%arg0: i32) -> (i32, i32) {
    %c0_i32 = arith.constant 0 : i32
    %c0_i32_0 = arith.constant 0 : i32
    %c0_i32_1 = arith.constant 0 : i32
    return %c0_i32, %c0_i32_0 : i32, i32
  }
  func.func @transform_4(%arg0: i32) -> (i32, i32) {
    %c0_i32 = arith.constant 0 : i32
    %c0_i32_0 = arith.constant 0 : i32
    %c0_i32_1 = arith.constant 0 : i32
    return %c0_i32, %c0_i32_0 : i32, i32
  }
  func.func @transform_5(%arg0: i32) -> (i32, i32, i32) {
    %c0_i32 = arith.constant 0 : i32
    %c0_i32_0 = arith.constant 0 : i32
    %c0_i32_1 = arith.constant 0 : i32
    %c0_i32_2 = arith.constant 0 : i32
    return %c0_i32, %c0_i32_0, %c0_i32_1 : i32, i32, i32
  }
  func.func @transform_6(%arg0: i32) -> (i32, i32, i32) {
    %c0_i32 = arith.constant 0 : i32
    %c0_i32_0 = arith.constant 0 : i32
    %c0_i32_1 = arith.constant 0 : i32
    %c0_i32_2 = arith.constant 0 : i32
    return %c0_i32, %c0_i32_0, %c0_i32_1 : i32, i32, i32
  }
  func.func @transform_7(%arg0: i32) -> (i32, i32, i32) {
    %c0_i32 = arith.constant 0 : i32
    %c0_i32_0 = arith.constant 0 : i32
    %c0_i32_1 = arith.constant 0 : i32
    %c0_i32_2 = arith.constant 0 : i32
    return %c0_i32, %c0_i32_0, %c0_i32_1 : i32, i32, i32
  }
  func.func @transform_8(%arg0: i32) -> (i32, i32) {
    %c0_i32 = arith.constant 0 : i32
    %c0_i32_0 = arith.constant 0 : i32
    %c0_i32_1 = arith.constant 0 : i32
    return %c0_i32, %c0_i32_0 : i32, i32
  }
  func.func @transform_9(%arg0: i32) -> (i32, i32, i32) {
    %c0_i32 = arith.constant 0 : i32
    %c0_i32_0 = arith.constant 0 : i32
    %c0_i32_1 = arith.constant 0 : i32
    return %arg0, %c0_i32, %c0_i32_0 : i32, i32, i32
  }
}

</mosaic_0001>

<llo_original>
// kernel: tpu_custom_call.1
$region0: #{tpu_custom_call.1}
  #allocation0 [shape = 'u32[]', space=smem, size = 0x4, offset = 0x4, fixed_abs, tag = 'smem constant byte address 0x4 - core index']
  #allocation1 [shape = 'u32[72,128]{1,0:T(1,128)}', space=vmem, size = 0x9000, scoped, tag = 'internal scratch']
  %s0 = inlined_call_operand.vmem [shape: f32[2,16,4], index: 0, kind: input, shape index: {}]
  %s1 = inlined_call_operand.vmem [shape: f32[2,16,4], index: 1, kind: input, shape index: {}]
  %s2 = inlined_call_operand.vmem [shape: f32[2,16,4], index: 2, kind: input, shape index: {}]
  %s3 = inlined_call_operand.vmem [shape: f32[32,32], index: 3, kind: input, shape index: {}]
  %s4 = inlined_call_operand.vmem [shape: f32[32,32], index: 4, kind: input, shape index: {}]
  %s5 = inlined_call_operand.vmem [shape: f32[2,168,32], index: 5, kind: input, shape index: {}]
  %s6 = inlined_call_operand.vmem [shape: f32[2,40,96], index: 6, kind: input, shape index: {}]
  %s7 = inlined_call_operand.vmem [shape: f32[2,40,128], index: 7, kind: input, shape index: {}]
  %s8 = inlined_call_operand.vmem [shape: f32[40,32], index: 8, kind: input, shape index: {}]
  %s9 = inlined_call_operand.vmem [shape: f32[2,16,4], index: 9, kind: output, shape index: {}]
  %s10 = sld [smem:[#allocation0]]
  $region46: #{tpu_custom_call.1} parent=0
    _
  %s12 = ssub.s32 1, %s10
  %s13 = scalar_select 0, %s12, %s10
  // Predicated region
  $region2: #{tpu_custom_call.1} parent=0 // pred_check
    _
  $region3: #{tpu_custom_call.1} parent=0 // pred_check_branch
    %15 = sbr.rel (0) target = $region5
  $region4: #{tpu_custom_call.1} parent=0 // pred_region
    _
  $region5: #{tpu_custom_call.1} parent=0 // pred_fallthru
    _
  // Predicated region
  $region6: #{tpu_custom_call.1} parent=0 // pred_check
    _
  $region7: #{tpu_custom_call.1} parent=0 // pred_check_branch
    %17 = sbr.rel (0) target = $region9
  $region8: #{tpu_custom_call.1} parent=0 // pred_region
    _
  $region9: #{tpu_custom_call.1} parent=0 // pred_fallthru
    _
  // Predicated region
  $region10: #{tpu_custom_call.1} parent=0 // pred_check
    _
  $region11: #{tpu_custom_call.1} parent=0 // pred_check_branch
    %19 = sbr.rel (0) target = $region13
  $region12: #{tpu_custom_call.1} parent=0 // pred_region
    _
  $region13: #{tpu_custom_call.1} parent=0 // pred_fallthru
    _
  // Predicated region
  $region14: #{tpu_custom_call.1} parent=0 // pred_check
    _
  $region15: #{tpu_custom_call.1} parent=0 // pred_check_branch
    %21 = sbr.rel (0) target = $region17
  $region16: #{tpu_custom_call.1} parent=0 // pred_region
    _
  $region17: #{tpu_custom_call.1} parent=0 // pred_fallthru
    _
  // Predicated region
  $region18: #{tpu_custom_call.1} parent=0 // pred_check
    _
  $region19: #{tpu_custom_call.1} parent=0 // pred_check_branch
    %23 = sbr.rel (0) target = $region21
  $region20: #{tpu_custom_call.1} parent=0 // pred_region
    _
  $region21: #{tpu_custom_call.1} parent=0 // pred_fallthru
    _
  // Predicated region
  $region22: #{tpu_custom_call.1} parent=0 // pred_check
    _
  $region23: #{tpu_custom_call.1} parent=0 // pred_check_branch
    %25 = sbr.rel (0) target = $region25
  $region24: #{tpu_custom_call.1} parent=0 // pred_region
    _
  $region25: #{tpu_custom_call.1} parent=0 // pred_fallthru
    _
  // Predicated region
  $region26: #{tpu_custom_call.1} parent=0 // pred_check
    _
  $region27: #{tpu_custom_call.1} parent=0 // pred_check_branch
    %27 = sbr.rel (0) target = $region29
  $region28: #{tpu_custom_call.1} parent=0 // pred_region
    _
  $region29: #{tpu_custom_call.1} parent=0 // pred_fallthru
    _
  // Predicated region
  $region30: #{tpu_custom_call.1} parent=0 // pred_check
    _
  $region31: #{tpu_custom_call.1} parent=0 // pred_check_branch
    %29 = sbr.rel (0) target = $region33
  $region32: #{tpu_custom_call.1} parent=0 // pred_region
    _
  $region33: #{tpu_custom_call.1} parent=0 // pred_fallthru
    _
  // Predicated region
  $region34: #{tpu_custom_call.1} parent=0 // pred_check
    _
  $region35: #{tpu_custom_call.1} parent=0 // pred_check_branch
    %31 = sbr.rel (0) target = $region37
  $region36: #{tpu_custom_call.1} parent=0 // pred_region
    _
  $region37: #{tpu_custom_call.1} parent=0 // pred_fallthru
    _
  %v32 = vld [vmem:[%s0] sm:$0xff]
  %v33 = vld [vmem:[%s0 + $0x8] sm:$0xff]
  %v34 = vld [vmem:[%s0 + $0x10] sm:$0xff]
  %v35 = vld [vmem:[%s0 + $0x18] sm:$0xff]
  %v36 = vld [vmem:[%s2] sm:$0xff]
  %v37 = vld [vmem:[%s2 + $0x8] sm:$0xff]
  %v38 = vld [vmem:[%s2 + $0x10] sm:$0xff]
  %v39 = vld [vmem:[%s2 + $0x18] sm:$0xff]
  %vm40 = vcmp.eq.f32.partialorder %v36, 1.0
  %vm41 = vcmp.eq.f32.partialorder %v37, 1.0
  %vm42 = vcmp.eq.f32.partialorder %v38, 1.0
  %vm43 = vcmp.eq.f32.partialorder %v39, 1.0
  %v44 = vsel %vm40, 1, 0
  %v45 = vsel %vm41, 1, 0
  %v46 = vsel %vm42, 1, 0
  %v47 = vsel %vm43, 1, 0
  %v48 = vcvt.s32.f32 %v44
  %v49 = vcvt.s32.f32 %v45
  %v50 = vcvt.s32.f32 %v46
  %v51 = vcvt.s32.f32 %v47
  %vm52 = vcmask 31744
  %v53 = vsel %vm52, %v48, 0.0
  %v54 = vsel %vm52, %v49, 0.0
  %v55 = vadd.f32 %v53, %v54
  %v56 = vrot.slane %v55, 4
  %v57 = vadd.f32 %v55, %v56
  %v58 = vrot.slane %v57, 2
  %v59 = vadd.f32 %v57, %v58
  %v60 = vrot.slane %v59, 1
  %v61 = vadd.f32 %v59, %v60
  %v62 = vsel %vm52, %v50, 0.0
  %v63 = vsel %vm52, %v51, 0.0
  %v64 = vadd.f32 %v62, %v63
  %v65 = vrot.slane %v64, 4
  %v66 = vadd.f32 %v64, %v65
  %v67 = vrot.slane %v66, 2
  %v68 = vadd.f32 %v66, %v67
  %v69 = vrot.slane %v68, 1
  %v70 = vadd.f32 %v68, %v69
  %v71 = vmax.f32 %v61, 1.0
  %v72 = vmax.f32 %v70, 1.0
  %v73 = vsel %vm52, %v32, 0.0
  %v74 = vsel %vm52, %v33, 0.0
  %v75 = vadd.f32 %v73, %v74
  %v76 = vrot.slane %v75, 4
  %v77 = vadd.f32 %v75, %v76
  %v78 = vrot.slane %v77, 2
  %v79 = vadd.f32 %v77, %v78
  %v80 = vrot.slane %v79, 1
  %v81 = vadd.f32 %v79, %v80
  %v82 = vsel %vm52, %v34, 0.0
  %v83 = vsel %vm52, %v35, 0.0
  %v84 = vadd.f32 %v82, %v83
  %v85 = vrot.slane %v84, 4
  %v86 = vadd.f32 %v84, %v85
  %v87 = vrot.slane %v86, 2
  %v88 = vadd.f32 %v86, %v87
  %v89 = vrot.slane %v88, 1
  %v90 = vadd.f32 %v88, %v89
  %v91 = vrcp.pop %v71
  %v92 = vmul.f32 %v71, %v91
  %v93 = vsub.f32 1.0, %v92
  %v94 = vmul.f32 %v91, %v93
  %v95 = vadd.f32 %v91, %v94
  %vm96 = vweird.f32 %v71
  %vm97 = vweird.f32 %v91
  %vm98 = vmor %vm96, %vm97
  %v99 = vsel %vm98, %v91, %v95
  %v100 = vand.u32 2147483647, %v71
  %vm101 = vcmp.eq.f32.partialorder %v100, 8.507059e+37
  %v102 = vand.u32 %v71, 2147483648
  %v103 = vor.u32 1.1754944e-38, %v102
  %v104 = vsel %vm101, %v103, %v99
  %v105 = vmul.f32 %v81, %v104
  %v106 = vrcp.pop %v72
  %v107 = vmul.f32 %v72, %v106
  %v108 = vsub.f32 1.0, %v107
  %v109 = vmul.f32 %v106, %v108
  %v110 = vadd.f32 %v106, %v109
  %vm111 = vweird.f32 %v72
  %vm112 = vweird.f32 %v106
  %vm113 = vmor %vm111, %vm112
  %v114 = vsel %vm113, %v106, %v110
  %v115 = vand.u32 2147483647, %v72
  %vm116 = vcmp.eq.f32.partialorder %v115, 8.507059e+37
  %v117 = vand.u32 %v72, 2147483648
  %v118 = vor.u32 1.1754944e-38, %v117
  %v119 = vsel %vm116, %v118, %v114
  %v120 = vmul.f32 %v90, %v119
  %vm121 = vcmp.eq.f32.partialorder %v36, 0.0
  %vm122 = vcmp.eq.f32.partialorder %v37, 0.0
  %vm123 = vcmp.eq.f32.partialorder %v38, 0.0
  %vm124 = vcmp.eq.f32.partialorder %v39, 0.0
  %v125 = vsub.f32 %v32, %v105
  %v126 = vsub.f32 %v33, %v105
  %v127 = vsub.f32 %v34, %v120
  %v128 = vsub.f32 %v35, %v120
  %v129 = vsel %vm121, 0.0, %v125
  %v130 = vsel %vm122, 0.0, %v126
  %v131 = vsel %vm123, 0.0, %v127
  %v132 = vsel %vm124, 0.0, %v128
  %v133 = vmul.f32 %v129, %v129
  %v134 = vmul.f32 %v130, %v130
  %v135 = vmul.f32 %v131, %v131
  %v136 = vmul.f32 %v132, %v132
  %v137 = vsel %vm52, %v133, 0.0
  %v138 = vsel %vm52, %v134, 0.0
  %v139 = vadd.f32 %v137, %v138
  %v140 = vrot.slane %v139, 4
  %v141 = vadd.f32 %v139, %v140
  %v142 = vrot.slane %v141, 2
  %v143 = vadd.f32 %v141, %v142
  %v144 = vrot.slane %v143, 1
  %v145 = vadd.f32 %v143, %v144
  %v146 = vsel %vm52, %v135, 0.0
  %v147 = vsel %vm52, %v136, 0.0
  %v148 = vadd.f32 %v146, %v147
  %v149 = vrot.slane %v148, 4
  %v150 = vadd.f32 %v148, %v149
  %v151 = vrot.slane %v150, 2
  %v152 = vadd.f32 %v150, %v151
  %v153 = vrot.slane %v152, 1
  %v154 = vadd.f32 %v152, %v153
  %v155 = vmul.f32 %v145, %v104
  %v156 = vmul.f32 %v154, %v119
  %v157 = vmax.f32 %v155, 1e-05
  %v158 = vmax.f32 %v156, 1e-05
  %v159 = vrsqrt.pop %v157
  %v160 = vmul.f32 %v159, %v157
  %v161 = vmul.f32 %v160, %v159
  %v162 = vmul.f32 0.5, %v161
  %v163 = vsub.f32 1.5, %v162
  %v164 = vmul.f32 %v159, %v163
  %v165 = vmul.f32 %v157, %v164
  %vm166 = vcmp.eq.f32.partialorder %v157, inf
  %v167 = vsel %vm166, %v157, %v165
  %vm168 = vcmp.eq.f32.partialorder %v157, 0.0
  %v169 = vand.u32 %v157, 2147483648
  %v170 = vsel %vm168, %v169, %v167
  %v171 = vrsqrt.pop %v158
  %v172 = vmul.f32 %v171, %v158
  %v173 = vmul.f32 %v172, %v171
  %v174 = vmul.f32 0.5, %v173
  %v175 = vsub.f32 1.5, %v174
  %v176 = vmul.f32 %v171, %v175
  %v177 = vmul.f32 %v158, %v176
  %vm178 = vcmp.eq.f32.partialorder %v158, inf
  %v179 = vsel %vm178, %v158, %v177
  %vm180 = vcmp.eq.f32.partialorder %v158, 0.0
  %v181 = vand.u32 %v158, 2147483648
  %v182 = vsel %vm180, %v181, %v179
  %v183 = vrcp.pop %v170
  %v184 = vmul.f32 %v170, %v183
  %v185 = vsub.f32 1.0, %v184
  %v186 = vmul.f32 %v183, %v185
  %v187 = vadd.f32 %v183, %v186
  %vm188 = vweird.f32 %v170
  %vm189 = vweird.f32 %v183
  %vm190 = vmor %vm188, %vm189
  %v191 = vsel %vm190, %v183, %v187
  %v192 = vand.u32 2147483647, %v170
  %vm193 = vcmp.eq.f32.partialorder %v192, 8.507059e+37
  %v194 = vand.u32 %v170, 2147483648
  %v195 = vor.u32 1.1754944e-38, %v194
  %v196 = vsel %vm193, %v195, %v191
  %v197 = vmul.f32 %v129, %v196
  %v198 = vmul.f32 %v130, %v196
  %v199 = vrcp.pop %v182
  %v200 = vmul.f32 %v182, %v199
  %v201 = vsub.f32 1.0, %v200
  %v202 = vmul.f32 %v199, %v201
  %v203 = vadd.f32 %v199, %v202
  %vm204 = vweird.f32 %v182
  %vm205 = vweird.f32 %v199
  %vm206 = vmor %vm204, %vm205
  %v207 = vsel %vm206, %v199, %v203
  %v208 = vand.u32 2147483647, %v182
  %vm209 = vcmp.eq.f32.partialorder %v208, 8.507059e+37
  %v210 = vand.u32 %v182, 2147483648
  %v211 = vor.u32 1.1754944e-38, %v210
  %v212 = vsel %vm209, %v211, %v207
  %v213 = vmul.f32 %v131, %v212
  %v214 = vmul.f32 %v132, %v212
  %v217 = vrot.slane %v198, 7
  %v218 = vrot.slane %v214, 7
  %vm223 = vcmask 1040384
  %v224 = vrot.slane %v197, 7
  %v225 = vsel %vm223, %v224, %v217
  %v226 = vrot.slane %v213, 7
  %v227 = vsel %vm223, %v226, %v218
  %v232 = vsel %vm223, %v217, %v224
  %v233 = vsel %vm223, %v218, %v226
  %vm234 = vcmask 1046528
  %v235 = vrot.slane %v197, 1
  %v236 = vrot.slane %v198, 1
  %v237 = vsel %vm234, %v235, %v236
  %v238 = vrot.slane %v213, 1
  %v239 = vrot.slane %v214, 1
  %v240 = vsel %vm234, %v238, %v239
  %v245 = vsel %vm234, %v236, %v235
  %v246 = vsel %vm234, %v239, %v238
  %247 = vrot.lane.b32.xlu0 %v197, 4
  %v248 = vpop.permute.xlu0 %247
  %249 = vrot.lane.b32.xlu0 %v198, 4
  %v250 = vpop.permute.xlu0 %249
  %251 = vrot.lane.b32.xlu0 %v213, 4
  %v252 = vpop.permute.xlu0 %251
  %253 = vrot.lane.b32.xlu0 %v214, 4
  %v254 = vpop.permute.xlu0 %253
  %261 = vrot.lane.b32.xlu0 %v237, 8
  %v262 = vpop.permute.xlu0 %261
  %263 = vrot.lane.b32.xlu0 %v245, 8
  %v264 = vpop.permute.xlu0 %263
  %265 = vrot.lane.b32.xlu0 %v240, 8
  %v266 = vpop.permute.xlu0 %265
  %267 = vrot.lane.b32.xlu0 %v246, 8
  %v268 = vpop.permute.xlu0 %267
  %v273 = vsel %vm52, %v232, %v248
  %v274 = vsel %vm52, %v225, %v250
  %v275 = vsel %vm52, %v233, %v252
  %v276 = vsel %vm52, %v227, %v254
  %vm277 = vcmask 64512
  %v278 = vsel %vm277, %v273, %v262
  %v279 = vsel %vm277, %v274, %v264
  %v280 = vsel %vm277, %v275, %v266
  %v281 = vsel %vm277, %v276, %v268
  %v282 = vld [vmem:[%s4] sm:$0xff]
  %v283 = vld [vmem:[%s4 + $0x8] sm:$0xf]
  %v284 = vld [vmem:[%s4 + $0xc] sm:$0xf]
  %v285 = vld [vmem:[%s4 + $0x10] sm:$0xff]
  %v286 = vld [vmem:[%s4 + $0x18] sm:$0xff]
  %v287 = vld [vmem:[%s1] sm:$0xff]
  %v288 = vld [vmem:[%s1 + $0x8] sm:$0xff]
  %v289 = vld [vmem:[%s1 + $0x10] sm:$0xff]
  %v290 = vld [vmem:[%s1 + $0x18] sm:$0xff]
  %v292 = vsel %vm52, %v287, 0
  %v295 = vsel %vm52, %v288, 0
  %v298 = vsel %vm52, %v289, 0
  %v301 = vsel %vm52, %v290, 0
  %vm303 = vcmask 1043456
  %v305 = vsel %vm303, %v284, 0
  %307 = vmatpush.msra.mxu0 0.0
  %308 = vmatpush.msra.mxu0 0.0
  %309 = vmatpush.msra.mxu0 0.0
  %310 = vmatpush.msra.mxu0 0.0
  %311 = vmatpush.msra.mxu0 0.0
  %312 = vmatpush.msra.mxu0 0.0
  %313 = vmatpush.msra.mxu0 0.0
  %314 = vmatpush.msra.mxu0 0.0
  %315 = vmatpush.msra.mxu0 0.0
  %316 = vmatpush.msra.mxu0 0.0
  %317 = vmatpush.msra.mxu0 0.0
  %318 = vmatpush.msra.mxu0 0.0
  %319 = vmatpush.msra.mxu0 0.0
  %320 = vmatpush.msra.mxu0 0.0
  %321 = vmatpush.msra.mxu0 0.0
  %322 = vmatpush.msra.mxu0 %v305
  %323 = vmatmul.f32.gmra.mxu0 %v292
  %v324 = vpop.f32.mrf.mxu0
  %v325 = vadd.f32 0.0, %v324
  %326 = vmatmul.f32.gmra.mxu0 %v295
  %v327 = vpop.f32.mrf.mxu0
  %v328 = vadd.f32 0.0, %v327
  %329 = vmatmul.f32.gmra.mxu0 %v298
  %v330 = vpop.f32.mrf.mxu0
  %v331 = vadd.f32 0.0, %v330
  %332 = vmatmul.f32.gmra.mxu0 %v301
  %v333 = vpop.f32.mrf.mxu0
  %v334 = vadd.f32 0.0, %v333
  %335 = vdwg.mxu0
  %vm336 = vcmask 97280
  %v338 = vsel %vm336, %v278, 0
  %v341 = vsel %vm336, %v279, 0
  %v344 = vsel %vm336, %v280, 0
  %v347 = vsel %vm336, %v281, 0
  %v350 = vsel %vm303, %v283, 0
  %352 = vmatpush.msra.mxu0 0.0
  %353 = vmatpush.msra.mxu0 0.0
  %354 = vmatpush.msra.mxu0 0.0
  %355 = vmatpush.msra.mxu0 0.0
  %356 = vmatpush.msra.mxu0 0.0
  %357 = vmatpush.msra.mxu0 0.0
  %358 = vmatpush.msra.mxu0 0.0
  %359 = vmatpush.msra.mxu0 0.0
  %360 = vmatpush.msra.mxu0 0.0
  %361 = vmatpush.msra.mxu0 0.0
  %362 = vmatpush.msra.mxu0 0.0
  %363 = vmatpush.msra.mxu0 0.0
  %364 = vmatpush.msra.mxu0 0.0
  %365 = vmatpush.msra.mxu0 0.0
  %366 = vmatpush.msra.mxu0 %v350
  %367 = vmatpush.msra.mxu0 %v282
  %368 = vmatmul.f32.gmra.mxu0 %v338
  %v369 = vpop.f32.mrf.mxu0
  %v370 = vadd.f32 %v325, %v369
  %371 = vmatmul.f32.gmra.mxu0 %v341
  %v372 = vpop.f32.mrf.mxu0
  %v373 = vadd.f32 %v328, %v372
  %374 = vmatmul.f32.gmra.mxu0 %v344
  %v375 = vpop.f32.mrf.mxu0
  %v376 = vadd.f32 %v331, %v375
  %377 = vmatmul.f32.gmra.mxu0 %v347
  %v378 = vpop.f32.mrf.mxu0
  %v379 = vadd.f32 %v334, %v378
  %380 = vdwg.mxu0
  %v381 = vadd.f32 %v370, %v285
  %v382 = vadd.f32 %v373, %v286
  %v383 = vadd.f32 %v376, %v285
  %v384 = vadd.f32 %v379, %v286
  %v385 = vld [vmem:[%s3] sm:$0xff]
  %v386 = vld [vmem:[%s3 + $0x8] sm:$0xff]
  %v387 = vld [vmem:[%s3 + $0x10] sm:$0xff]
  %v388 = vld [vmem:[%s3 + $0x18] sm:$0xff]
  %v389 = vld [vmem:[%s5] sm:$0xff]
  %v390 = vld [vmem:[%s5 + $0x8] sm:$0xff]
  %v391 = vld [vmem:[%s5 + $0x10] sm:$0xff]
  %v392 = vld [vmem:[%s5 + $0x18] sm:$0xff]
  %v393 = vld [vmem:[%s5 + $0x20] sm:$0xff]
  %v394 = vld [vmem:[%s5 + $0x28] sm:$0xff]
  %v395 = vld [vmem:[%s5 + $0x30] sm:$0xff]
  %v396 = vld [vmem:[%s5 + $0x38] sm:$0xff]
  %v397 = vld [vmem:[%s5 + $0x40] sm:$0xff]
  %v398 = vld [vmem:[%s5 + $0x48] sm:$0xff]
  %v399 = vld [vmem:[%s5 + $0x50] sm:$0xff]
  %v400 = vld [vmem:[%s5 + $0x58] sm:$0xff]
  %v401 = vld [vmem:[%s5 + $0x60] sm:$0xff]
  %v402 = vld [vmem:[%s5 + $0x68] sm:$0xff]
  %v403 = vld [vmem:[%s5 + $0x70] sm:$0xff]
  %v404 = vld [vmem:[%s5 + $0x78] sm:$0xff]
  %v405 = vld [vmem:[%s5 + $0x80] sm:$0xff]
  %v406 = vld [vmem:[%s5 + $0x88] sm:$0xff]
  %v407 = vld [vmem:[%s5 + $0x90] sm:$0xff]
  %v408 = vld [vmem:[%s5 + $0x98] sm:$0xff]
  %v409 = vld [vmem:[%s5 + $0xa0] sm:$0x1]
  %v410 = vld [vmem:[%s5 + $0xa1] sm:$0x1]
  %v411 = vld [vmem:[%s5 + $0xa2] sm:$0x1]
  %v412 = vld [vmem:[%s5 + $0xa3] sm:$0x1]
  %v413 = vld [vmem:[%s5 + $0xa4] sm:$0x1]
  %v414 = vld [vmem:[%s5 + $0xa5] sm:$0x1]
  %v415 = vld [vmem:[%s6] sm:$0xff]
  %v416 = vld [vmem:[%s6 + $0x8] sm:$0xff]
  %v417 = vld [vmem:[%s6 + $0x10] sm:$0xff]
  %v418 = vld [vmem:[%s6 + $0x18] sm:$0xff]
  %v419 = vld [vmem:[%s6 + $0x20] sm:$0x1]
  %v420 = vld [vmem:[%s7] sm:$0xff]
  %v421 = vld [vmem:[%s7 + $0x8] sm:$0xff]
  %v422 = vld [vmem:[%s7 + $0x10] sm:$0xff]
  %v423 = vld [vmem:[%s7 + $0x18] sm:$0xff]
  %v424 = vld [vmem:[%s7 + $0x20] sm:$0x1]
  %vm425 = vcmask 261120
  %v426 = vsel %vm425, %v381, 0.0
  %427 = vadd.xlane.f32.xlu0 %v426
  %v428 = vpop.xlane.xlu0 %427
  %v429 = vsel %vm425, %v382, 0.0
  %430 = vadd.xlane.f32.xlu0 %v429
  %v431 = vpop.xlane.xlu0 %430
  %v432 = vsel %vm425, %v383, 0.0
  %433 = vadd.xlane.f32.xlu0 %v432
  %v434 = vpop.xlane.xlu0 %433
  %v435 = vsel %vm425, %v384, 0.0
  %436 = vadd.xlane.f32.xlu0 %v435
  %v437 = vpop.xlane.xlu0 %436
  %v438 = vrcp.pop 32.0
  %v439 = vmul.f32 32.0, %v438
  %v440 = vsub.f32 1.0, %v439
  %v441 = vmul.f32 %v438, %v440
  %v442 = vadd.f32 %v438, %v441
  %vm443 = vweird.f32 %v438
  %v444 = vsel %vm443, %v438, %v442
  %v445 = vmul.f32 %v428, %v444
  %v446 = vmul.f32 %v431, %v444
  %v447 = vmul.f32 %v434, %v444
  %v448 = vmul.f32 %v437, %v444
  %v449 = vsub.f32 %v381, %v445
  %v450 = vsub.f32 %v382, %v446
  %v451 = vsub.f32 %v383, %v447
  %v452 = vsub.f32 %v384, %v448
  %v453 = vmul.f32 %v449, %v449
  %v454 = vmul.f32 %v450, %v450
  %v455 = vmul.f32 %v451, %v451
  %v456 = vmul.f32 %v452, %v452
  %v457 = vsel %vm425, %v453, 0.0
  %458 = vadd.xlane.f32.xlu0 %v457
  %v459 = vpop.xlane.xlu0 %458
  %v460 = vsel %vm425, %v454, 0.0
  %461 = vadd.xlane.f32.xlu0 %v460
  %v462 = vpop.xlane.xlu0 %461
  %v463 = vsel %vm425, %v455, 0.0
  %464 = vadd.xlane.f32.xlu0 %v463
  %v465 = vpop.xlane.xlu0 %464
  %v466 = vsel %vm425, %v456, 0.0
  %467 = vadd.xlane.f32.xlu0 %v466
  %v468 = vpop.xlane.xlu0 %467
  %v469 = vmul.f32 %v459, %v444
  %v470 = vmul.f32 %v462, %v444
  %v471 = vmul.f32 %v465, %v444
  %v472 = vmul.f32 %v468, %v444
  %v473 = vadd.f32 %v469, 1e-05
  %v474 = vadd.f32 %v470, 1e-05
  %v475 = vadd.f32 %v471, 1e-05
  %v476 = vadd.f32 %v472, 1e-05
  %v477 = vrsqrt.pop %v473
  %v478 = vmul.f32 %v477, %v473
  %v479 = vmul.f32 %v478, %v477
  %v480 = vmul.f32 0.5, %v479
  %v481 = vsub.f32 1.5, %v480
  %v482 = vmul.f32 %v477, %v481
  %vm483 = vweird.f32 %v473
  %vm484 = vweird.f32 %v477
  %vm485 = vmor %vm483, %vm484
  %v486 = vsel %vm485, %v477, %v482
  %v487 = vrsqrt.pop %v474
  %v488 = vmul.f32 %v487, %v474
  %v489 = vmul.f32 %v488, %v487
  %v490 = vmul.f32 0.5, %v489
  %v491 = vsub.f32 1.5, %v490
  %v492 = vmul.f32 %v487, %v491
  %vm493 = vweird.f32 %v474
  %vm494 = vweird.f32 %v487
  %vm495 = vmor %vm493, %vm494
  %v496 = vsel %vm495, %v487, %v492
  %v497 = vrsqrt.pop %v475
  %v498 = vmul.f32 %v497, %v475
  %v499 = vmul.f32 %v498, %v497
  %v500 = vmul.f32 0.5, %v499
  %v501 = vsub.f32 1.5, %v500
  %v502 = vmul.f32 %v497, %v501
  %vm503 = vweird.f32 %v475
  %vm504 = vweird.f32 %v497
  %vm505 = vmor %vm503, %vm504
  %v506 = vsel %vm505, %v497, %v502
  %v507 = vrsqrt.pop %v476
  %v508 = vmul.f32 %v507, %v476
  %v509 = vmul.f32 %v508, %v507
  %v510 = vmul.f32 0.5, %v509
  %v511 = vsub.f32 1.5, %v510
  %v512 = vmul.f32 %v507, %v511
  %vm513 = vweird.f32 %v476
  %vm514 = vweird.f32 %v507
  %vm515 = vmor %vm513, %vm514
  %v516 = vsel %vm515, %v507, %v512
  %v517 = vmul.f32 %v449, %v486
  %v518 = vmul.f32 %v450, %v496
  %v519 = vmul.f32 %v451, %v506
  %v520 = vmul.f32 %v452, %v516
  %v521 = vperm.slane %v409, 0
  %v522 = vmul.f32 %v517, %v521
  %v523 = vmul.f32 %v518, %v521
  %v524 = vmul.f32 %v519, %v521
  %v525 = vmul.f32 %v520, %v521
  %v526 = vperm.slane %v410, 0
  %v527 = vadd.f32 %v522, %v526
  %v528 = vadd.f32 %v523, %v526
  %v529 = vadd.f32 %v524, %v526
  %v530 = vadd.f32 %v525, %v526
  %v531 = vperm.slane %v419, 0
  %v533 = vsel %vm425, %v527, 0
  %v536 = vsel %vm425, %v528, 0
  %v539 = vsel %vm425, %v529, 0
  %v542 = vsel %vm425, %v530, 0
  %544 = vmatpush.msra.mxu0 0.0
  %545 = vmatpush.msra.mxu0 0.0
  %546 = vmatpush.msra.mxu0 0.0
  %547 = vmatpush.msra.mxu0 0.0
  %548 = vmatpush.msra.mxu0 0.0
  %549 = vmatpush.msra.mxu0 0.0
  %550 = vmatpush.msra.mxu0 0.0
  %551 = vmatpush.msra.mxu0 0.0
  %552 = vmatpush.msra.mxu0 0.0
  %553 = vmatpush.msra.mxu0 0.0
  %554 = vmatpush.msra.mxu0 0.0
  %555 = vmatpush.msra.mxu0 0.0
  %556 = vmatpush.msra.mxu0 %v418
  %557 = vmatpush.msra.mxu0 %v417
  %558 = vmatpush.msra.mxu0 %v416
  %559 = vmatpush.msra.mxu0 %v415
  %560 = vmatmul.f32.gmra.mxu0 %v533
  %v561 = vpop.f32.mrf.mxu0
  %v562 = vadd.f32 %v531, %v561
  %563 = vmatmul.f32.gmra.mxu0 %v536
  %v564 = vpop.f32.mrf.mxu0
  %v565 = vadd.f32 %v531, %v564
  %566 = vmatmul.f32.gmra.mxu0 %v539
  %v567 = vpop.f32.mrf.mxu0
  %v568 = vadd.f32 %v531, %v567
  %569 = vmatmul.f32.gmra.mxu0 %v542
  %v570 = vpop.f32.mrf.mxu0
  %v571 = vadd.f32 %v531, %v570
  %572 = vdwg.mxu0
  %577 = vrot.lane.b32.xlu0 %v562, 96
  %v578 = vpop.permute.xlu0 %577
  %579 = vrot.lane.b32.xlu0 %v565, 96
  %v580 = vpop.permute.xlu0 %579
  %581 = vrot.lane.b32.xlu0 %v568, 96
  %v582 = vpop.permute.xlu0 %581
  %583 = vrot.lane.b32.xlu0 %v571, 96
  %v584 = vpop.permute.xlu0 %583
  %v585 = vsel %vm277, %v562, 0
  %v587 = vsel %vm277, %v565, 0
  %v589 = vsel %vm277, %v568, 0
  %v591 = vsel %vm277, %v571, 0
  %v593 = vsel %vm277, %v578, 0
  %v595 = vsel %vm277, %v580, 0
  %v597 = vsel %vm277, %v582, 0
  %v599 = vsel %vm277, %v584, 0
  %601 = vmatpush.xpose.msra.mxu0 0.0
  %602 = vmatpush.xpose.msra.mxu0 0.0
  %603 = vmatpush.xpose.msra.mxu0 0.0
  %604 = vmatpush.xpose.msra.mxu0 0.0
  %605 = vmatpush.xpose.msra.mxu0 0.0
  %606 = vmatpush.xpose.msra.mxu0 0.0
  %607 = vmatpush.xpose.msra.mxu0 0.0
  %608 = vmatpush.xpose.msra.mxu0 0.0
  %609 = vmatpush.xpose.msra.mxu0 0.0
  %610 = vmatpush.xpose.msra.mxu0 0.0
  %611 = vmatpush.xpose.msra.mxu0 0.0
  %612 = vmatpush.xpose.msra.mxu0 0.0
  %613 = vmatpush.xpose.msra.mxu0 %v599
  %614 = vmatpush.xpose.msra.mxu0 %v597
  %615 = vmatpush.xpose.msra.mxu0 %v595
  %616 = vmatpush.xpose.msra.mxu0 %v593
  %617 = vmatmul.f32.gmra.mxu0 %v585
  %v618 = vpop.f32.mrf.mxu0
  %v619 = vadd.f32 0.0, %v618
  %620 = vmatmul.f32.gmra.mxu0 %v587
  %v621 = vpop.f32.mrf.mxu0
  %v622 = vadd.f32 0.0, %v621
  %623 = vmatmul.f32.gmra.mxu0 %v589
  %v624 = vpop.f32.mrf.mxu0
  %v625 = vadd.f32 0.0, %v624
  %626 = vmatmul.f32.gmra.mxu0 %v591
  %v627 = vpop.f32.mrf.mxu0
  %v628 = vadd.f32 0.0, %v627
  %629 = vdwg.mxu0
  %v630 = vmul.f32 %v619, 0.35355338
  %v631 = vmul.f32 %v622, 0.35355338
  %v632 = vmul.f32 %v625, 0.35355338
  %v633 = vmul.f32 %v628, 0.35355338
  %v634 = vadd.f32 %v630, %v385
  %v635 = vadd.f32 %v631, %v386
  %v636 = vadd.f32 %v632, %v387
  %v637 = vadd.f32 %v633, %v388
  %v638 = vsel %vm425, %v634, -inf
  %639 = vmax.xlane.f32.xlu0 %v638
  %v640 = vpop.xlane.xlu0 %639
  %v641 = vsel %vm425, %v635, -inf
  %642 = vmax.xlane.f32.xlu0 %v641
  %v643 = vpop.xlane.xlu0 %642
  %v644 = vsel %vm425, %v636, -inf
  %645 = vmax.xlane.f32.xlu0 %v644
  %v646 = vpop.xlane.xlu0 %645
  %v647 = vsel %vm425, %v637, -inf
  %648 = vmax.xlane.f32.xlu0 %v647
  %v649 = vpop.xlane.xlu0 %648
  %v650 = vsub.f32 %v634, %v640
  %v651 = vsub.f32 %v635, %v643
  %v652 = vsub.f32 %v636, %v646
  %v653 = vsub.f32 %v637, %v649
  %v654 = vmul.f32 %v650, 1.442695
  %v655 = vpow.pop %v654
  %v656 = vmul.f32 %v651, 1.442695
  %v657 = vpow.pop %v656
  %v658 = vmul.f32 %v652, 1.442695
  %v659 = vpow.pop %v658
  %v660 = vmul.f32 %v653, 1.442695
  %v661 = vpow.pop %v660
  %v662 = vsel %vm425, %v655, 0.0
  %663 = vadd.xlane.f32.xlu0 %v662
  %v664 = vpop.xlane.xlu0 %663
  %v665 = vsel %vm425, %v657, 0.0
  %666 = vadd.xlane.f32.xlu0 %v665
  %v667 = vpop.xlane.xlu0 %666
  %v668 = vsel %vm425, %v659, 0.0
  %669 = vadd.xlane.f32.xlu0 %v668
  %v670 = vpop.xlane.xlu0 %669
  %v671 = vsel %vm425, %v661, 0.0
  %672 = vadd.xlane.f32.xlu0 %v671
  %v673 = vpop.xlane.xlu0 %672
  %v674 = vrcp.pop %v664
  %v675 = vmul.f32 %v664, %v674
  %v676 = vsub.f32 1.0, %v675
  %v677 = vmul.f32 %v674, %v676
  %v678 = vadd.f32 %v674, %v677
  %vm679 = vweird.f32 %v664
  %vm680 = vweird.f32 %v674
  %vm681 = vmor %vm679, %vm680
  %v682 = vsel %vm681, %v674, %v678
  %v683 = vand.u32 2147483647, %v664
  %vm684 = vcmp.eq.f32.partialorder %v683, 8.507059e+37
  %v685 = vand.u32 %v664, 2147483648
  %v686 = vor.u32 1.1754944e-38, %v685
  %v687 = vsel %vm684, %v686, %v682
  %v688 = vmul.f32 %v655, %v687
  %v689 = vrcp.pop %v667
  %v690 = vmul.f32 %v667, %v689
  %v691 = vsub.f32 1.0, %v690
  %v692 = vmul.f32 %v689, %v691
  %v693 = vadd.f32 %v689, %v692
  %vm694 = vweird.f32 %v667
  %vm695 = vweird.f32 %v689
  %vm696 = vmor %vm694, %vm695
  %v697 = vsel %vm696, %v689, %v693
  %v698 = vand.u32 2147483647, %v667
  %vm699 = vcmp.eq.f32.partialorder %v698, 8.507059e+37
  %v700 = vand.u32 %v667, 2147483648
  %v701 = vor.u32 1.1754944e-38, %v700
  %v702 = vsel %vm699, %v701, %v697
  %v703 = vmul.f32 %v657, %v702
  %v704 = vrcp.pop %v670
  %v705 = vmul.f32 %v670, %v704
  %v706 = vsub.f32 1.0, %v705
  %v707 = vmul.f32 %v704, %v706
  %v708 = vadd.f32 %v704, %v707
  %vm709 = vweird.f32 %v670
  %vm710 = vweird.f32 %v704
  %vm711 = vmor %vm709, %vm710
  %v712 = vsel %vm711, %v704, %v708
  %v713 = vand.u32 2147483647, %v670
  %vm714 = vcmp.eq.f32.partialorder %v713, 8.507059e+37
  %v715 = vand.u32 %v670, 2147483648
  %v716 = vor.u32 1.1754944e-38, %v715
  %v717 = vsel %vm714, %v716, %v712
  %v718 = vmul.f32 %v659, %v717
  %v719 = vrcp.pop %v673
  %v720 = vmul.f32 %v673, %v719
  %v721 = vsub.f32 1.0, %v720
  %v722 = vmul.f32 %v719, %v721
  %v723 = vadd.f32 %v719, %v722
  %vm724 = vweird.f32 %v673
  %vm725 = vweird.f32 %v719
  %vm726 = vmor %vm724, %vm725
  %v727 = vsel %vm726, %v719, %v723
  %v728 = vand.u32 2147483647, %v673
  %vm729 = vcmp.eq.f32.partialorder %v728, 8.507059e+37
  %v730 = vand.u32 %v673, 2147483648
  %v731 = vor.u32 1.1754944e-38, %v730
  %v732 = vsel %vm729, %v731, %v727
  %v733 = vmul.f32 %v661, %v732
  %734 = vrot.lane.b32.xlu0 %v562, 64
  %v735 = vpop.permute.xlu0 %734
  %736 = vrot.lane.b32.xlu0 %v565, 64
  %v737 = vpop.permute.xlu0 %736
  %738 = vrot.lane.b32.xlu0 %v568, 64
  %v739 = vpop.permute.xlu0 %738
  %740 = vrot.lane.b32.xlu0 %v571, 64
  %v741 = vpop.permute.xlu0 %740
  %v747 = vsel %vm425, %v688, 0
  %v750 = vsel %vm425, %v703, 0
  %v753 = vsel %vm425, %v718, 0
  %v756 = vsel %vm425, %v733, 0
  %758 = vmatpush.msra.mxu0 0.0
  %759 = vmatpush.msra.mxu0 0.0
  %760 = vmatpush.msra.mxu0 0.0
  %761 = vmatpush.msra.mxu0 0.0
  %762 = vmatpush.msra.mxu0 0.0
  %763 = vmatpush.msra.mxu0 0.0
  %764 = vmatpush.msra.mxu0 0.0
  %765 = vmatpush.msra.mxu0 0.0
  %766 = vmatpush.msra.mxu0 0.0
  %767 = vmatpush.msra.mxu0 0.0
  %768 = vmatpush.msra.mxu0 0.0
  %769 = vmatpush.msra.mxu0 0.0
  %770 = vmatpush.msra.mxu0 %v741
  %771 = vmatpush.msra.mxu0 %v739
  %772 = vmatpush.msra.mxu0 %v737
  %773 = vmatpush.msra.mxu0 %v735
  %774 = vmatmul.f32.gmra.mxu0 %v747
  %v775 = vpop.f32.mrf.mxu0
  %v776 = vadd.f32 0.0, %v775
  %777 = vmatmul.f32.gmra.mxu0 %v750
  %v778 = vpop.f32.mrf.mxu0
  %v779 = vadd.f32 0.0, %v778
  %780 = vmatmul.f32.gmra.mxu0 %v753
  %v781 = vpop.f32.mrf.mxu0
  %v782 = vadd.f32 0.0, %v781
  %783 = vmatmul.f32.gmra.mxu0 %v756
  %v784 = vpop.f32.mrf.mxu0
  %v785 = vadd.f32 0.0, %v784
  %786 = vdwg.mxu0
  %787 = vrot.lane.b32.xlu0 %v562, 120
  %v788 = vpop.permute.xlu0 %787
  %789 = vrot.lane.b32.xlu0 %v565, 120
  %v790 = vpop.permute.xlu0 %789
  %791 = vrot.lane.b32.xlu0 %v568, 120
  %v792 = vpop.permute.xlu0 %791
  %793 = vrot.lane.b32.xlu0 %v571, 120
  %v794 = vpop.permute.xlu0 %793
  %795 = vrot.lane.b32.xlu0 %v562, 88
  %v796 = vpop.permute.xlu0 %795
  %797 = vrot.lane.b32.xlu0 %v565, 88
  %v798 = vpop.permute.xlu0 %797
  %799 = vrot.lane.b32.xlu0 %v568, 88
  %v800 = vpop.permute.xlu0 %799
  %801 = vrot.lane.b32.xlu0 %v571, 88
  %v802 = vpop.permute.xlu0 %801
  %v803 = vsel %vm277, %v788, 0
  %v805 = vsel %vm277, %v790, 0
  %v807 = vsel %vm277, %v792, 0
  %v809 = vsel %vm277, %v794, 0
  %v811 = vsel %vm277, %v796, 0
  %v813 = vsel %vm277, %v798, 0
  %v815 = vsel %vm277, %v800, 0
  %v817 = vsel %vm277, %v802, 0
  %819 = vmatpush.xpose.msra.mxu0 0.0
  %820 = vmatpush.xpose.msra.mxu0 0.0
  %821 = vmatpush.xpose.msra.mxu0 0.0
  %822 = vmatpush.xpose.msra.mxu0 0.0
  %823 = vmatpush.xpose.msra.mxu0 0.0
  %824 = vmatpush.xpose.msra.mxu0 0.0
  %825 = vmatpush.xpose.msra.mxu0 0.0
  %826 = vmatpush.xpose.msra.mxu0 0.0
  %827 = vmatpush.xpose.msra.mxu0 0.0
  %828 = vmatpush.xpose.msra.mxu0 0.0
  %829 = vmatpush.xpose.msra.mxu0 0.0
  %830 = vmatpush.xpose.msra.mxu0 0.0
  %831 = vmatpush.xpose.msra.mxu0 %v817
  %832 = vmatpush.xpose.msra.mxu0 %v815
  %833 = vmatpush.xpose.msra.mxu0 %v813
  %834 = vmatpush.xpose.msra.mxu0 %v811
  %835 = vmatmul.f32.gmra.mxu0 %v803
  %v836 = vpop.f32.mrf.mxu0
  %v837 = vadd.f32 0.0, %v836
  %838 = vmatmul.f32.gmra.mxu0 %v805
  %v839 = vpop.f32.mrf.mxu0
  %v840 = vadd.f32 0.0, %v839
  %841 = vmatmul.f32.gmra.mxu0 %v807
  %v842 = vpop.f32.mrf.mxu0
  %v843 = vadd.f32 0.0, %v842
  %844 = vmatmul.f32.gmra.mxu0 %v809
  %v845 = vpop.f32.mrf.mxu0
  %v846 = vadd.f32 0.0, %v845
  %847 = vdwg.mxu0
  %v848 = vmul.f32 %v837, 0.35355338
  %v849 = vmul.f32 %v840, 0.35355338
  %v850 = vmul.f32 %v843, 0.35355338
  %v851 = vmul.f32 %v846, 0.35355338
  %v852 = vadd.f32 %v848, %v385
  %v853 = vadd.f32 %v849, %v386
  %v854 = vadd.f32 %v850, %v387
  %v855 = vadd.f32 %v851, %v388
  %v856 = vsel %vm425, %v852, -inf
  %857 = vmax.xlane.f32.xlu0 %v856
  %v858 = vpop.xlane.xlu0 %857
  %v859 = vsel %vm425, %v853, -inf
  %860 = vmax.xlane.f32.xlu0 %v859
  %v861 = vpop.xlane.xlu0 %860
  %v862 = vsel %vm425, %v854, -inf
  %863 = vmax.xlane.f32.xlu0 %v862
  %v864 = vpop.xlane.xlu0 %863
  %v865 = vsel %vm425, %v855, -inf
  %866 = vmax.xlane.f32.xlu0 %v865
  %v867 = vpop.xlane.xlu0 %866
  %v868 = vsub.f32 %v852, %v858
  %v869 = vsub.f32 %v853, %v861
  %v870 = vsub.f32 %v854, %v864
  %v871 = vsub.f32 %v855, %v867
  %v872 = vmul.f32 %v868, 1.442695
  %v873 = vpow.pop %v872
  %v874 = vmul.f32 %v869, 1.442695
  %v875 = vpow.pop %v874
  %v876 = vmul.f32 %v870, 1.442695
  %v877 = vpow.pop %v876
  %v878 = vmul.f32 %v871, 1.442695
  %v879 = vpow.pop %v878
  %v880 = vsel %vm425, %v873, 0.0
  %881 = vadd.xlane.f32.xlu0 %v880
  %v882 = vpop.xlane.xlu0 %881
  %v883 = vsel %vm425, %v875, 0.0
  %884 = vadd.xlane.f32.xlu0 %v883
  %v885 = vpop.xlane.xlu0 %884
  %v886 = vsel %vm425, %v877, 0.0
  %887 = vadd.xlane.f32.xlu0 %v886
  %v888 = vpop.xlane.xlu0 %887
  %v889 = vsel %vm425, %v879, 0.0
  %890 = vadd.xlane.f32.xlu0 %v889
  %v891 = vpop.xlane.xlu0 %890
  %v892 = vrcp.pop %v882
  %v893 = vmul.f32 %v882, %v892
  %v894 = vsub.f32 1.0, %v893
  %v895 = vmul.f32 %v892, %v894
  %v896 = vadd.f32 %v892, %v895
  %vm897 = vweird.f32 %v882
  %vm898 = vweird.f32 %v892
  %vm899 = vmor %vm897, %vm898
  %v900 = vsel %vm899, %v892, %v896
  %v901 = vand.u32 2147483647, %v882
  %vm902 = vcmp.eq.f32.partialorder %v901, 8.507059e+37
  %v903 = vand.u32 %v882, 2147483648
  %v904 = vor.u32 1.1754944e-38, %v903
  %v905 = vsel %vm902, %v904, %v900
  %v906 = vmul.f32 %v873, %v905
  %v907 = vrcp.pop %v885
  %v908 = vmul.f32 %v885, %v907
  %v909 = vsub.f32 1.0, %v908
  %v910 = vmul.f32 %v907, %v909
  %v911 = vadd.f32 %v907, %v910
  %vm912 = vweird.f32 %v885
  %vm913 = vweird.f32 %v907
  %vm914 = vmor %vm912, %vm913
  %v915 = vsel %vm914, %v907, %v911
  %v916 = vand.u32 2147483647, %v885
  %vm917 = vcmp.eq.f32.partialorder %v916, 8.507059e+37
  %v918 = vand.u32 %v885, 2147483648
  %v919 = vor.u32 1.1754944e-38, %v918
  %v920 = vsel %vm917, %v919, %v915
  %v921 = vmul.f32 %v875, %v920
  %v922 = vrcp.pop %v888
  %v923 = vmul.f32 %v888, %v922
  %v924 = vsub.f32 1.0, %v923
  %v925 = vmul.f32 %v922, %v924
  %v926 = vadd.f32 %v922, %v925
  %vm927 = vweird.f32 %v888
  %vm928 = vweird.f32 %v922
  %vm929 = vmor %vm927, %vm928
  %v930 = vsel %vm929, %v922, %v926
  %v931 = vand.u32 2147483647, %v888
  %vm932 = vcmp.eq.f32.partialorder %v931, 8.507059e+37
  %v933 = vand.u32 %v888, 2147483648
  %v934 = vor.u32 1.1754944e-38, %v933
  %v935 = vsel %vm932, %v934, %v930
  %v936 = vmul.f32 %v877, %v935
  %v937 = vrcp.pop %v891
  %v938 = vmul.f32 %v891, %v937
  %v939 = vsub.f32 1.0, %v938
  %v940 = vmul.f32 %v937, %v939
  %v941 = vadd.f32 %v937, %v940
  %vm942 = vweird.f32 %v891
  %vm943 = vweird.f32 %v937
  %vm944 = vmor %vm942, %vm943
  %v945 = vsel %vm944, %v937, %v941
  %v946 = vand.u32 2147483647, %v891
  %vm947 = vcmp.eq.f32.partialorder %v946, 8.507059e+37
  %v948 = vand.u32 %v891, 2147483648
  %v949 = vor.u32 1.1754944e-38, %v948
  %v950 = vsel %vm947, %v949, %v945
  %v951 = vmul.f32 %v879, %v950
  %952 = vrot.lane.b32.xlu0 %v562, 56
  %v953 = vpop.permute.xlu0 %952
  %954 = vrot.lane.b32.xlu0 %v565, 56
  %v955 = vpop.permute.xlu0 %954
  %956 = vrot.lane.b32.xlu0 %v568, 56
  %v957 = vpop.permute.xlu0 %956
  %958 = vrot.lane.b32.xlu0 %v571, 56
  %v959 = vpop.permute.xlu0 %958
  %v965 = vsel %vm425, %v906, 0
  %v968 = vsel %vm425, %v921, 0
  %v971 = vsel %vm425, %v936, 0
  %v974 = vsel %vm425, %v951, 0
  %976 = vmatpush.msra.mxu0 0.0
  %977 = vmatpush.msra.mxu0 0.0
  %978 = vmatpush.msra.mxu0 0.0
  %979 = vmatpush.msra.mxu0 0.0
  %980 = vmatpush.msra.mxu0 0.0
  %981 = vmatpush.msra.mxu0 0.0
  %982 = vmatpush.msra.mxu0 0.0
  %983 = vmatpush.msra.mxu0 0.0
  %984 = vmatpush.msra.mxu0 0.0
  %985 = vmatpush.msra.mxu0 0.0
  %986 = vmatpush.msra.mxu0 0.0
  %987 = vmatpush.msra.mxu0 0.0
  %988 = vmatpush.msra.mxu0 %v959
  %989 = vmatpush.msra.mxu0 %v957
  %990 = vmatpush.msra.mxu0 %v955
  %991 = vmatpush.msra.mxu0 %v953
  %992 = vmatmul.f32.gmra.mxu0 %v965
  %v993 = vpop.f32.mrf.mxu0
  %v994 = vadd.f32 0.0, %v993
  %995 = vmatmul.f32.gmra.mxu0 %v968
  %v996 = vpop.f32.mrf.mxu0
  %v997 = vadd.f32 0.0, %v996
  %998 = vmatmul.f32.gmra.mxu0 %v971
  %v999 = vpop.f32.mrf.mxu0
  %v1000 = vadd.f32 0.0, %v999
  %1001 = vmatmul.f32.gmra.mxu0 %v974
  %v1002 = vpop.f32.mrf.mxu0
  %v1003 = vadd.f32 0.0, %v1002
  %1004 = vdwg.mxu0
  %1005 = vrot.lane.b32.xlu0 %v562, 112
  %v1006 = vpop.permute.xlu0 %1005
  %1007 = vrot.lane.b32.xlu0 %v565, 112
  %v1008 = vpop.permute.xlu0 %1007
  %1009 = vrot.lane.b32.xlu0 %v568, 112
  %v1010 = vpop.permute.xlu0 %1009
  %1011 = vrot.lane.b32.xlu0 %v571, 112
  %v1012 = vpop.permute.xlu0 %1011
  %1013 = vrot.lane.b32.xlu0 %v562, 80
  %v1014 = vpop.permute.xlu0 %1013
  %1015 = vrot.lane.b32.xlu0 %v565, 80
  %v1016 = vpop.permute.xlu0 %1015
  %1017 = vrot.lane.b32.xlu0 %v568, 80
  %v1018 = vpop.permute.xlu0 %1017
  %1019 = vrot.lane.b32.xlu0 %v571, 80
  %v1020 = vpop.permute.xlu0 %1019
  %v1021 = vsel %vm277, %v1006, 0
  %v1023 = vsel %vm277, %v1008, 0
  %v1025 = vsel %vm277, %v1010, 0
  %v1027 = vsel %vm277, %v1012, 0
  %v1029 = vsel %vm277, %v1014, 0
  %v1031 = vsel %vm277, %v1016, 0
  %v1033 = vsel %vm277, %v1018, 0
  %v1035 = vsel %vm277, %v1020, 0
  %1037 = vmatpush.xpose.msra.mxu0 0.0
  %1038 = vmatpush.xpose.msra.mxu0 0.0
  %1039 = vmatpush.xpose.msra.mxu0 0.0
  %1040 = vmatpush.xpose.msra.mxu0 0.0
  %1041 = vmatpush.xpose.msra.mxu0 0.0
  %1042 = vmatpush.xpose.msra.mxu0 0.0
  %1043 = vmatpush.xpose.msra.mxu0 0.0
  %1044 = vmatpush.xpose.msra.mxu0 0.0
  %1045 = vmatpush.xpose.msra.mxu0 0.0
  %1046 = vmatpush.xpose.msra.mxu0 0.0
  %1047 = vmatpush.xpose.msra.mxu0 0.0
  %1048 = vmatpush.xpose.msra.mxu0 0.0
  %1049 = vmatpush.xpose.msra.mxu0 %v1035
  %1050 = vmatpush.xpose.msra.mxu0 %v1033
  %1051 = vmatpush.xpose.msra.mxu0 %v1031
  %1052 = vmatpush.xpose.msra.mxu0 %v1029
  %1053 = vmatmul.f32.gmra.mxu0 %v1021
  %v1054 = vpop.f32.mrf.mxu0
  %v1055 = vadd.f32 0.0, %v1054
  %1056 = vmatmul.f32.gmra.mxu0 %v1023
  %v1057 = vpop.f32.mrf.mxu0
  %v1058 = vadd.f32 0.0, %v1057
  %1059 = vmatmul.f32.gmra.mxu0 %v1025
  %v1060 = vpop.f32.mrf.mxu0
  %v1061 = vadd.f32 0.0, %v1060
  %1062 = vmatmul.f32.gmra.mxu0 %v1027
  %v1063 = vpop.f32.mrf.mxu0
  %v1064 = vadd.f32 0.0, %v1063
  %1065 = vdwg.mxu0
  %v1066 = vmul.f32 %v1055, 0.35355338
  %v1067 = vmul.f32 %v1058, 0.35355338
  %v1068 = vmul.f32 %v1061, 0.35355338
  %v1069 = vmul.f32 %v1064, 0.35355338
  %v1070 = vadd.f32 %v1066, %v385
  %v1071 = vadd.f32 %v1067, %v386
  %v1072 = vadd.f32 %v1068, %v387
  %v1073 = vadd.f32 %v1069, %v388
  %v1074 = vsel %vm425, %v1070, -inf
  %1075 = vmax.xlane.f32.xlu0 %v1074
  %v1076 = vpop.xlane.xlu0 %1075
  %v1077 = vsel %vm425, %v1071, -inf
  %1078 = vmax.xlane.f32.xlu0 %v1077
  %v1079 = vpop.xlane.xlu0 %1078
  %v1080 = vsel %vm425, %v1072, -inf
  %1081 = vmax.xlane.f32.xlu0 %v1080
  %v1082 = vpop.xlane.xlu0 %1081
  %v1083 = vsel %vm425, %v1073, -inf
  %1084 = vmax.xlane.f32.xlu0 %v1083
  %v1085 = vpop.xlane.xlu0 %1084
  %v1086 = vsub.f32 %v1070, %v1076
  %v1087 = vsub.f32 %v1071, %v1079
  %v1088 = vsub.f32 %v1072, %v1082
  %v1089 = vsub.f32 %v1073, %v1085
  %v1090 = vmul.f32 %v1086, 1.442695
  %v1091 = vpow.pop %v1090
  %v1092 = vmul.f32 %v1087, 1.442695
  %v1093 = vpow.pop %v1092
  %v1094 = vmul.f32 %v1088, 1.442695
  %v1095 = vpow.pop %v1094
  %v1096 = vmul.f32 %v1089, 1.442695
  %v1097 = vpow.pop %v1096
  %v1098 = vsel %vm425, %v1091, 0.0
  %1099 = vadd.xlane.f32.xlu0 %v1098
  %v1100 = vpop.xlane.xlu0 %1099
  %v1101 = vsel %vm425, %v1093, 0.0
  %1102 = vadd.xlane.f32.xlu0 %v1101
  %v1103 = vpop.xlane.xlu0 %1102
  %v1104 = vsel %vm425, %v1095, 0.0
  %1105 = vadd.xlane.f32.xlu0 %v1104
  %v1106 = vpop.xlane.xlu0 %1105
  %v1107 = vsel %vm425, %v1097, 0.0
  %1108 = vadd.xlane.f32.xlu0 %v1107
  %v1109 = vpop.xlane.xlu0 %1108
  %v1110 = vrcp.pop %v1100
  %v1111 = vmul.f32 %v1100, %v1110
  %v1112 = vsub.f32 1.0, %v1111
  %v1113 = vmul.f32 %v1110, %v1112
  %v1114 = vadd.f32 %v1110, %v1113
  %vm1115 = vweird.f32 %v1100
  %vm1116 = vweird.f32 %v1110
  %vm1117 = vmor %vm1115, %vm1116
  %v1118 = vsel %vm1117, %v1110, %v1114
  %v1119 = vand.u32 2147483647, %v1100
  %vm1120 = vcmp.eq.f32.partialorder %v1119, 8.507059e+37
  %v1121 = vand.u32 %v1100, 2147483648
  %v1122 = vor.u32 1.1754944e-38, %v1121
  %v1123 = vsel %vm1120, %v1122, %v1118
  %v1124 = vmul.f32 %v1091, %v1123
  %v1125 = vrcp.pop %v1103
  %v1126 = vmul.f32 %v1103, %v1125
  %v1127 = vsub.f32 1.0, %v1126
  %v1128 = vmul.f32 %v1125, %v1127
  %v1129 = vadd.f32 %v1125, %v1128
  %vm1130 = vweird.f32 %v1103
  %vm1131 = vweird.f32 %v1125
  %vm1132 = vmor %vm1130, %vm1131
  %v1133 = vsel %vm1132, %v1125, %v1129
  %v1134 = vand.u32 2147483647, %v1103
  %vm1135 = vcmp.eq.f32.partialorder %v1134, 8.507059e+37
  %v1136 = vand.u32 %v1103, 2147483648
  %v1137 = vor.u32 1.1754944e-38, %v1136
  %v1138 = vsel %vm1135, %v1137, %v1133
  %v1139 = vmul.f32 %v1093, %v1138
  %v1140 = vrcp.pop %v1106
  %v1141 = vmul.f32 %v1106, %v1140
  %v1142 = vsub.f32 1.0, %v1141
  %v1143 = vmul.f32 %v1140, %v1142
  %v1144 = vadd.f32 %v1140, %v1143
  %vm1145 = vweird.f32 %v1106
  %vm1146 = vweird.f32 %v1140
  %vm1147 = vmor %vm1145, %vm1146
  %v1148 = vsel %vm1147, %v1140, %v1144
  %v1149 = vand.u32 2147483647, %v1106
  %vm1150 = vcmp.eq.f32.partialorder %v1149, 8.507059e+37
  %v1151 = vand.u32 %v1106, 2147483648
  %v1152 = vor.u32 1.1754944e-38, %v1151
  %v1153 = vsel %vm1150, %v1152, %v1148
  %v1154 = vmul.f32 %v1095, %v1153
  %v1155 = vrcp.pop %v1109
  %v1156 = vmul.f32 %v1109, %v1155
  %v1157 = vsub.f32 1.0, %v1156
  %v1158 = vmul.f32 %v1155, %v1157
  %v1159 = vadd.f32 %v1155, %v1158
  %vm1160 = vweird.f32 %v1109
  %vm1161 = vweird.f32 %v1155
  %vm1162 = vmor %vm1160, %vm1161
  %v1163 = vsel %vm1162, %v1155, %v1159
  %v1164 = vand.u32 2147483647, %v1109
  %vm1165 = vcmp.eq.f32.partialorder %v1164, 8.507059e+37
  %v1166 = vand.u32 %v1109, 2147483648
  %v1167 = vor.u32 1.1754944e-38, %v1166
  %v1168 = vsel %vm1165, %v1167, %v1163
  %v1169 = vmul.f32 %v1097, %v1168
  %1170 = vrot.lane.b32.xlu0 %v562, 48
  %v1171 = vpop.permute.xlu0 %1170
  %1172 = vrot.lane.b32.xlu0 %v565, 48
  %v1173 = vpop.permute.xlu0 %1172
  %1174 = vrot.lane.b32.xlu0 %v568, 48
  %v1175 = vpop.permute.xlu0 %1174
  %1176 = vrot.lane.b32.xlu0 %v571, 48
  %v1177 = vpop.permute.xlu0 %1176
  %v1183 = vsel %vm425, %v1124, 0
  %v1186 = vsel %vm425, %v1139, 0
  %v1189 = vsel %vm425, %v1154, 0
  %v1192 = vsel %vm425, %v1169, 0
  %1194 = vmatpush.msra.mxu0 0.0
  %1195 = vmatpush.msra.mxu0 0.0
  %1196 = vmatpush.msra.mxu0 0.0
  %1197 = vmatpush.msra.mxu0 0.0
  %1198 = vmatpush.msra.mxu0 0.0
  %1199 = vmatpush.msra.mxu0 0.0
  %1200 = vmatpush.msra.mxu0 0.0
  %1201 = vmatpush.msra.mxu0 0.0
  %1202 = vmatpush.msra.mxu0 0.0
  %1203 = vmatpush.msra.mxu0 0.0
  %1204 = vmatpush.msra.mxu0 0.0
  %1205 = vmatpush.msra.mxu0 0.0
  %1206 = vmatpush.msra.mxu0 %v1177
  %1207 = vmatpush.msra.mxu0 %v1175
  %1208 = vmatpush.msra.mxu0 %v1173
  %1209 = vmatpush.msra.mxu0 %v1171
  %1210 = vmatmul.f32.gmra.mxu0 %v1183
  %v1211 = vpop.f32.mrf.mxu0
  %v1212 = vadd.f32 0.0, %v1211
  %1213 = vmatmul.f32.gmra.mxu0 %v1186
  %v1214 = vpop.f32.mrf.mxu0
  %v1215 = vadd.f32 0.0, %v1214
  %1216 = vmatmul.f32.gmra.mxu0 %v1189
  %v1217 = vpop.f32.mrf.mxu0
  %v1218 = vadd.f32 0.0, %v1217
  %1219 = vmatmul.f32.gmra.mxu0 %v1192
  %v1220 = vpop.f32.mrf.mxu0
  %v1221 = vadd.f32 0.0, %v1220
  %1222 = vdwg.mxu0
  %1223 = vrot.lane.b32.xlu0 %v562, 104
  %v1224 = vpop.permute.xlu0 %1223
  %1225 = vrot.lane.b32.xlu0 %v565, 104
  %v1226 = vpop.permute.xlu0 %1225
  %1227 = vrot.lane.b32.xlu0 %v568, 104
  %v1228 = vpop.permute.xlu0 %1227
  %1229 = vrot.lane.b32.xlu0 %v571, 104
  %v1230 = vpop.permute.xlu0 %1229
  %1231 = vrot.lane.b32.xlu0 %v562, 72
  %v1232 = vpop.permute.xlu0 %1231
  %1233 = vrot.lane.b32.xlu0 %v565, 72
  %v1234 = vpop.permute.xlu0 %1233
  %1235 = vrot.lane.b32.xlu0 %v568, 72
  %v1236 = vpop.permute.xlu0 %1235
  %1237 = vrot.lane.b32.xlu0 %v571, 72
  %v1238 = vpop.permute.xlu0 %1237
  %v1239 = vsel %vm277, %v1224, 0
  %v1241 = vsel %vm277, %v1226, 0
  %v1243 = vsel %vm277, %v1228, 0
  %v1245 = vsel %vm277, %v1230, 0
  %v1247 = vsel %vm277, %v1232, 0
  %v1249 = vsel %vm277, %v1234, 0
  %v1251 = vsel %vm277, %v1236, 0
  %v1253 = vsel %vm277, %v1238, 0
  %1255 = vmatpush.xpose.msra.mxu0 0.0
  %1256 = vmatpush.xpose.msra.mxu0 0.0
  %1257 = vmatpush.xpose.msra.mxu0 0.0
  %1258 = vmatpush.xpose.msra.mxu0 0.0
  %1259 = vmatpush.xpose.msra.mxu0 0.0
  %1260 = vmatpush.xpose.msra.mxu0 0.0
  %1261 = vmatpush.xpose.msra.mxu0 0.0
  %1262 = vmatpush.xpose.msra.mxu0 0.0
  %1263 = vmatpush.xpose.msra.mxu0 0.0
  %1264 = vmatpush.xpose.msra.mxu0 0.0
  %1265 = vmatpush.xpose.msra.mxu0 0.0
  %1266 = vmatpush.xpose.msra.mxu0 0.0
  %1267 = vmatpush.xpose.msra.mxu0 %v1253
  %1268 = vmatpush.xpose.msra.mxu0 %v1251
  %1269 = vmatpush.xpose.msra.mxu0 %v1249
  %1270 = vmatpush.xpose.msra.mxu0 %v1247
  %1271 = vmatmul.f32.gmra.mxu0 %v1239
  %v1272 = vpop.f32.mrf.mxu0
  %v1273 = vadd.f32 0.0, %v1272
  %1274 = vmatmul.f32.gmra.mxu0 %v1241
  %v1275 = vpop.f32.mrf.mxu0
  %v1276 = vadd.f32 0.0, %v1275
  %1277 = vmatmul.f32.gmra.mxu0 %v1243
  %v1278 = vpop.f32.mrf.mxu0
  %v1279 = vadd.f32 0.0, %v1278
  %1280 = vmatmul.f32.gmra.mxu0 %v1245
  %v1281 = vpop.f32.mrf.mxu0
  %v1282 = vadd.f32 0.0, %v1281
  %1283 = vdwg.mxu0
  %v1284 = vmul.f32 %v1273, 0.35355338
  %v1285 = vmul.f32 %v1276, 0.35355338
  %v1286 = vmul.f32 %v1279, 0.35355338
  %v1287 = vmul.f32 %v1282, 0.35355338
  %v1288 = vadd.f32 %v1284, %v385
  %v1289 = vadd.f32 %v1285, %v386
  %v1290 = vadd.f32 %v1286, %v387
  %v1291 = vadd.f32 %v1287, %v388
  %v1292 = vsel %vm425, %v1288, -inf
  %1293 = vmax.xlane.f32.xlu0 %v1292
  %v1294 = vpop.xlane.xlu0 %1293
  %v1295 = vsel %vm425, %v1289, -inf
  %1296 = vmax.xlane.f32.xlu0 %v1295
  %v1297 = vpop.xlane.xlu0 %1296
  %v1298 = vsel %vm425, %v1290, -inf
  %1299 = vmax.xlane.f32.xlu0 %v1298
  %v1300 = vpop.xlane.xlu0 %1299
  %v1301 = vsel %vm425, %v1291, -inf
  %1302 = vmax.xlane.f32.xlu0 %v1301
  %v1303 = vpop.xlane.xlu0 %1302
  %v1304 = vsub.f32 %v1288, %v1294
  %v1305 = vsub.f32 %v1289, %v1297
  %v1306 = vsub.f32 %v1290, %v1300
  %v1307 = vsub.f32 %v1291, %v1303
  %v1308 = vmul.f32 %v1304, 1.442695
  %v1309 = vpow.pop %v1308
  %v1310 = vmul.f32 %v1305, 1.442695
  %v1311 = vpow.pop %v1310
  %v1312 = vmul.f32 %v1306, 1.442695
  %v1313 = vpow.pop %v1312
  %v1314 = vmul.f32 %v1307, 1.442695
  %v1315 = vpow.pop %v1314
  %v1316 = vsel %vm425, %v1309, 0.0
  %1317 = vadd.xlane.f32.xlu0 %v1316
  %v1318 = vpop.xlane.xlu0 %1317
  %v1319 = vsel %vm425, %v1311, 0.0
  %1320 = vadd.xlane.f32.xlu0 %v1319
  %v1321 = vpop.xlane.xlu0 %1320
  %v1322 = vsel %vm425, %v1313, 0.0
  %1323 = vadd.xlane.f32.xlu0 %v1322
  %v1324 = vpop.xlane.xlu0 %1323
  %v1325 = vsel %vm425, %v1315, 0.0
  %1326 = vadd.xlane.f32.xlu0 %v1325
  %v1327 = vpop.xlane.xlu0 %1326
  %v1328 = vrcp.pop %v1318
  %v1329 = vmul.f32 %v1318, %v1328
  %v1330 = vsub.f32 1.0, %v1329
  %v1331 = vmul.f32 %v1328, %v1330
  %v1332 = vadd.f32 %v1328, %v1331
  %vm1333 = vweird.f32 %v1318
  %vm1334 = vweird.f32 %v1328
  %vm1335 = vmor %vm1333, %vm1334
  %v1336 = vsel %vm1335, %v1328, %v1332
  %v1337 = vand.u32 2147483647, %v1318
  %vm1338 = vcmp.eq.f32.partialorder %v1337, 8.507059e+37
  %v1339 = vand.u32 %v1318, 2147483648
  %v1340 = vor.u32 1.1754944e-38, %v1339
  %v1341 = vsel %vm1338, %v1340, %v1336
  %v1342 = vmul.f32 %v1309, %v1341
  %v1343 = vrcp.pop %v1321
  %v1344 = vmul.f32 %v1321, %v1343
  %v1345 = vsub.f32 1.0, %v1344
  %v1346 = vmul.f32 %v1343, %v1345
  %v1347 = vadd.f32 %v1343, %v1346
  %vm1348 = vweird.f32 %v1321
  %vm1349 = vweird.f32 %v1343
  %vm1350 = vmor %vm1348, %vm1349
  %v1351 = vsel %vm1350, %v1343, %v1347
  %v1352 = vand.u32 2147483647, %v1321
  %vm1353 = vcmp.eq.f32.partialorder %v1352, 8.507059e+37
  %v1354 = vand.u32 %v1321, 2147483648
  %v1355 = vor.u32 1.1754944e-38, %v1354
  %v1356 = vsel %vm1353, %v1355, %v1351
  %v1357 = vmul.f32 %v1311, %v1356
  %v1358 = vrcp.pop %v1324
  %v1359 = vmul.f32 %v1324, %v1358
  %v1360 = vsub.f32 1.0, %v1359
  %v1361 = vmul.f32 %v1358, %v1360
  %v1362 = vadd.f32 %v1358, %v1361
  %vm1363 = vweird.f32 %v1324
  %vm1364 = vweird.f32 %v1358
  %vm1365 = vmor %vm1363, %vm1364
  %v1366 = vsel %vm1365, %v1358, %v1362
  %v1367 = vand.u32 2147483647, %v1324
  %vm1368 = vcmp.eq.f32.partialorder %v1367, 8.507059e+37
  %v1369 = vand.u32 %v1324, 2147483648
  %v1370 = vor.u32 1.1754944e-38, %v1369
  %v1371 = vsel %vm1368, %v1370, %v1366
  %v1372 = vmul.f32 %v1313, %v1371
  %v1373 = vrcp.pop %v1327
  %v1374 = vmul.f32 %v1327, %v1373
  %v1375 = vsub.f32 1.0, %v1374
  %v1376 = vmul.f32 %v1373, %v1375
  %v1377 = vadd.f32 %v1373, %v1376
  %vm1378 = vweird.f32 %v1327
  %vm1379 = vweird.f32 %v1373
  %vm1380 = vmor %vm1378, %vm1379
  %v1381 = vsel %vm1380, %v1373, %v1377
  %v1382 = vand.u32 2147483647, %v1327
  %vm1383 = vcmp.eq.f32.partialorder %v1382, 8.507059e+37
  %v1384 = vand.u32 %v1327, 2147483648
  %v1385 = vor.u32 1.1754944e-38, %v1384
  %v1386 = vsel %vm1383, %v1385, %v1381
  %v1387 = vmul.f32 %v1315, %v1386
  %1388 = vrot.lane.b32.xlu0 %v562, 40
  %v1389 = vpop.permute.xlu0 %1388
  %1390 = vrot.lane.b32.xlu0 %v565, 40
  %v1391 = vpop.permute.xlu0 %1390
  %1392 = vrot.lane.b32.xlu0 %v568, 40
  %v1393 = vpop.permute.xlu0 %1392
  %1394 = vrot.lane.b32.xlu0 %v571, 40
  %v1395 = vpop.permute.xlu0 %1394
  %v1401 = vsel %vm425, %v1342, 0
  %v1404 = vsel %vm425, %v1357, 0
  %v1407 = vsel %vm425, %v1372, 0
  %v1410 = vsel %vm425, %v1387, 0
  %1412 = vmatpush.msra.mxu0 0.0
  %1413 = vmatpush.msra.mxu0 0.0
  %1414 = vmatpush.msra.mxu0 0.0
  %1415 = vmatpush.msra.mxu0 0.0
  %1416 = vmatpush.msra.mxu0 0.0
  %1417 = vmatpush.msra.mxu0 0.0
  %1418 = vmatpush.msra.mxu0 0.0
  %1419 = vmatpush.msra.mxu0 0.0
  %1420 = vmatpush.msra.mxu0 0.0
  %1421 = vmatpush.msra.mxu0 0.0
  %1422 = vmatpush.msra.mxu0 0.0
  %1423 = vmatpush.msra.mxu0 0.0
  %1424 = vmatpush.msra.mxu0 %v1395
  %1425 = vmatpush.msra.mxu0 %v1393
  %1426 = vmatpush.msra.mxu0 %v1391
  %1427 = vmatpush.msra.mxu0 %v1389
  %1428 = vmatmul.f32.gmra.mxu0 %v1401
  %v1429 = vpop.f32.mrf.mxu0
  %v1430 = vadd.f32 0.0, %v1429
  %1431 = vmatmul.f32.gmra.mxu0 %v1404
  %v1432 = vpop.f32.mrf.mxu0
  %v1433 = vadd.f32 0.0, %v1432
  %1434 = vmatmul.f32.gmra.mxu0 %v1407
  %v1435 = vpop.f32.mrf.mxu0
  %v1436 = vadd.f32 0.0, %v1435
  %1437 = vmatmul.f32.gmra.mxu0 %v1410
  %v1438 = vpop.f32.mrf.mxu0
  %v1439 = vadd.f32 0.0, %v1438
  %1440 = vdwg.mxu0
  %1445 = vrot.lane.b32.xlu0 %v994, 8
  %v1446 = vpop.permute.xlu0 %1445
  %1447 = vrot.lane.b32.xlu0 %v997, 8
  %v1448 = vpop.permute.xlu0 %1447
  %1449 = vrot.lane.b32.xlu0 %v1000, 8
  %v1450 = vpop.permute.xlu0 %1449
  %1451 = vrot.lane.b32.xlu0 %v1003, 8
  %v1452 = vpop.permute.xlu0 %1451
  %1461 = vrot.lane.b32.xlu0 %v1212, 16
  %v1462 = vpop.permute.xlu0 %1461
  %1463 = vrot.lane.b32.xlu0 %v1215, 16
  %v1464 = vpop.permute.xlu0 %1463
  %1465 = vrot.lane.b32.xlu0 %v1218, 16
  %v1466 = vpop.permute.xlu0 %1465
  %1467 = vrot.lane.b32.xlu0 %v1221, 16
  %v1468 = vpop.permute.xlu0 %1467
  %1477 = vrot.lane.b32.xlu0 %v1430, 24
  %v1478 = vpop.permute.xlu0 %1477
  %1479 = vrot.lane.b32.xlu0 %v1433, 24
  %v1480 = vpop.permute.xlu0 %1479
  %1481 = vrot.lane.b32.xlu0 %v1436, 24
  %v1482 = vpop.permute.xlu0 %1481
  %1483 = vrot.lane.b32.xlu0 %v1439, 24
  %v1484 = vpop.permute.xlu0 %1483
  %v1489 = vsel %vm277, %v776, %v1446
  %v1490 = vsel %vm277, %v779, %v1448
  %v1491 = vsel %vm277, %v782, %v1450
  %v1492 = vsel %vm277, %v785, %v1452
  %vm1493 = vcmask 130048
  %v1494 = vsel %vm1493, %v1489, %v1462
  %v1495 = vsel %vm1493, %v1490, %v1464
  %v1496 = vsel %vm1493, %v1491, %v1466
  %v1497 = vsel %vm1493, %v1492, %v1468
  %vm1498 = vcmask 195584
  %v1499 = vsel %vm1498, %v1494, %v1478
  %v1500 = vsel %vm1498, %v1495, %v1480
  %v1501 = vsel %vm1498, %v1496, %v1482
  %v1502 = vsel %vm1498, %v1497, %v1484
  %v1504 = vsel %vm425, %v1499, 0
  %v1507 = vsel %vm425, %v1500, 0
  %v1510 = vsel %vm425, %v1501, 0
  %v1513 = vsel %vm425, %v1502, 0
  %1515 = vmatpush.msra.mxu0 0.0
  %1516 = vmatpush.msra.mxu0 0.0
  %1517 = vmatpush.msra.mxu0 0.0
  %1518 = vmatpush.msra.mxu0 0.0
  %1519 = vmatpush.msra.mxu0 0.0
  %1520 = vmatpush.msra.mxu0 0.0
  %1521 = vmatpush.msra.mxu0 0.0
  %1522 = vmatpush.msra.mxu0 0.0
  %1523 = vmatpush.msra.mxu0 0.0
  %1524 = vmatpush.msra.mxu0 0.0
  %1525 = vmatpush.msra.mxu0 0.0
  %1526 = vmatpush.msra.mxu0 0.0
  %1527 = vmatpush.msra.mxu0 %v392
  %1528 = vmatpush.msra.mxu0 %v391
  %1529 = vmatpush.msra.mxu0 %v390
  %1530 = vmatpush.msra.mxu0 %v389
  %1531 = vmatmul.f32.gmra.mxu0 %v1504
  %v1532 = vpop.f32.mrf.mxu0
  %v1533 = vadd.f32 0.0, %v1532
  %1534 = vmatmul.f32.gmra.mxu0 %v1507
  %v1535 = vpop.f32.mrf.mxu0
  %v1536 = vadd.f32 0.0, %v1535
  %1537 = vmatmul.f32.gmra.mxu0 %v1510
  %v1538 = vpop.f32.mrf.mxu0
  %v1539 = vadd.f32 0.0, %v1538
  %1540 = vmatmul.f32.gmra.mxu0 %v1513
  %v1541 = vpop.f32.mrf.mxu0
  %v1542 = vadd.f32 0.0, %v1541
  %1543 = vdwg.mxu0
  %v1544 = vadd.f32 %v381, %v1533
  %v1545 = vadd.f32 %v382, %v1536
  %v1546 = vadd.f32 %v383, %v1539
  %v1547 = vadd.f32 %v384, %v1542
  %v1548 = vperm.slane %v413, 0
  %v1549 = vadd.f32 %v1544, %v1548
  %v1550 = vadd.f32 %v1545, %v1548
  %v1551 = vadd.f32 %v1546, %v1548
  %v1552 = vadd.f32 %v1547, %v1548
  %v1553 = vsel %vm425, %v1549, 0.0
  %1554 = vadd.xlane.f32.xlu0 %v1553
  %v1555 = vpop.xlane.xlu0 %1554
  %v1556 = vsel %vm425, %v1550, 0.0
  %1557 = vadd.xlane.f32.xlu0 %v1556
  %v1558 = vpop.xlane.xlu0 %1557
  %v1559 = vsel %vm425, %v1551, 0.0
  %1560 = vadd.xlane.f32.xlu0 %v1559
  %v1561 = vpop.xlane.xlu0 %1560
  %v1562 = vsel %vm425, %v1552, 0.0
  %1563 = vadd.xlane.f32.xlu0 %v1562
  %v1564 = vpop.xlane.xlu0 %1563
  %v1565 = vmul.f32 %v1555, %v444
  %v1566 = vmul.f32 %v1558, %v444
  %v1567 = vmul.f32 %v1561, %v444
  %v1568 = vmul.f32 %v1564, %v444
  %v1569 = vsub.f32 %v1549, %v1565
  %v1570 = vsub.f32 %v1550, %v1566
  %v1571 = vsub.f32 %v1551, %v1567
  %v1572 = vsub.f32 %v1552, %v1568
  %v1573 = vmul.f32 %v1569, %v1569
  %v1574 = vmul.f32 %v1570, %v1570
  %v1575 = vmul.f32 %v1571, %v1571
  %v1576 = vmul.f32 %v1572, %v1572
  %v1577 = vsel %vm425, %v1573, 0.0
  %1578 = vadd.xlane.f32.xlu0 %v1577
  %v1579 = vpop.xlane.xlu0 %1578
  %v1580 = vsel %vm425, %v1574, 0.0
  %1581 = vadd.xlane.f32.xlu0 %v1580
  %v1582 = vpop.xlane.xlu0 %1581
  %v1583 = vsel %vm425, %v1575, 0.0
  %1584 = vadd.xlane.f32.xlu0 %v1583
  %v1585 = vpop.xlane.xlu0 %1584
  %v1586 = vsel %vm425, %v1576, 0.0
  %1587 = vadd.xlane.f32.xlu0 %v1586
  %v1588 = vpop.xlane.xlu0 %1587
  %v1589 = vmul.f32 %v1579, %v444
  %v1590 = vmul.f32 %v1582, %v444
  %v1591 = vmul.f32 %v1585, %v444
  %v1592 = vmul.f32 %v1588, %v444
  %v1593 = vadd.f32 %v1589, 1e-05
  %v1594 = vadd.f32 %v1590, 1e-05
  %v1595 = vadd.f32 %v1591, 1e-05
  %v1596 = vadd.f32 %v1592, 1e-05
  %v1597 = vrsqrt.pop %v1593
  %v1598 = vmul.f32 %v1597, %v1593
  %v1599 = vmul.f32 %v1598, %v1597
  %v1600 = vmul.f32 0.5, %v1599
  %v1601 = vsub.f32 1.5, %v1600
  %v1602 = vmul.f32 %v1597, %v1601
  %vm1603 = vweird.f32 %v1593
  %vm1604 = vweird.f32 %v1597
  %vm1605 = vmor %vm1603, %vm1604
  %v1606 = vsel %vm1605, %v1597, %v1602
  %v1607 = vrsqrt.pop %v1594
  %v1608 = vmul.f32 %v1607, %v1594
  %v1609 = vmul.f32 %v1608, %v1607
  %v1610 = vmul.f32 0.5, %v1609
  %v1611 = vsub.f32 1.5, %v1610
  %v1612 = vmul.f32 %v1607, %v1611
  %vm1613 = vweird.f32 %v1594
  %vm1614 = vweird.f32 %v1607
  %vm1615 = vmor %vm1613, %vm1614
  %v1616 = vsel %vm1615, %v1607, %v1612
  %v1617 = vrsqrt.pop %v1595
  %v1618 = vmul.f32 %v1617, %v1595
  %v1619 = vmul.f32 %v1618, %v1617
  %v1620 = vmul.f32 0.5, %v1619
  %v1621 = vsub.f32 1.5, %v1620
  %v1622 = vmul.f32 %v1617, %v1621
  %vm1623 = vweird.f32 %v1595
  %vm1624 = vweird.f32 %v1617
  %vm1625 = vmor %vm1623, %vm1624
  %v1626 = vsel %vm1625, %v1617, %v1622
  %v1627 = vrsqrt.pop %v1596
  %v1628 = vmul.f32 %v1627, %v1596
  %v1629 = vmul.f32 %v1628, %v1627
  %v1630 = vmul.f32 0.5, %v1629
  %v1631 = vsub.f32 1.5, %v1630
  %v1632 = vmul.f32 %v1627, %v1631
  %vm1633 = vweird.f32 %v1596
  %vm1634 = vweird.f32 %v1627
  %vm1635 = vmor %vm1633, %vm1634
  %v1636 = vsel %vm1635, %v1627, %v1632
  %v1637 = vmul.f32 %v1569, %v1606
  %v1638 = vmul.f32 %v1570, %v1616
  %v1639 = vmul.f32 %v1571, %v1626
  %v1640 = vmul.f32 %v1572, %v1636
  %v1641 = vperm.slane %v411, 0
  %v1642 = vmul.f32 %v1637, %v1641
  %v1643 = vmul.f32 %v1638, %v1641
  %v1644 = vmul.f32 %v1639, %v1641
  %v1645 = vmul.f32 %v1640, %v1641
  %v1646 = vperm.slane %v412, 0
  %v1647 = vadd.f32 %v1642, %v1646
  %v1648 = vadd.f32 %v1643, %v1646
  %v1649 = vadd.f32 %v1644, %v1646
  %v1650 = vadd.f32 %v1645, %v1646
  %v1651 = vperm.slane %v424, 0
  %v1653 = vsel %vm425, %v1647, 0
  %v1656 = vsel %vm425, %v1648, 0
  %v1659 = vsel %vm425, %v1649, 0
  %v1662 = vsel %vm425, %v1650, 0
  %1664 = vmatpush.msra.mxu0 0.0
  %1665 = vmatpush.msra.mxu0 0.0
  %1666 = vmatpush.msra.mxu0 0.0
  %1667 = vmatpush.msra.mxu0 0.0
  %1668 = vmatpush.msra.mxu0 0.0
  %1669 = vmatpush.msra.mxu0 0.0
  %1670 = vmatpush.msra.mxu0 0.0
  %1671 = vmatpush.msra.mxu0 0.0
  %1672 = vmatpush.msra.mxu0 0.0
  %1673 = vmatpush.msra.mxu0 0.0
  %1674 = vmatpush.msra.mxu0 0.0
  %1675 = vmatpush.msra.mxu0 0.0
  %1676 = vmatpush.msra.mxu0 %v423
  %1677 = vmatpush.msra.mxu0 %v422
  %1678 = vmatpush.msra.mxu0 %v421
  %1679 = vmatpush.msra.mxu0 %v420
  %1680 = vmatmul.f32.gmra.mxu0 %v1653
  %v1681 = vpop.f32.mrf.mxu0
  %v1682 = vadd.f32 %v1651, %v1681
  %1683 = vmatmul.f32.gmra.mxu0 %v1656
  %v1684 = vpop.f32.mrf.mxu0
  %v1685 = vadd.f32 %v1651, %v1684
  %1686 = vmatmul.f32.gmra.mxu0 %v1659
  %v1687 = vpop.f32.mrf.mxu0
  %v1688 = vadd.f32 %v1651, %v1687
  %1689 = vmatmul.f32.gmra.mxu0 %v1662
  %v1690 = vpop.f32.mrf.mxu0
  %v1691 = vadd.f32 %v1651, %v1690
  %1692 = vdwg.mxu0
  %v1693 = vmul.f32 %v1682, 0.5
  %v1694 = vmul.f32 %v1685, 0.5
  %v1695 = vmul.f32 %v1688, 0.5
  %v1696 = vmul.f32 %v1691, 0.5
  %v1697 = vmul.f32 %v1682, 0.044715
  %v1698 = vmul.f32 %v1685, 0.044715
  %v1699 = vmul.f32 %v1688, 0.044715
  %v1700 = vmul.f32 %v1691, 0.044715
  %v1701 = vmul.f32 %v1697, %v1682
  %v1702 = vmul.f32 %v1698, %v1685
  %v1703 = vmul.f32 %v1699, %v1688
  %v1704 = vmul.f32 %v1700, %v1691
  %v1705 = vmul.f32 %v1701, %v1682
  %v1706 = vmul.f32 %v1702, %v1685
  %v1707 = vmul.f32 %v1703, %v1688
  %v1708 = vmul.f32 %v1704, %v1691
  %v1709 = vadd.f32 %v1682, %v1705
  %v1710 = vadd.f32 %v1685, %v1706
  %v1711 = vadd.f32 %v1688, %v1707
  %v1712 = vadd.f32 %v1691, %v1708
  %v1713 = vmul.f32 %v1709, 0.7978846
  %v1714 = vmul.f32 %v1710, 0.7978846
  %v1715 = vmul.f32 %v1711, 0.7978846
  %v1716 = vmul.f32 %v1712, 0.7978846
  %v1717 = vtanh.pop %v1713
  %v1718 = vtanh.pop %v1714
  %v1719 = vtanh.pop %v1715
  %v1720 = vtanh.pop %v1716
  %v1721 = vadd.f32 %v1717, 1.0
  %v1722 = vadd.f32 %v1718, 1.0
  %v1723 = vadd.f32 %v1719, 1.0
  %v1724 = vadd.f32 %v1720, 1.0
  %v1725 = vmul.f32 %v1693, %v1721
  %v1726 = vmul.f32 %v1694, %v1722
  %v1727 = vmul.f32 %v1695, %v1723
  %v1728 = vmul.f32 %v1696, %v1724
  %1729 = vmatpush.msra.mxu0 %v408
  %1730 = vmatpush.msra.mxu0 %v407
  %1731 = vmatpush.msra.mxu0 %v406
  %1732 = vmatpush.msra.mxu0 %v405
  %1733 = vmatpush.msra.mxu0 %v404
  %1734 = vmatpush.msra.mxu0 %v403
  %1735 = vmatpush.msra.mxu0 %v402
  %1736 = vmatpush.msra.mxu0 %v401
  %1737 = vmatpush.msra.mxu0 %v400
  %1738 = vmatpush.msra.mxu0 %v399
  %1739 = vmatpush.msra.mxu0 %v398
  %1740 = vmatpush.msra.mxu0 %v397
  %1741 = vmatpush.msra.mxu0 %v396
  %1742 = vmatpush.msra.mxu0 %v395
  %1743 = vmatpush.msra.mxu0 %v394
  %1744 = vmatpush.msra.mxu0 %v393
  %1745 = vmatmul.f32.gmra.mxu0 %v1725
  %v1746 = vpop.f32.mrf.mxu0
  %v1747 = vadd.f32 0.0, %v1746
  %1748 = vmatmul.f32.gmra.mxu0 %v1726
  %v1749 = vpop.f32.mrf.mxu0
  %v1750 = vadd.f32 0.0, %v1749
  %1751 = vmatmul.f32.gmra.mxu0 %v1727
  %v1752 = vpop.f32.mrf.mxu0
  %v1753 = vadd.f32 0.0, %v1752
  %1754 = vmatmul.f32.gmra.mxu0 %v1728
  %v1755 = vpop.f32.mrf.mxu0
  %v1756 = vadd.f32 0.0, %v1755
  %1757 = vdwg.mxu0
  %v1758 = vadd.f32 %v1549, %v1747
  %v1759 = vadd.f32 %v1550, %v1750
  %v1760 = vadd.f32 %v1551, %v1753
  %v1761 = vadd.f32 %v1552, %v1756
  %v1762 = vperm.slane %v414, 0
  %v1763 = vadd.f32 %v1758, %v1762
  %v1764 = vadd.f32 %v1759, %v1762
  %v1765 = vadd.f32 %v1760, %v1762
  %v1766 = vadd.f32 %v1761, %v1762
  %s1767 = scalar_lea.vmem %s5, 168
  %v1768 = vld [vmem:[%s1767] sm:$0xff]
  %v1769 = vld [vmem:[%s1767 + $0x8] sm:$0xff]
  %v1770 = vld [vmem:[%s1767 + $0x10] sm:$0xff]
  %v1771 = vld [vmem:[%s1767 + $0x18] sm:$0xff]
  %v1772 = vld [vmem:[%s1767 + $0x20] sm:$0xff]
  %v1773 = vld [vmem:[%s1767 + $0x28] sm:$0xff]
  %v1774 = vld [vmem:[%s1767 + $0x30] sm:$0xff]
  %v1775 = vld [vmem:[%s1767 + $0x38] sm:$0xff]
  %v1776 = vld [vmem:[%s1767 + $0x40] sm:$0xff]
  %v1777 = vld [vmem:[%s1767 + $0x48] sm:$0xff]
  %v1778 = vld [vmem:[%s1767 + $0x50] sm:$0xff]
  %v1779 = vld [vmem:[%s1767 + $0x58] sm:$0xff]
  %v1780 = vld [vmem:[%s1767 + $0x60] sm:$0xff]
  %v1781 = vld [vmem:[%s1767 + $0x68] sm:$0xff]
  %v1782 = vld [vmem:[%s1767 + $0x70] sm:$0xff]
  %v1783 = vld [vmem:[%s1767 + $0x78] sm:$0xff]
  %v1784 = vld [vmem:[%s1767 + $0x80] sm:$0xff]
  %v1785 = vld [vmem:[%s1767 + $0x88] sm:$0xff]
  %v1786 = vld [vmem:[%s1767 + $0x90] sm:$0xff]
  %v1787 = vld [vmem:[%s1767 + $0x98] sm:$0xff]
  %v1788 = vld [vmem:[%s1767 + $0xa0] sm:$0x1]
  %v1789 = vld [vmem:[%s1767 + $0xa1] sm:$0x1]
  %v1790 = vld [vmem:[%s1767 + $0xa2] sm:$0x1]
  %v1791 = vld [vmem:[%s1767 + $0xa3] sm:$0x1]
  %v1792 = vld [vmem:[%s1767 + $0xa4] sm:$0x1]
  %v1793 = vld [vmem:[%s1767 + $0xa5] sm:$0x1]
  %s1794 = scalar_lea.vmem %s6, 40
  %v1795 = vld [vmem:[%s1794] sm:$0xff]
  %v1796 = vld [vmem:[%s1794 + $0x8] sm:$0xff]
  %v1797 = vld [vmem:[%s1794 + $0x10] sm:$0xff]
  %v1798 = vld [vmem:[%s1794 + $0x18] sm:$0xff]
  %v1799 = vld [vmem:[%s1794 + $0x20] sm:$0x1]
  %s1800 = scalar_lea.vmem %s7, 40
  %v1801 = vld [vmem:[%s1800] sm:$0xff]
  %v1802 = vld [vmem:[%s1800 + $0x8] sm:$0xff]
  %v1803 = vld [vmem:[%s1800 + $0x10] sm:$0xff]
  %v1804 = vld [vmem:[%s1800 + $0x18] sm:$0xff]
  %v1805 = vld [vmem:[%s1800 + $0x20] sm:$0x1]
  %v1806 = vsel %vm425, %v1763, 0.0
  %1807 = vadd.xlane.f32.xlu0 %v1806
  %v1808 = vpop.xlane.xlu0 %1807
  %v1809 = vsel %vm425, %v1764, 0.0
  %1810 = vadd.xlane.f32.xlu0 %v1809
  %v1811 = vpop.xlane.xlu0 %1810
  %v1812 = vsel %vm425, %v1765, 0.0
  %1813 = vadd.xlane.f32.xlu0 %v1812
  %v1814 = vpop.xlane.xlu0 %1813
  %v1815 = vsel %vm425, %v1766, 0.0
  %1816 = vadd.xlane.f32.xlu0 %v1815
  %v1817 = vpop.xlane.xlu0 %1816
  %v1818 = vmul.f32 %v1808, %v444
  %v1819 = vmul.f32 %v1811, %v444
  %v1820 = vmul.f32 %v1814, %v444
  %v1821 = vmul.f32 %v1817, %v444
  %v1822 = vsub.f32 %v1763, %v1818
  %v1823 = vsub.f32 %v1764, %v1819
  %v1824 = vsub.f32 %v1765, %v1820
  %v1825 = vsub.f32 %v1766, %v1821
  %v1826 = vmul.f32 %v1822, %v1822
  %v1827 = vmul.f32 %v1823, %v1823
  %v1828 = vmul.f32 %v1824, %v1824
  %v1829 = vmul.f32 %v1825, %v1825
  %v1830 = vsel %vm425, %v1826, 0.0
  %1831 = vadd.xlane.f32.xlu0 %v1830
  %v1832 = vpop.xlane.xlu0 %1831
  %v1833 = vsel %vm425, %v1827, 0.0
  %1834 = vadd.xlane.f32.xlu0 %v1833
  %v1835 = vpop.xlane.xlu0 %1834
  %v1836 = vsel %vm425, %v1828, 0.0
  %1837 = vadd.xlane.f32.xlu0 %v1836
  %v1838 = vpop.xlane.xlu0 %1837
  %v1839 = vsel %vm425, %v1829, 0.0
  %1840 = vadd.xlane.f32.xlu0 %v1839
  %v1841 = vpop.xlane.xlu0 %1840
  %v1842 = vmul.f32 %v1832, %v444
  %v1843 = vmul.f32 %v1835, %v444
  %v1844 = vmul.f32 %v1838, %v444
  %v1845 = vmul.f32 %v1841, %v444
  %v1846 = vadd.f32 %v1842, 1e-05
  %v1847 = vadd.f32 %v1843, 1e-05
  %v1848 = vadd.f32 %v1844, 1e-05
  %v1849 = vadd.f32 %v1845, 1e-05
  %v1850 = vrsqrt.pop %v1846
  %v1851 = vmul.f32 %v1850, %v1846
  %v1852 = vmul.f32 %v1851, %v1850
  %v1853 = vmul.f32 0.5, %v1852
  %v1854 = vsub.f32 1.5, %v1853
  %v1855 = vmul.f32 %v1850, %v1854
  %vm1856 = vweird.f32 %v1846
  %vm1857 = vweird.f32 %v1850
  %vm1858 = vmor %vm1856, %vm1857
  %v1859 = vsel %vm1858, %v1850, %v1855
  %v1860 = vrsqrt.pop %v1847
  %v1861 = vmul.f32 %v1860, %v1847
  %v1862 = vmul.f32 %v1861, %v1860
  %v1863 = vmul.f32 0.5, %v1862
  %v1864 = vsub.f32 1.5, %v1863
  %v1865 = vmul.f32 %v1860, %v1864
  %vm1866 = vweird.f32 %v1847
  %vm1867 = vweird.f32 %v1860
  %vm1868 = vmor %vm1866, %vm1867
  %v1869 = vsel %vm1868, %v1860, %v1865
  %v1870 = vrsqrt.pop %v1848
  %v1871 = vmul.f32 %v1870, %v1848
  %v1872 = vmul.f32 %v1871, %v1870
  %v1873 = vmul.f32 0.5, %v1872
  %v1874 = vsub.f32 1.5, %v1873
  %v1875 = vmul.f32 %v1870, %v1874
  %vm1876 = vweird.f32 %v1848
  %vm1877 = vweird.f32 %v1870
  %vm1878 = vmor %vm1876, %vm1877
  %v1879 = vsel %vm1878, %v1870, %v1875
  %v1880 = vrsqrt.pop %v1849
  %v1881 = vmul.f32 %v1880, %v1849
  %v1882 = vmul.f32 %v1881, %v1880
  %v1883 = vmul.f32 0.5, %v1882
  %v1884 = vsub.f32 1.5, %v1883
  %v1885 = vmul.f32 %v1880, %v1884
  %vm1886 = vweird.f32 %v1849
  %vm1887 = vweird.f32 %v1880
  %vm1888 = vmor %vm1886, %vm1887
  %v1889 = vsel %vm1888, %v1880, %v1885
  %v1890 = vmul.f32 %v1822, %v1859
  %v1891 = vmul.f32 %v1823, %v1869
  %v1892 = vmul.f32 %v1824, %v1879
  %v1893 = vmul.f32 %v1825, %v1889
  %v1894 = vperm.slane %v1788, 0
  %v1895 = vmul.f32 %v1890, %v1894
  %v1896 = vmul.f32 %v1891, %v1894
  %v1897 = vmul.f32 %v1892, %v1894
  %v1898 = vmul.f32 %v1893, %v1894
  %v1899 = vperm.slane %v1789, 0
  %v1900 = vadd.f32 %v1895, %v1899
  %v1901 = vadd.f32 %v1896, %v1899
  %v1902 = vadd.f32 %v1897, %v1899
  %v1903 = vadd.f32 %v1898, %v1899
  %v1904 = vperm.slane %v1799, 0
  %v1906 = vsel %vm425, %v1900, 0
  %v1909 = vsel %vm425, %v1901, 0
  %v1912 = vsel %vm425, %v1902, 0
  %v1915 = vsel %vm425, %v1903, 0
  %1917 = vmatpush.msra.mxu0 0.0
  %1918 = vmatpush.msra.mxu0 0.0
  %1919 = vmatpush.msra.mxu0 0.0
  %1920 = vmatpush.msra.mxu0 0.0
  %1921 = vmatpush.msra.mxu0 0.0
  %1922 = vmatpush.msra.mxu0 0.0
  %1923 = vmatpush.msra.mxu0 0.0
  %1924 = vmatpush.msra.mxu0 0.0
  %1925 = vmatpush.msra.mxu0 0.0
  %1926 = vmatpush.msra.mxu0 0.0
  %1927 = vmatpush.msra.mxu0 0.0
  %1928 = vmatpush.msra.mxu0 0.0
  %1929 = vmatpush.msra.mxu0 %v1798
  %1930 = vmatpush.msra.mxu0 %v1797
  %1931 = vmatpush.msra.mxu0 %v1796
  %1932 = vmatpush.msra.mxu0 %v1795
  %1933 = vmatmul.f32.gmra.mxu0 %v1906
  %v1934 = vpop.f32.mrf.mxu0
  %v1935 = vadd.f32 %v1904, %v1934
  %1936 = vmatmul.f32.gmra.mxu0 %v1909
  %v1937 = vpop.f32.mrf.mxu0
  %v1938 = vadd.f32 %v1904, %v1937
  %1939 = vmatmul.f32.gmra.mxu0 %v1912
  %v1940 = vpop.f32.mrf.mxu0
  %v1941 = vadd.f32 %v1904, %v1940
  %1942 = vmatmul.f32.gmra.mxu0 %v1915
  %v1943 = vpop.f32.mrf.mxu0
  %v1944 = vadd.f32 %v1904, %v1943
  %1945 = vdwg.mxu0
  %1950 = vrot.lane.b32.xlu0 %v1935, 96
  %v1951 = vpop.permute.xlu0 %1950
  %1952 = vrot.lane.b32.xlu0 %v1938, 96
  %v1953 = vpop.permute.xlu0 %1952
  %1954 = vrot.lane.b32.xlu0 %v1941, 96
  %v1955 = vpop.permute.xlu0 %1954
  %1956 = vrot.lane.b32.xlu0 %v1944, 96
  %v1957 = vpop.permute.xlu0 %1956
  %v1958 = vsel %vm277, %v1935, 0
  %v1960 = vsel %vm277, %v1938, 0
  %v1962 = vsel %vm277, %v1941, 0
  %v1964 = vsel %vm277, %v1944, 0
  %v1966 = vsel %vm277, %v1951, 0
  %v1968 = vsel %vm277, %v1953, 0
  %v1970 = vsel %vm277, %v1955, 0
  %v1972 = vsel %vm277, %v1957, 0
  %1974 = vmatpush.xpose.msra.mxu0 0.0
  %1975 = vmatpush.xpose.msra.mxu0 0.0
  %1976 = vmatpush.xpose.msra.mxu0 0.0
  %1977 = vmatpush.xpose.msra.mxu0 0.0
  %1978 = vmatpush.xpose.msra.mxu0 0.0
  %1979 = vmatpush.xpose.msra.mxu0 0.0
  %1980 = vmatpush.xpose.msra.mxu0 0.0
  %1981 = vmatpush.xpose.msra.mxu0 0.0
  %1982 = vmatpush.xpose.msra.mxu0 0.0
  %1983 = vmatpush.xpose.msra.mxu0 0.0
  %1984 = vmatpush.xpose.msra.mxu0 0.0
  %1985 = vmatpush.xpose.msra.mxu0 0.0
  %1986 = vmatpush.xpose.msra.mxu0 %v1972
  %1987 = vmatpush.xpose.msra.mxu0 %v1970
  %1988 = vmatpush.xpose.msra.mxu0 %v1968
  %1989 = vmatpush.xpose.msra.mxu0 %v1966
  %1990 = vmatmul.f32.gmra.mxu0 %v1958
  %v1991 = vpop.f32.mrf.mxu0
  %v1992 = vadd.f32 0.0, %v1991
  %1993 = vmatmul.f32.gmra.mxu0 %v1960
  %v1994 = vpop.f32.mrf.mxu0
  %v1995 = vadd.f32 0.0, %v1994
  %1996 = vmatmul.f32.gmra.mxu0 %v1962
  %v1997 = vpop.f32.mrf.mxu0
  %v1998 = vadd.f32 0.0, %v1997
  %1999 = vmatmul.f32.gmra.mxu0 %v1964
  %v2000 = vpop.f32.mrf.mxu0
  %v2001 = vadd.f32 0.0, %v2000
  %2002 = vdwg.mxu0
  %v2003 = vmul.f32 %v1992, 0.35355338
  %v2004 = vmul.f32 %v1995, 0.35355338
  %v2005 = vmul.f32 %v1998, 0.35355338
  %v2006 = vmul.f32 %v2001, 0.35355338
  %v2007 = vadd.f32 %v2003, %v385
  %v2008 = vadd.f32 %v2004, %v386
  %v2009 = vadd.f32 %v2005, %v387
  %v2010 = vadd.f32 %v2006, %v388
  %v2011 = vsel %vm425, %v2007, -inf
  %2012 = vmax.xlane.f32.xlu0 %v2011
  %v2013 = vpop.xlane.xlu0 %2012
  %v2014 = vsel %vm425, %v2008, -inf
  %2015 = vmax.xlane.f32.xlu0 %v2014
  %v2016 = vpop.xlane.xlu0 %2015
  %v2017 = vsel %vm425, %v2009, -inf
  %2018 = vmax.xlane.f32.xlu0 %v2017
  %v2019 = vpop.xlane.xlu0 %2018
  %v2020 = vsel %vm425, %v2010, -inf
  %2021 = vmax.xlane.f32.xlu0 %v2020
  %v2022 = vpop.xlane.xlu0 %2021
  %v2023 = vsub.f32 %v2007, %v2013
  %v2024 = vsub.f32 %v2008, %v2016
  %v2025 = vsub.f32 %v2009, %v2019
  %v2026 = vsub.f32 %v2010, %v2022
  %v2027 = vmul.f32 %v2023, 1.442695
  %v2028 = vpow.pop %v2027
  %v2029 = vmul.f32 %v2024, 1.442695
  %v2030 = vpow.pop %v2029
  %v2031 = vmul.f32 %v2025, 1.442695
  %v2032 = vpow.pop %v2031
  %v2033 = vmul.f32 %v2026, 1.442695
  %v2034 = vpow.pop %v2033
  %v2035 = vsel %vm425, %v2028, 0.0
  %2036 = vadd.xlane.f32.xlu0 %v2035
  %v2037 = vpop.xlane.xlu0 %2036
  %v2038 = vsel %vm425, %v2030, 0.0
  %2039 = vadd.xlane.f32.xlu0 %v2038
  %v2040 = vpop.xlane.xlu0 %2039
  %v2041 = vsel %vm425, %v2032, 0.0
  %2042 = vadd.xlane.f32.xlu0 %v2041
  %v2043 = vpop.xlane.xlu0 %2042
  %v2044 = vsel %vm425, %v2034, 0.0
  %2045 = vadd.xlane.f32.xlu0 %v2044
  %v2046 = vpop.xlane.xlu0 %2045
  %v2047 = vrcp.pop %v2037
  %v2048 = vmul.f32 %v2037, %v2047
  %v2049 = vsub.f32 1.0, %v2048
  %v2050 = vmul.f32 %v2047, %v2049
  %v2051 = vadd.f32 %v2047, %v2050
  %vm2052 = vweird.f32 %v2037
  %vm2053 = vweird.f32 %v2047
  %vm2054 = vmor %vm2052, %vm2053
  %v2055 = vsel %vm2054, %v2047, %v2051
  %v2056 = vand.u32 2147483647, %v2037
  %vm2057 = vcmp.eq.f32.partialorder %v2056, 8.507059e+37
  %v2058 = vand.u32 %v2037, 2147483648
  %v2059 = vor.u32 1.1754944e-38, %v2058
  %v2060 = vsel %vm2057, %v2059, %v2055
  %v2061 = vmul.f32 %v2028, %v2060
  %v2062 = vrcp.pop %v2040
  %v2063 = vmul.f32 %v2040, %v2062
  %v2064 = vsub.f32 1.0, %v2063
  %v2065 = vmul.f32 %v2062, %v2064
  %v2066 = vadd.f32 %v2062, %v2065
  %vm2067 = vweird.f32 %v2040
  %vm2068 = vweird.f32 %v2062
  %vm2069 = vmor %vm2067, %vm2068
  %v2070 = vsel %vm2069, %v2062, %v2066
  %v2071 = vand.u32 2147483647, %v2040
  %vm2072 = vcmp.eq.f32.partialorder %v2071, 8.507059e+37
  %v2073 = vand.u32 %v2040, 2147483648
  %v2074 = vor.u32 1.1754944e-38, %v2073
  %v2075 = vsel %vm2072, %v2074, %v2070
  %v2076 = vmul.f32 %v2030, %v2075
  %v2077 = vrcp.pop %v2043
  %v2078 = vmul.f32 %v2043, %v2077
  %v2079 = vsub.f32 1.0, %v2078
  %v2080 = vmul.f32 %v2077, %v2079
  %v2081 = vadd.f32 %v2077, %v2080
  %vm2082 = vweird.f32 %v2043
  %vm2083 = vweird.f32 %v2077
  %vm2084 = vmor %vm2082, %vm2083
  %v2085 = vsel %vm2084, %v2077, %v2081
  %v2086 = vand.u32 2147483647, %v2043
  %vm2087 = vcmp.eq.f32.partialorder %v2086, 8.507059e+37
  %v2088 = vand.u32 %v2043, 2147483648
  %v2089 = vor.u32 1.1754944e-38, %v2088
  %v2090 = vsel %vm2087, %v2089, %v2085
  %v2091 = vmul.f32 %v2032, %v2090
  %v2092 = vrcp.pop %v2046
  %v2093 = vmul.f32 %v2046, %v2092
  %v2094 = vsub.f32 1.0, %v2093
  %v2095 = vmul.f32 %v2092, %v2094
  %v2096 = vadd.f32 %v2092, %v2095
  %vm2097 = vweird.f32 %v2046
  %vm2098 = vweird.f32 %v2092
  %vm2099 = vmor %vm2097, %vm2098
  %v2100 = vsel %vm2099, %v2092, %v2096
  %v2101 = vand.u32 2147483647, %v2046
  %vm2102 = vcmp.eq.f32.partialorder %v2101, 8.507059e+37
  %v2103 = vand.u32 %v2046, 2147483648
  %v2104 = vor.u32 1.1754944e-38, %v2103
  %v2105 = vsel %vm2102, %v2104, %v2100
  %v2106 = vmul.f32 %v2034, %v2105
  %2107 = vrot.lane.b32.xlu0 %v1935, 64
  %v2108 = vpop.permute.xlu0 %2107
  %2109 = vrot.lane.b32.xlu0 %v1938, 64
  %v2110 = vpop.permute.xlu0 %2109
  %2111 = vrot.lane.b32.xlu0 %v1941, 64
  %v2112 = vpop.permute.xlu0 %2111
  %2113 = vrot.lane.b32.xlu0 %v1944, 64
  %v2114 = vpop.permute.xlu0 %2113
  %v2120 = vsel %vm425, %v2061, 0
  %v2123 = vsel %vm425, %v2076, 0
  %v2126 = vsel %vm425, %v2091, 0
  %v2129 = vsel %vm425, %v2106, 0
  %2131 = vmatpush.msra.mxu0 0.0
  %2132 = vmatpush.msra.mxu0 0.0
  %2133 = vmatpush.msra.mxu0 0.0
  %2134 = vmatpush.msra.mxu0 0.0
  %2135 = vmatpush.msra.mxu0 0.0
  %2136 = vmatpush.msra.mxu0 0.0
  %2137 = vmatpush.msra.mxu0 0.0
  %2138 = vmatpush.msra.mxu0 0.0
  %2139 = vmatpush.msra.mxu0 0.0
  %2140 = vmatpush.msra.mxu0 0.0
  %2141 = vmatpush.msra.mxu0 0.0
  %2142 = vmatpush.msra.mxu0 0.0
  %2143 = vmatpush.msra.mxu0 %v2114
  %2144 = vmatpush.msra.mxu0 %v2112
  %2145 = vmatpush.msra.mxu0 %v2110
  %2146 = vmatpush.msra.mxu0 %v2108
  %2147 = vmatmul.f32.gmra.mxu0 %v2120
  %v2148 = vpop.f32.mrf.mxu0
  %v2149 = vadd.f32 0.0, %v2148
  %2150 = vmatmul.f32.gmra.mxu0 %v2123
  %v2151 = vpop.f32.mrf.mxu0
  %v2152 = vadd.f32 0.0, %v2151
  %2153 = vmatmul.f32.gmra.mxu0 %v2126
  %v2154 = vpop.f32.mrf.mxu0
  %v2155 = vadd.f32 0.0, %v2154
  %2156 = vmatmul.f32.gmra.mxu0 %v2129
  %v2157 = vpop.f32.mrf.mxu0
  %v2158 = vadd.f32 0.0, %v2157
  %2159 = vdwg.mxu0
  %2160 = vrot.lane.b32.xlu0 %v1935, 120
  %v2161 = vpop.permute.xlu0 %2160
  %2162 = vrot.lane.b32.xlu0 %v1938, 120
  %v2163 = vpop.permute.xlu0 %2162
  %2164 = vrot.lane.b32.xlu0 %v1941, 120
  %v2165 = vpop.permute.xlu0 %2164
  %2166 = vrot.lane.b32.xlu0 %v1944, 120
  %v2167 = vpop.permute.xlu0 %2166
  %2168 = vrot.lane.b32.xlu0 %v1935, 88
  %v2169 = vpop.permute.xlu0 %2168
  %2170 = vrot.lane.b32.xlu0 %v1938, 88
  %v2171 = vpop.permute.xlu0 %2170
  %2172 = vrot.lane.b32.xlu0 %v1941, 88
  %v2173 = vpop.permute.xlu0 %2172
  %2174 = vrot.lane.b32.xlu0 %v1944, 88
  %v2175 = vpop.permute.xlu0 %2174
  %v2176 = vsel %vm277, %v2161, 0
  %v2178 = vsel %vm277, %v2163, 0
  %v2180 = vsel %vm277, %v2165, 0
  %v2182 = vsel %vm277, %v2167, 0
  %v2184 = vsel %vm277, %v2169, 0
  %v2186 = vsel %vm277, %v2171, 0
  %v2188 = vsel %vm277, %v2173, 0
  %v2190 = vsel %vm277, %v2175, 0
  %2192 = vmatpush.xpose.msra.mxu0 0.0
  %2193 = vmatpush.xpose.msra.mxu0 0.0
  %2194 = vmatpush.xpose.msra.mxu0 0.0
  %2195 = vmatpush.xpose.msra.mxu0 0.0
  %2196 = vmatpush.xpose.msra.mxu0 0.0
  %2197 = vmatpush.xpose.msra.mxu0 0.0
  %2198 = vmatpush.xpose.msra.mxu0 0.0
  %2199 = vmatpush.xpose.msra.mxu0 0.0
  %2200 = vmatpush.xpose.msra.mxu0 0.0
  %2201 = vmatpush.xpose.msra.mxu0 0.0
  %2202 = vmatpush.xpose.msra.mxu0 0.0
  %2203 = vmatpush.xpose.msra.mxu0 0.0
  %2204 = vmatpush.xpose.msra.mxu0 %v2190
  %2205 = vmatpush.xpose.msra.mxu0 %v2188
  %2206 = vmatpush.xpose.msra.mxu0 %v2186
  %2207 = vmatpush.xpose.msra.mxu0 %v2184
  %2208 = vmatmul.f32.gmra.mxu0 %v2176
  %v2209 = vpop.f32.mrf.mxu0
  %v2210 = vadd.f32 0.0, %v2209
  %2211 = vmatmul.f32.gmra.mxu0 %v2178
  %v2212 = vpop.f32.mrf.mxu0
  %v2213 = vadd.f32 0.0, %v2212
  %2214 = vmatmul.f32.gmra.mxu0 %v2180
  %v2215 = vpop.f32.mrf.mxu0
  %v2216 = vadd.f32 0.0, %v2215
  %2217 = vmatmul.f32.gmra.mxu0 %v2182
  %v2218 = vpop.f32.mrf.mxu0
  %v2219 = vadd.f32 0.0, %v2218
  %2220 = vdwg.mxu0
  %v2221 = vmul.f32 %v2210, 0.35355338
  %v2222 = vmul.f32 %v2213, 0.35355338
  %v2223 = vmul.f32 %v2216, 0.35355338
  %v2224 = vmul.f32 %v2219, 0.35355338
  %v2225 = vadd.f32 %v2221, %v385
  %v2226 = vadd.f32 %v2222, %v386
  %v2227 = vadd.f32 %v2223, %v387
  %v2228 = vadd.f32 %v2224, %v388
  %v2229 = vsel %vm425, %v2225, -inf
  %2230 = vmax.xlane.f32.xlu0 %v2229
  %v2231 = vpop.xlane.xlu0 %2230
  %v2232 = vsel %vm425, %v2226, -inf
  %2233 = vmax.xlane.f32.xlu0 %v2232
  %v2234 = vpop.xlane.xlu0 %2233
  %v2235 = vsel %vm425, %v2227, -inf
  %2236 = vmax.xlane.f32.xlu0 %v2235
  %v2237 = vpop.xlane.xlu0 %2236
  %v2238 = vsel %vm425, %v2228, -inf
  %2239 = vmax.xlane.f32.xlu0 %v2238
  %v2240 = vpop.xlane.xlu0 %2239
  %v2241 = vsub.f32 %v2225, %v2231
  %v2242 = vsub.f32 %v2226, %v2234
  %v2243 = vsub.f32 %v2227, %v2237
  %v2244 = vsub.f32 %v2228, %v2240
  %v2245 = vmul.f32 %v2241, 1.442695
  %v2246 = vpow.pop %v2245
  %v2247 = vmul.f32 %v2242, 1.442695
  %v2248 = vpow.pop %v2247
  %v2249 = vmul.f32 %v2243, 1.442695
  %v2250 = vpow.pop %v2249
  %v2251 = vmul.f32 %v2244, 1.442695
  %v2252 = vpow.pop %v2251
  %v2253 = vsel %vm425, %v2246, 0.0
  %2254 = vadd.xlane.f32.xlu0 %v2253
  %v2255 = vpop.xlane.xlu0 %2254
  %v2256 = vsel %vm425, %v2248, 0.0
  %2257 = vadd.xlane.f32.xlu0 %v2256
  %v2258 = vpop.xlane.xlu0 %2257
  %v2259 = vsel %vm425, %v2250, 0.0
  %2260 = vadd.xlane.f32.xlu0 %v2259
  %v2261 = vpop.xlane.xlu0 %2260
  %v2262 = vsel %vm425, %v2252, 0.0
  %2263 = vadd.xlane.f32.xlu0 %v2262
  %v2264 = vpop.xlane.xlu0 %2263
  %v2265 = vrcp.pop %v2255
  %v2266 = vmul.f32 %v2255, %v2265
  %v2267 = vsub.f32 1.0, %v2266
  %v2268 = vmul.f32 %v2265, %v2267
  %v2269 = vadd.f32 %v2265, %v2268
  %vm2270 = vweird.f32 %v2255
  %vm2271 = vweird.f32 %v2265
  %vm2272 = vmor %vm2270, %vm2271
  %v2273 = vsel %vm2272, %v2265, %v2269
  %v2274 = vand.u32 2147483647, %v2255
  %vm2275 = vcmp.eq.f32.partialorder %v2274, 8.507059e+37
  %v2276 = vand.u32 %v2255, 2147483648
  %v2277 = vor.u32 1.1754944e-38, %v2276
  %v2278 = vsel %vm2275, %v2277, %v2273
  %v2279 = vmul.f32 %v2246, %v2278
  %v2280 = vrcp.pop %v2258
  %v2281 = vmul.f32 %v2258, %v2280
  %v2282 = vsub.f32 1.0, %v2281
  %v2283 = vmul.f32 %v2280, %v2282
  %v2284 = vadd.f32 %v2280, %v2283
  %vm2285 = vweird.f32 %v2258
  %vm2286 = vweird.f32 %v2280
  %vm2287 = vmor %vm2285, %vm2286
  %v2288 = vsel %vm2287, %v2280, %v2284
  %v2289 = vand.u32 2147483647, %v2258
  %vm2290 = vcmp.eq.f32.partialorder %v2289, 8.507059e+37
  %v2291 = vand.u32 %v2258, 2147483648
  %v2292 = vor.u32 1.1754944e-38, %v2291
  %v2293 = vsel %vm2290, %v2292, %v2288
  %v2294 = vmul.f32 %v2248, %v2293
  %v2295 = vrcp.pop %v2261
  %v2296 = vmul.f32 %v2261, %v2295
  %v2297 = vsub.f32 1.0, %v2296
  %v2298 = vmul.f32 %v2295, %v2297
  %v2299 = vadd.f32 %v2295, %v2298
  %vm2300 = vweird.f32 %v2261
  %vm2301 = vweird.f32 %v2295
  %vm2302 = vmor %vm2300, %vm2301
  %v2303 = vsel %vm2302, %v2295, %v2299
  %v2304 = vand.u32 2147483647, %v2261
  %vm2305 = vcmp.eq.f32.partialorder %v2304, 8.507059e+37
  %v2306 = vand.u32 %v2261, 2147483648
  %v2307 = vor.u32 1.1754944e-38, %v2306
  %v2308 = vsel %vm2305, %v2307, %v2303
  %v2309 = vmul.f32 %v2250, %v2308
  %v2310 = vrcp.pop %v2264
  %v2311 = vmul.f32 %v2264, %v2310
  %v2312 = vsub.f32 1.0, %v2311
  %v2313 = vmul.f32 %v2310, %v2312
  %v2314 = vadd.f32 %v2310, %v2313
  %vm2315 = vweird.f32 %v2264
  %vm2316 = vweird.f32 %v2310
  %vm2317 = vmor %vm2315, %vm2316
  %v2318 = vsel %vm2317, %v2310, %v2314
  %v2319 = vand.u32 2147483647, %v2264
  %vm2320 = vcmp.eq.f32.partialorder %v2319, 8.507059e+37
  %v2321 = vand.u32 %v2264, 2147483648
  %v2322 = vor.u32 1.1754944e-38, %v2321
  %v2323 = vsel %vm2320, %v2322, %v2318
  %v2324 = vmul.f32 %v2252, %v2323
  %2325 = vrot.lane.b32.xlu0 %v1935, 56
  %v2326 = vpop.permute.xlu0 %2325
  %2327 = vrot.lane.b32.xlu0 %v1938, 56
  %v2328 = vpop.permute.xlu0 %2327
  %2329 = vrot.lane.b32.xlu0 %v1941, 56
  %v2330 = vpop.permute.xlu0 %2329
  %2331 = vrot.lane.b32.xlu0 %v1944, 56
  %v2332 = vpop.permute.xlu0 %2331
  %v2338 = vsel %vm425, %v2279, 0
  %v2341 = vsel %vm425, %v2294, 0
  %v2344 = vsel %vm425, %v2309, 0
  %v2347 = vsel %vm425, %v2324, 0
  %2349 = vmatpush.msra.mxu0 0.0
  %2350 = vmatpush.msra.mxu0 0.0
  %2351 = vmatpush.msra.mxu0 0.0
  %2352 = vmatpush.msra.mxu0 0.0
  %2353 = vmatpush.msra.mxu0 0.0
  %2354 = vmatpush.msra.mxu0 0.0
  %2355 = vmatpush.msra.mxu0 0.0
  %2356 = vmatpush.msra.mxu0 0.0
  %2357 = vmatpush.msra.mxu0 0.0
  %2358 = vmatpush.msra.mxu0 0.0
  %2359 = vmatpush.msra.mxu0 0.0
  %2360 = vmatpush.msra.mxu0 0.0
  %2361 = vmatpush.msra.mxu0 %v2332
  %2362 = vmatpush.msra.mxu0 %v2330
  %2363 = vmatpush.msra.mxu0 %v2328
  %2364 = vmatpush.msra.mxu0 %v2326
  %2365 = vmatmul.f32.gmra.mxu0 %v2338
  %v2366 = vpop.f32.mrf.mxu0
  %v2367 = vadd.f32 0.0, %v2366
  %2368 = vmatmul.f32.gmra.mxu0 %v2341
  %v2369 = vpop.f32.mrf.mxu0
  %v2370 = vadd.f32 0.0, %v2369
  %2371 = vmatmul.f32.gmra.mxu0 %v2344
  %v2372 = vpop.f32.mrf.mxu0
  %v2373 = vadd.f32 0.0, %v2372
  %2374 = vmatmul.f32.gmra.mxu0 %v2347
  %v2375 = vpop.f32.mrf.mxu0
  %v2376 = vadd.f32 0.0, %v2375
  %2377 = vdwg.mxu0
  %2378 = vrot.lane.b32.xlu0 %v1935, 112
  %v2379 = vpop.permute.xlu0 %2378
  %2380 = vrot.lane.b32.xlu0 %v1938, 112
  %v2381 = vpop.permute.xlu0 %2380
  %2382 = vrot.lane.b32.xlu0 %v1941, 112
  %v2383 = vpop.permute.xlu0 %2382
  %2384 = vrot.lane.b32.xlu0 %v1944, 112
  %v2385 = vpop.permute.xlu0 %2384
  %2386 = vrot.lane.b32.xlu0 %v1935, 80
  %v2387 = vpop.permute.xlu0 %2386
  %2388 = vrot.lane.b32.xlu0 %v1938, 80
  %v2389 = vpop.permute.xlu0 %2388
  %2390 = vrot.lane.b32.xlu0 %v1941, 80
  %v2391 = vpop.permute.xlu0 %2390
  %2392 = vrot.lane.b32.xlu0 %v1944, 80
  %v2393 = vpop.permute.xlu0 %2392
  %v2394 = vsel %vm277, %v2379, 0
  %v2396 = vsel %vm277, %v2381, 0
  %v2398 = vsel %vm277, %v2383, 0
  %v2400 = vsel %vm277, %v2385, 0
  %v2402 = vsel %vm277, %v2387, 0
  %v2404 = vsel %vm277, %v2389, 0
  %v2406 = vsel %vm277, %v2391, 0
  %v2408 = vsel %vm277, %v2393, 0
  %2410 = vmatpush.xpose.msra.mxu0 0.0
  %2411 = vmatpush.xpose.msra.mxu0 0.0
  %2412 = vmatpush.xpose.msra.mxu0 0.0
  %2413 = vmatpush.xpose.msra.mxu0 0.0
  %2414 = vmatpush.xpose.msra.mxu0 0.0
  %2415 = vmatpush.xpose.msra.mxu0 0.0
  %2416 = vmatpush.xpose.msra.mxu0 0.0
  %2417 = vmatpush.xpose.msra.mxu0 0.0
  %2418 = vmatpush.xpose.msra.mxu0 0.0
  %2419 = vmatpush.xpose.msra.mxu0 0.0
  %2420 = vmatpush.xpose.msra.mxu0 0.0
  %2421 = vmatpush.xpose.msra.mxu0 0.0
  %2422 = vmatpush.xpose.msra.mxu0 %v2408
  %2423 = vmatpush.xpose.msra.mxu0 %v2406
  %2424 = vmatpush.xpose.msra.mxu0 %v2404
  %2425 = vmatpush.xpose.msra.mxu0 %v2402
  %2426 = vmatmul.f32.gmra.mxu0 %v2394
  %v2427 = vpop.f32.mrf.mxu0
  %v2428 = vadd.f32 0.0, %v2427
  %2429 = vmatmul.f32.gmra.mxu0 %v2396
  %v2430 = vpop.f32.mrf.mxu0
  %v2431 = vadd.f32 0.0, %v2430
  %2432 = vmatmul.f32.gmra.mxu0 %v2398
  %v2433 = vpop.f32.mrf.mxu0
  %v2434 = vadd.f32 0.0, %v2433
  %2435 = vmatmul.f32.gmra.mxu0 %v2400
  %v2436 = vpop.f32.mrf.mxu0
  %v2437 = vadd.f32 0.0, %v2436
  %2438 = vdwg.mxu0
  %v2439 = vmul.f32 %v2428, 0.35355338
  %v2440 = vmul.f32 %v2431, 0.35355338
  %v2441 = vmul.f32 %v2434, 0.35355338
  %v2442 = vmul.f32 %v2437, 0.35355338
  %v2443 = vadd.f32 %v2439, %v385
  %v2444 = vadd.f32 %v2440, %v386
  %v2445 = vadd.f32 %v2441, %v387
  %v2446 = vadd.f32 %v2442, %v388
  %v2447 = vsel %vm425, %v2443, -inf
  %2448 = vmax.xlane.f32.xlu0 %v2447
  %v2449 = vpop.xlane.xlu0 %2448
  %v2450 = vsel %vm425, %v2444, -inf
  %2451 = vmax.xlane.f32.xlu0 %v2450
  %v2452 = vpop.xlane.xlu0 %2451
  %v2453 = vsel %vm425, %v2445, -inf
  %2454 = vmax.xlane.f32.xlu0 %v2453
  %v2455 = vpop.xlane.xlu0 %2454
  %v2456 = vsel %vm425, %v2446, -inf
  %2457 = vmax.xlane.f32.xlu0 %v2456
  %v2458 = vpop.xlane.xlu0 %2457
  %v2459 = vsub.f32 %v2443, %v2449
  %v2460 = vsub.f32 %v2444, %v2452
  %v2461 = vsub.f32 %v2445, %v2455
  %v2462 = vsub.f32 %v2446, %v2458
  %v2463 = vmul.f32 %v2459, 1.442695
  %v2464 = vpow.pop %v2463
  %v2465 = vmul.f32 %v2460, 1.442695
  %v2466 = vpow.pop %v2465
  %v2467 = vmul.f32 %v2461, 1.442695
  %v2468 = vpow.pop %v2467
  %v2469 = vmul.f32 %v2462, 1.442695
  %v2470 = vpow.pop %v2469
  %v2471 = vsel %vm425, %v2464, 0.0
  %2472 = vadd.xlane.f32.xlu0 %v2471
  %v2473 = vpop.xlane.xlu0 %2472
  %v2474 = vsel %vm425, %v2466, 0.0
  %2475 = vadd.xlane.f32.xlu0 %v2474
  %v2476 = vpop.xlane.xlu0 %2475
  %v2477 = vsel %vm425, %v2468, 0.0
  %2478 = vadd.xlane.f32.xlu0 %v2477
  %v2479 = vpop.xlane.xlu0 %2478
  %v2480 = vsel %vm425, %v2470, 0.0
  %2481 = vadd.xlane.f32.xlu0 %v2480
  %v2482 = vpop.xlane.xlu0 %2481
  %v2483 = vrcp.pop %v2473
  %v2484 = vmul.f32 %v2473, %v2483
  %v2485 = vsub.f32 1.0, %v2484
  %v2486 = vmul.f32 %v2483, %v2485
  %v2487 = vadd.f32 %v2483, %v2486
  %vm2488 = vweird.f32 %v2473
  %vm2489 = vweird.f32 %v2483
  %vm2490 = vmor %vm2488, %vm2489
  %v2491 = vsel %vm2490, %v2483, %v2487
  %v2492 = vand.u32 2147483647, %v2473
  %vm2493 = vcmp.eq.f32.partialorder %v2492, 8.507059e+37
  %v2494 = vand.u32 %v2473, 2147483648
  %v2495 = vor.u32 1.1754944e-38, %v2494
  %v2496 = vsel %vm2493, %v2495, %v2491
  %v2497 = vmul.f32 %v2464, %v2496
  %v2498 = vrcp.pop %v2476
  %v2499 = vmul.f32 %v2476, %v2498
  %v2500 = vsub.f32 1.0, %v2499
  %v2501 = vmul.f32 %v2498, %v2500
  %v2502 = vadd.f32 %v2498, %v2501
  %vm2503 = vweird.f32 %v2476
  %vm2504 = vweird.f32 %v2498
  %vm2505 = vmor %vm2503, %vm2504
  %v2506 = vsel %vm2505, %v2498, %v2502
  %v2507 = vand.u32 2147483647, %v2476
  %vm2508 = vcmp.eq.f32.partialorder %v2507, 8.507059e+37
  %v2509 = vand.u32 %v2476, 2147483648
  %v2510 = vor.u32 1.1754944e-38, %v2509
  %v2511 = vsel %vm2508, %v2510, %v2506
  %v2512 = vmul.f32 %v2466, %v2511
  %v2513 = vrcp.pop %v2479
  %v2514 = vmul.f32 %v2479, %v2513
  %v2515 = vsub.f32 1.0, %v2514
  %v2516 = vmul.f32 %v2513, %v2515
  %v2517 = vadd.f32 %v2513, %v2516
  %vm2518 = vweird.f32 %v2479
  %vm2519 = vweird.f32 %v2513
  %vm2520 = vmor %vm2518, %vm2519
  %v2521 = vsel %vm2520, %v2513, %v2517
  %v2522 = vand.u32 2147483647, %v2479
  %vm2523 = vcmp.eq.f32.partialorder %v2522, 8.507059e+37
  %v2524 = vand.u32 %v2479, 2147483648
  %v2525 = vor.u32 1.1754944e-38, %v2524
  %v2526 = vsel %vm2523, %v2525, %v2521
  %v2527 = vmul.f32 %v2468, %v2526
  %v2528 = vrcp.pop %v2482
  %v2529 = vmul.f32 %v2482, %v2528
  %v2530 = vsub.f32 1.0, %v2529
  %v2531 = vmul.f32 %v2528, %v2530
  %v2532 = vadd.f32 %v2528, %v2531
  %vm2533 = vweird.f32 %v2482
  %vm2534 = vweird.f32 %v2528
  %vm2535 = vmor %vm2533, %vm2534
  %v2536 = vsel %vm2535, %v2528, %v2532
  %v2537 = vand.u32 2147483647, %v2482
  %vm2538 = vcmp.eq.f32.partialorder %v2537, 8.507059e+37
  %v2539 = vand.u32 %v2482, 2147483648
  %v2540 = vor.u32 1.1754944e-38, %v2539
  %v2541 = vsel %vm2538, %v2540, %v2536
  %v2542 = vmul.f32 %v2470, %v2541
  %2543 = vrot.lane.b32.xlu0 %v1935, 48
  %v2544 = vpop.permute.xlu0 %2543
  %2545 = vrot.lane.b32.xlu0 %v1938, 48
  %v2546 = vpop.permute.xlu0 %2545
  %2547 = vrot.lane.b32.xlu0 %v1941, 48
  %v2548 = vpop.permute.xlu0 %2547
  %2549 = vrot.lane.b32.xlu0 %v1944, 48
  %v2550 = vpop.permute.xlu0 %2549
  %v2556 = vsel %vm425, %v2497, 0
  %v2559 = vsel %vm425, %v2512, 0
  %v2562 = vsel %vm425, %v2527, 0
  %v2565 = vsel %vm425, %v2542, 0
  %2567 = vmatpush.msra.mxu0 0.0
  %2568 = vmatpush.msra.mxu0 0.0
  %2569 = vmatpush.msra.mxu0 0.0
  %2570 = vmatpush.msra.mxu0 0.0
  %2571 = vmatpush.msra.mxu0 0.0
  %2572 = vmatpush.msra.mxu0 0.0
  %2573 = vmatpush.msra.mxu0 0.0
  %2574 = vmatpush.msra.mxu0 0.0
  %2575 = vmatpush.msra.mxu0 0.0
  %2576 = vmatpush.msra.mxu0 0.0
  %2577 = vmatpush.msra.mxu0 0.0
  %2578 = vmatpush.msra.mxu0 0.0
  %2579 = vmatpush.msra.mxu0 %v2550
  %2580 = vmatpush.msra.mxu0 %v2548
  %2581 = vmatpush.msra.mxu0 %v2546
  %2582 = vmatpush.msra.mxu0 %v2544
  %2583 = vmatmul.f32.gmra.mxu0 %v2556
  %v2584 = vpop.f32.mrf.mxu0
  %v2585 = vadd.f32 0.0, %v2584
  %2586 = vmatmul.f32.gmra.mxu0 %v2559
  %v2587 = vpop.f32.mrf.mxu0
  %v2588 = vadd.f32 0.0, %v2587
  %2589 = vmatmul.f32.gmra.mxu0 %v2562
  %v2590 = vpop.f32.mrf.mxu0
  %v2591 = vadd.f32 0.0, %v2590
  %2592 = vmatmul.f32.gmra.mxu0 %v2565
  %v2593 = vpop.f32.mrf.mxu0
  %v2594 = vadd.f32 0.0, %v2593
  %2595 = vdwg.mxu0
  %2596 = vrot.lane.b32.xlu0 %v1935, 104
  %v2597 = vpop.permute.xlu0 %2596
  %2598 = vrot.lane.b32.xlu0 %v1938, 104
  %v2599 = vpop.permute.xlu0 %2598
  %2600 = vrot.lane.b32.xlu0 %v1941, 104
  %v2601 = vpop.permute.xlu0 %2600
  %2602 = vrot.lane.b32.xlu0 %v1944, 104
  %v2603 = vpop.permute.xlu0 %2602
  %2604 = vrot.lane.b32.xlu0 %v1935, 72
  %v2605 = vpop.permute.xlu0 %2604
  %2606 = vrot.lane.b32.xlu0 %v1938, 72
  %v2607 = vpop.permute.xlu0 %2606
  %2608 = vrot.lane.b32.xlu0 %v1941, 72
  %v2609 = vpop.permute.xlu0 %2608
  %2610 = vrot.lane.b32.xlu0 %v1944, 72
  %v2611 = vpop.permute.xlu0 %2610
  %v2612 = vsel %vm277, %v2597, 0
  %v2614 = vsel %vm277, %v2599, 0
  %v2616 = vsel %vm277, %v2601, 0
  %v2618 = vsel %vm277, %v2603, 0
  %v2620 = vsel %vm277, %v2605, 0
  %v2622 = vsel %vm277, %v2607, 0
  %v2624 = vsel %vm277, %v2609, 0
  %v2626 = vsel %vm277, %v2611, 0
  %2628 = vmatpush.xpose.msra.mxu0 0.0
  %2629 = vmatpush.xpose.msra.mxu0 0.0
  %2630 = vmatpush.xpose.msra.mxu0 0.0
  %2631 = vmatpush.xpose.msra.mxu0 0.0
  %2632 = vmatpush.xpose.msra.mxu0 0.0
  %2633 = vmatpush.xpose.msra.mxu0 0.0
  %2634 = vmatpush.xpose.msra.mxu0 0.0
  %2635 = vmatpush.xpose.msra.mxu0 0.0
  %2636 = vmatpush.xpose.msra.mxu0 0.0
  %2637 = vmatpush.xpose.msra.mxu0 0.0
  %2638 = vmatpush.xpose.msra.mxu0 0.0
  %2639 = vmatpush.xpose.msra.mxu0 0.0
  %2640 = vmatpush.xpose.msra.mxu0 %v2626
  %2641 = vmatpush.xpose.msra.mxu0 %v2624
  %2642 = vmatpush.xpose.msra.mxu0 %v2622
  %2643 = vmatpush.xpose.msra.mxu0 %v2620
  %2644 = vmatmul.f32.gmra.mxu0 %v2612
  %v2645 = vpop.f32.mrf.mxu0
  %v2646 = vadd.f32 0.0, %v2645
  %2647 = vmatmul.f32.gmra.mxu0 %v2614
  %v2648 = vpop.f32.mrf.mxu0
  %v2649 = vadd.f32 0.0, %v2648
  %2650 = vmatmul.f32.gmra.mxu0 %v2616
  %v2651 = vpop.f32.mrf.mxu0
  %v2652 = vadd.f32 0.0, %v2651
  %2653 = vmatmul.f32.gmra.mxu0 %v2618
  %v2654 = vpop.f32.mrf.mxu0
  %v2655 = vadd.f32 0.0, %v2654
  %2656 = vdwg.mxu0
  %v2657 = vmul.f32 %v2646, 0.35355338
  %v2658 = vmul.f32 %v2649, 0.35355338
  %v2659 = vmul.f32 %v2652, 0.35355338
  %v2660 = vmul.f32 %v2655, 0.35355338
  %v2661 = vadd.f32 %v2657, %v385
  %v2662 = vadd.f32 %v2658, %v386
  %v2663 = vadd.f32 %v2659, %v387
  %v2664 = vadd.f32 %v2660, %v388
  %v2665 = vsel %vm425, %v2661, -inf
  %2666 = vmax.xlane.f32.xlu0 %v2665
  %v2667 = vpop.xlane.xlu0 %2666
  %v2668 = vsel %vm425, %v2662, -inf
  %2669 = vmax.xlane.f32.xlu0 %v2668
  %v2670 = vpop.xlane.xlu0 %2669
  %v2671 = vsel %vm425, %v2663, -inf
  %2672 = vmax.xlane.f32.xlu0 %v2671
  %v2673 = vpop.xlane.xlu0 %2672
  %v2674 = vsel %vm425, %v2664, -inf
  %2675 = vmax.xlane.f32.xlu0 %v2674
  %v2676 = vpop.xlane.xlu0 %2675
  %v2677 = vsub.f32 %v2661, %v2667
  %v2678 = vsub.f32 %v2662, %v2670
  %v2679 = vsub.f32 %v2663, %v2673
  %v2680 = vsub.f32 %v2664, %v2676
  %v2681 = vmul.f32 %v2677, 1.442695
  %v2682 = vpow.pop %v2681
  %v2683 = vmul.f32 %v2678, 1.442695
  %v2684 = vpow.pop %v2683
  %v2685 = vmul.f32 %v2679, 1.442695
  %v2686 = vpow.pop %v2685
  %v2687 = vmul.f32 %v2680, 1.442695
  %v2688 = vpow.pop %v2687
  %v2689 = vsel %vm425, %v2682, 0.0
  %2690 = vadd.xlane.f32.xlu0 %v2689
  %v2691 = vpop.xlane.xlu0 %2690
  %v2692 = vsel %vm425, %v2684, 0.0
  %2693 = vadd.xlane.f32.xlu0 %v2692
  %v2694 = vpop.xlane.xlu0 %2693
  %v2695 = vsel %vm425, %v2686, 0.0
  %2696 = vadd.xlane.f32.xlu0 %v2695
  %v2697 = vpop.xlane.xlu0 %2696
  %v2698 = vsel %vm425, %v2688, 0.0
  %2699 = vadd.xlane.f32.xlu0 %v2698
  %v2700 = vpop.xlane.xlu0 %2699
  %v2701 = vrcp.pop %v2691
  %v2702 = vmul.f32 %v2691, %v2701
  %v2703 = vsub.f32 1.0, %v2702
  %v2704 = vmul.f32 %v2701, %v2703
  %v2705 = vadd.f32 %v2701, %v2704
  %vm2706 = vweird.f32 %v2691
  %vm2707 = vweird.f32 %v2701
  %vm2708 = vmor %vm2706, %vm2707
  %v2709 = vsel %vm2708, %v2701, %v2705
  %v2710 = vand.u32 2147483647, %v2691
  %vm2711 = vcmp.eq.f32.partialorder %v2710, 8.507059e+37
  %v2712 = vand.u32 %v2691, 2147483648
  %v2713 = vor.u32 1.1754944e-38, %v2712
  %v2714 = vsel %vm2711, %v2713, %v2709
  %v2715 = vmul.f32 %v2682, %v2714
  %v2716 = vrcp.pop %v2694
  %v2717 = vmul.f32 %v2694, %v2716
  %v2718 = vsub.f32 1.0, %v2717
  %v2719 = vmul.f32 %v2716, %v2718
  %v2720 = vadd.f32 %v2716, %v2719
  %vm2721 = vweird.f32 %v2694
  %vm2722 = vweird.f32 %v2716
  %vm2723 = vmor %vm2721, %vm2722
  %v2724 = vsel %vm2723, %v2716, %v2720
  %v2725 = vand.u32 2147483647, %v2694
  %vm2726 = vcmp.eq.f32.partialorder %v2725, 8.507059e+37
  %v2727 = vand.u32 %v2694, 2147483648
  %v2728 = vor.u32 1.1754944e-38, %v2727
  %v2729 = vsel %vm2726, %v2728, %v2724
  %v2730 = vmul.f32 %v2684, %v2729
  %v2731 = vrcp.pop %v2697
  %v2732 = vmul.f32 %v2697, %v2731
  %v2733 = vsub.f32 1.0, %v2732
  %v2734 = vmul.f32 %v2731, %v2733
  %v2735 = vadd.f32 %v2731, %v2734
  %vm2736 = vweird.f32 %v2697
  %vm2737 = vweird.f32 %v2731
  %vm2738 = vmor %vm2736, %vm2737
  %v2739 = vsel %vm2738, %v2731, %v2735
  %v2740 = vand.u32 2147483647, %v2697
  %vm2741 = vcmp.eq.f32.partialorder %v2740, 8.507059e+37
  %v2742 = vand.u32 %v2697, 2147483648
  %v2743 = vor.u32 1.1754944e-38, %v2742
  %v2744 = vsel %vm2741, %v2743, %v2739
  %v2745 = vmul.f32 %v2686, %v2744
  %v2746 = vrcp.pop %v2700
  %v2747 = vmul.f32 %v2700, %v2746
  %v2748 = vsub.f32 1.0, %v2747
  %v2749 = vmul.f32 %v2746, %v2748
  %v2750 = vadd.f32 %v2746, %v2749
  %vm2751 = vweird.f32 %v2700
  %vm2752 = vweird.f32 %v2746
  %vm2753 = vmor %vm2751, %vm2752
  %v2754 = vsel %vm2753, %v2746, %v2750
  %v2755 = vand.u32 2147483647, %v2700
  %vm2756 = vcmp.eq.f32.partialorder %v2755, 8.507059e+37
  %v2757 = vand.u32 %v2700, 2147483648
  %v2758 = vor.u32 1.1754944e-38, %v2757
  %v2759 = vsel %vm2756, %v2758, %v2754
  %v2760 = vmul.f32 %v2688, %v2759
  %2761 = vrot.lane.b32.xlu0 %v1935, 40
  %v2762 = vpop.permute.xlu0 %2761
  %2763 = vrot.lane.b32.xlu0 %v1938, 40
  %v2764 = vpop.permute.xlu0 %2763
  %2765 = vrot.lane.b32.xlu0 %v1941, 40
  %v2766 = vpop.permute.xlu0 %2765
  %2767 = vrot.lane.b32.xlu0 %v1944, 40
  %v2768 = vpop.permute.xlu0 %2767
  %v2774 = vsel %vm425, %v2715, 0
  %v2777 = vsel %vm425, %v2730, 0
  %v2780 = vsel %vm425, %v2745, 0
  %v2783 = vsel %vm425, %v2760, 0
  %2785 = vmatpush.msra.mxu0 0.0
  %2786 = vmatpush.msra.mxu0 0.0
  %2787 = vmatpush.msra.mxu0 0.0
  %2788 = vmatpush.msra.mxu0 0.0
  %2789 = vmatpush.msra.mxu0 0.0
  %2790 = vmatpush.msra.mxu0 0.0
  %2791 = vmatpush.msra.mxu0 0.0
  %2792 = vmatpush.msra.mxu0 0.0
  %2793 = vmatpush.msra.mxu0 0.0
  %2794 = vmatpush.msra.mxu0 0.0
  %2795 = vmatpush.msra.mxu0 0.0
  %2796 = vmatpush.msra.mxu0 0.0
  %2797 = vmatpush.msra.mxu0 %v2768
  %2798 = vmatpush.msra.mxu0 %v2766
  %2799 = vmatpush.msra.mxu0 %v2764
  %2800 = vmatpush.msra.mxu0 %v2762
  %2801 = vmatmul.f32.gmra.mxu0 %v2774
  %v2802 = vpop.f32.mrf.mxu0
  %v2803 = vadd.f32 0.0, %v2802
  %2804 = vmatmul.f32.gmra.mxu0 %v2777
  %v2805 = vpop.f32.mrf.mxu0
  %v2806 = vadd.f32 0.0, %v2805
  %2807 = vmatmul.f32.gmra.mxu0 %v2780
  %v2808 = vpop.f32.mrf.mxu0
  %v2809 = vadd.f32 0.0, %v2808
  %2810 = vmatmul.f32.gmra.mxu0 %v2783
  %v2811 = vpop.f32.mrf.mxu0
  %v2812 = vadd.f32 0.0, %v2811
  %2813 = vdwg.mxu0
  %2818 = vrot.lane.b32.xlu0 %v2367, 8
  %v2819 = vpop.permute.xlu0 %2818
  %2820 = vrot.lane.b32.xlu0 %v2370, 8
  %v2821 = vpop.permute.xlu0 %2820
  %2822 = vrot.lane.b32.xlu0 %v2373, 8
  %v2823 = vpop.permute.xlu0 %2822
  %2824 = vrot.lane.b32.xlu0 %v2376, 8
  %v2825 = vpop.permute.xlu0 %2824
  %2834 = vrot.lane.b32.xlu0 %v2585, 16
  %v2835 = vpop.permute.xlu0 %2834
  %2836 = vrot.lane.b32.xlu0 %v2588, 16
  %v2837 = vpop.permute.xlu0 %2836
  %2838 = vrot.lane.b32.xlu0 %v2591, 16
  %v2839 = vpop.permute.xlu0 %2838
  %2840 = vrot.lane.b32.xlu0 %v2594, 16
  %v2841 = vpop.permute.xlu0 %2840
  %2850 = vrot.lane.b32.xlu0 %v2803, 24
  %v2851 = vpop.permute.xlu0 %2850
  %2852 = vrot.lane.b32.xlu0 %v2806, 24
  %v2853 = vpop.permute.xlu0 %2852
  %2854 = vrot.lane.b32.xlu0 %v2809, 24
  %v2855 = vpop.permute.xlu0 %2854
  %2856 = vrot.lane.b32.xlu0 %v2812, 24
  %v2857 = vpop.permute.xlu0 %2856
  %v2862 = vsel %vm277, %v2149, %v2819
  %v2863 = vsel %vm277, %v2152, %v2821
  %v2864 = vsel %vm277, %v2155, %v2823
  %v2865 = vsel %vm277, %v2158, %v2825
  %v2866 = vsel %vm1493, %v2862, %v2835
  %v2867 = vsel %vm1493, %v2863, %v2837
  %v2868 = vsel %vm1493, %v2864, %v2839
  %v2869 = vsel %vm1493, %v2865, %v2841
  %v2870 = vsel %vm1498, %v2866, %v2851
  %v2871 = vsel %vm1498, %v2867, %v2853
  %v2872 = vsel %vm1498, %v2868, %v2855
  %v2873 = vsel %vm1498, %v2869, %v2857
  %v2875 = vsel %vm425, %v2870, 0
  %v2878 = vsel %vm425, %v2871, 0
  %v2881 = vsel %vm425, %v2872, 0
  %v2884 = vsel %vm425, %v2873, 0
  %2886 = vmatpush.msra.mxu0 0.0
  %2887 = vmatpush.msra.mxu0 0.0
  %2888 = vmatpush.msra.mxu0 0.0
  %2889 = vmatpush.msra.mxu0 0.0
  %2890 = vmatpush.msra.mxu0 0.0
  %2891 = vmatpush.msra.mxu0 0.0
  %2892 = vmatpush.msra.mxu0 0.0
  %2893 = vmatpush.msra.mxu0 0.0
  %2894 = vmatpush.msra.mxu0 0.0
  %2895 = vmatpush.msra.mxu0 0.0
  %2896 = vmatpush.msra.mxu0 0.0
  %2897 = vmatpush.msra.mxu0 0.0
  %2898 = vmatpush.msra.mxu0 %v1771
  %2899 = vmatpush.msra.mxu0 %v1770
  %2900 = vmatpush.msra.mxu0 %v1769
  %2901 = vmatpush.msra.mxu0 %v1768
  %2902 = vmatmul.f32.gmra.mxu0 %v2875
  %v2903 = vpop.f32.mrf.mxu0
  %v2904 = vadd.f32 0.0, %v2903
  %2905 = vmatmul.f32.gmra.mxu0 %v2878
  %v2906 = vpop.f32.mrf.mxu0
  %v2907 = vadd.f32 0.0, %v2906
  %2908 = vmatmul.f32.gmra.mxu0 %v2881
  %v2909 = vpop.f32.mrf.mxu0
  %v2910 = vadd.f32 0.0, %v2909
  %2911 = vmatmul.f32.gmra.mxu0 %v2884
  %v2912 = vpop.f32.mrf.mxu0
  %v2913 = vadd.f32 0.0, %v2912
  %2914 = vdwg.mxu0
  %v2915 = vadd.f32 %v1763, %v2904
  %v2916 = vadd.f32 %v1764, %v2907
  %v2917 = vadd.f32 %v1765, %v2910
  %v2918 = vadd.f32 %v1766, %v2913
  %v2919 = vperm.slane %v1792, 0
  %v2920 = vadd.f32 %v2915, %v2919
  %v2921 = vadd.f32 %v2916, %v2919
  %v2922 = vadd.f32 %v2917, %v2919
  %v2923 = vadd.f32 %v2918, %v2919
  %v2924 = vsel %vm425, %v2920, 0.0
  %2925 = vadd.xlane.f32.xlu0 %v2924
  %v2926 = vpop.xlane.xlu0 %2925
  %v2927 = vsel %vm425, %v2921, 0.0
  %2928 = vadd.xlane.f32.xlu0 %v2927
  %v2929 = vpop.xlane.xlu0 %2928
  %v2930 = vsel %vm425, %v2922, 0.0
  %2931 = vadd.xlane.f32.xlu0 %v2930
  %v2932 = vpop.xlane.xlu0 %2931
  %v2933 = vsel %vm425, %v2923, 0.0
  %2934 = vadd.xlane.f32.xlu0 %v2933
  %v2935 = vpop.xlane.xlu0 %2934
  %v2936 = vmul.f32 %v2926, %v444
  %v2937 = vmul.f32 %v2929, %v444
  %v2938 = vmul.f32 %v2932, %v444
  %v2939 = vmul.f32 %v2935, %v444
  %v2940 = vsub.f32 %v2920, %v2936
  %v2941 = vsub.f32 %v2921, %v2937
  %v2942 = vsub.f32 %v2922, %v2938
  %v2943 = vsub.f32 %v2923, %v2939
  %v2944 = vmul.f32 %v2940, %v2940
  %v2945 = vmul.f32 %v2941, %v2941
  %v2946 = vmul.f32 %v2942, %v2942
  %v2947 = vmul.f32 %v2943, %v2943
  %v2948 = vsel %vm425, %v2944, 0.0
  %2949 = vadd.xlane.f32.xlu0 %v2948
  %v2950 = vpop.xlane.xlu0 %2949
  %v2951 = vsel %vm425, %v2945, 0.0
  %2952 = vadd.xlane.f32.xlu0 %v2951
  %v2953 = vpop.xlane.xlu0 %2952
  %v2954 = vsel %vm425, %v2946, 0.0
  %2955 = vadd.xlane.f32.xlu0 %v2954
  %v2956 = vpop.xlane.xlu0 %2955
  %v2957 = vsel %vm425, %v2947, 0.0
  %2958 = vadd.xlane.f32.xlu0 %v2957
  %v2959 = vpop.xlane.xlu0 %2958
  %v2960 = vmul.f32 %v2950, %v444
  %v2961 = vmul.f32 %v2953, %v444
  %v2962 = vmul.f32 %v2956, %v444
  %v2963 = vmul.f32 %v2959, %v444
  %v2964 = vadd.f32 %v2960, 1e-05
  %v2965 = vadd.f32 %v2961, 1e-05
  %v2966 = vadd.f32 %v2962, 1e-05
  %v2967 = vadd.f32 %v2963, 1e-05
  %v2968 = vrsqrt.pop %v2964
  %v2969 = vmul.f32 %v2968, %v2964
  %v2970 = vmul.f32 %v2969, %v2968
  %v2971 = vmul.f32 0.5, %v2970
  %v2972 = vsub.f32 1.5, %v2971
  %v2973 = vmul.f32 %v2968, %v2972
  %vm2974 = vweird.f32 %v2964
  %vm2975 = vweird.f32 %v2968
  %vm2976 = vmor %vm2974, %vm2975
  %v2977 = vsel %vm2976, %v2968, %v2973
  %v2978 = vrsqrt.pop %v2965
  %v2979 = vmul.f32 %v2978, %v2965
  %v2980 = vmul.f32 %v2979, %v2978
  %v2981 = vmul.f32 0.5, %v2980
  %v2982 = vsub.f32 1.5, %v2981
  %v2983 = vmul.f32 %v2978, %v2982
  %vm2984 = vweird.f32 %v2965
  %vm2985 = vweird.f32 %v2978
  %vm2986 = vmor %vm2984, %vm2985
  %v2987 = vsel %vm2986, %v2978, %v2983
  %v2988 = vrsqrt.pop %v2966
  %v2989 = vmul.f32 %v2988, %v2966
  %v2990 = vmul.f32 %v2989, %v2988
  %v2991 = vmul.f32 0.5, %v2990
  %v2992 = vsub.f32 1.5, %v2991
  %v2993 = vmul.f32 %v2988, %v2992
  %vm2994 = vweird.f32 %v2966
  %vm2995 = vweird.f32 %v2988
  %vm2996 = vmor %vm2994, %vm2995
  %v2997 = vsel %vm2996, %v2988, %v2993
  %v2998 = vrsqrt.pop %v2967
  %v2999 = vmul.f32 %v2998, %v2967
  %v3000 = vmul.f32 %v2999, %v2998
  %v3001 = vmul.f32 0.5, %v3000
  %v3002 = vsub.f32 1.5, %v3001
  %v3003 = vmul.f32 %v2998, %v3002
  %vm3004 = vweird.f32 %v2967
  %vm3005 = vweird.f32 %v2998
  %vm3006 = vmor %vm3004, %vm3005
  %v3007 = vsel %vm3006, %v2998, %v3003
  %v3008 = vmul.f32 %v2940, %v2977
  %v3009 = vmul.f32 %v2941, %v2987
  %v3010 = vmul.f32 %v2942, %v2997
  %v3011 = vmul.f32 %v2943, %v3007
  %v3012 = vperm.slane %v1790, 0
  %v3013 = vmul.f32 %v3008, %v3012
  %v3014 = vmul.f32 %v3009, %v3012
  %v3015 = vmul.f32 %v3010, %v3012
  %v3016 = vmul.f32 %v3011, %v3012
  %v3017 = vperm.slane %v1791, 0
  %v3018 = vadd.f32 %v3013, %v3017
  %v3019 = vadd.f32 %v3014, %v3017
  %v3020 = vadd.f32 %v3015, %v3017
  %v3021 = vadd.f32 %v3016, %v3017
  %v3022 = vperm.slane %v1805, 0
  %v3024 = vsel %vm425, %v3018, 0
  %v3027 = vsel %vm425, %v3019, 0
  %v3030 = vsel %vm425, %v3020, 0
  %v3033 = vsel %vm425, %v3021, 0
  %3035 = vmatpush.msra.mxu0 0.0
  %3036 = vmatpush.msra.mxu0 0.0
  %3037 = vmatpush.msra.mxu0 0.0
  %3038 = vmatpush.msra.mxu0 0.0
  %3039 = vmatpush.msra.mxu0 0.0
  %3040 = vmatpush.msra.mxu0 0.0
  %3041 = vmatpush.msra.mxu0 0.0
  %3042 = vmatpush.msra.mxu0 0.0
  %3043 = vmatpush.msra.mxu0 0.0
  %3044 = vmatpush.msra.mxu0 0.0
  %3045 = vmatpush.msra.mxu0 0.0
  %3046 = vmatpush.msra.mxu0 0.0
  %3047 = vmatpush.msra.mxu0 %v1804
  %3048 = vmatpush.msra.mxu0 %v1803
  %3049 = vmatpush.msra.mxu0 %v1802
  %3050 = vmatpush.msra.mxu0 %v1801
  %3051 = vmatmul.f32.gmra.mxu0 %v3024
  %v3052 = vpop.f32.mrf.mxu0
  %v3053 = vadd.f32 %v3022, %v3052
  %3054 = vmatmul.f32.gmra.mxu0 %v3027
  %v3055 = vpop.f32.mrf.mxu0
  %v3056 = vadd.f32 %v3022, %v3055
  %3057 = vmatmul.f32.gmra.mxu0 %v3030
  %v3058 = vpop.f32.mrf.mxu0
  %v3059 = vadd.f32 %v3022, %v3058
  %3060 = vmatmul.f32.gmra.mxu0 %v3033
  %v3061 = vpop.f32.mrf.mxu0
  %v3062 = vadd.f32 %v3022, %v3061
  %3063 = vdwg.mxu0
  %v3064 = vmul.f32 %v3053, 0.5
  %v3065 = vmul.f32 %v3056, 0.5
  %v3066 = vmul.f32 %v3059, 0.5
  %v3067 = vmul.f32 %v3062, 0.5
  %v3068 = vmul.f32 %v3053, 0.044715
  %v3069 = vmul.f32 %v3056, 0.044715
  %v3070 = vmul.f32 %v3059, 0.044715
  %v3071 = vmul.f32 %v3062, 0.044715
  %v3072 = vmul.f32 %v3068, %v3053
  %v3073 = vmul.f32 %v3069, %v3056
  %v3074 = vmul.f32 %v3070, %v3059
  %v3075 = vmul.f32 %v3071, %v3062
  %v3076 = vmul.f32 %v3072, %v3053
  %v3077 = vmul.f32 %v3073, %v3056
  %v3078 = vmul.f32 %v3074, %v3059
  %v3079 = vmul.f32 %v3075, %v3062
  %v3080 = vadd.f32 %v3053, %v3076
  %v3081 = vadd.f32 %v3056, %v3077
  %v3082 = vadd.f32 %v3059, %v3078
  %v3083 = vadd.f32 %v3062, %v3079
  %v3084 = vmul.f32 %v3080, 0.7978846
  %v3085 = vmul.f32 %v3081, 0.7978846
  %v3086 = vmul.f32 %v3082, 0.7978846
  %v3087 = vmul.f32 %v3083, 0.7978846
  %v3088 = vtanh.pop %v3084
  %v3089 = vtanh.pop %v3085
  %v3090 = vtanh.pop %v3086
  %v3091 = vtanh.pop %v3087
  %v3092 = vadd.f32 %v3088, 1.0
  %v3093 = vadd.f32 %v3089, 1.0
  %v3094 = vadd.f32 %v3090, 1.0
  %v3095 = vadd.f32 %v3091, 1.0
  %v3096 = vmul.f32 %v3064, %v3092
  %v3097 = vmul.f32 %v3065, %v3093
  %v3098 = vmul.f32 %v3066, %v3094
  %v3099 = vmul.f32 %v3067, %v3095
  %3100 = vmatpush.msra.mxu0 %v1787
  %3101 = vmatpush.msra.mxu0 %v1786
  %3102 = vmatpush.msra.mxu0 %v1785
  %3103 = vmatpush.msra.mxu0 %v1784
  %3104 = vmatpush.msra.mxu0 %v1783
  %3105 = vmatpush.msra.mxu0 %v1782
  %3106 = vmatpush.msra.mxu0 %v1781
  %3107 = vmatpush.msra.mxu0 %v1780
  %3108 = vmatpush.msra.mxu0 %v1779
  %3109 = vmatpush.msra.mxu0 %v1778
  %3110 = vmatpush.msra.mxu0 %v1777
  %3111 = vmatpush.msra.mxu0 %v1776
  %3112 = vmatpush.msra.mxu0 %v1775
  %3113 = vmatpush.msra.mxu0 %v1774
  %3114 = vmatpush.msra.mxu0 %v1773
  %3115 = vmatpush.msra.mxu0 %v1772
  %3116 = vmatmul.f32.gmra.mxu0 %v3096
  %v3117 = vpop.f32.mrf.mxu0
  %v3118 = vadd.f32 0.0, %v3117
  %3119 = vmatmul.f32.gmra.mxu0 %v3097
  %v3120 = vpop.f32.mrf.mxu0
  %v3121 = vadd.f32 0.0, %v3120
  %3122 = vmatmul.f32.gmra.mxu0 %v3098
  %v3123 = vpop.f32.mrf.mxu0
  %v3124 = vadd.f32 0.0, %v3123
  %3125 = vmatmul.f32.gmra.mxu0 %v3099
  %v3126 = vpop.f32.mrf.mxu0
  %v3127 = vadd.f32 0.0, %v3126
  %3128 = vdwg.mxu0
  %v3129 = vadd.f32 %v2920, %v3118
  %v3130 = vadd.f32 %v2921, %v3121
  %v3131 = vadd.f32 %v2922, %v3124
  %v3132 = vadd.f32 %v2923, %v3127
  %v3133 = vperm.slane %v1793, 0
  %v3134 = vadd.f32 %v3129, %v3133
  %v3135 = vadd.f32 %v3130, %v3133
  %v3136 = vadd.f32 %v3131, %v3133
  %v3137 = vadd.f32 %v3132, %v3133
  %v3138 = vld [vmem:[%s8] sm:$0x1]
  %v3139 = vld [vmem:[%s8 + $0x1] sm:$0x1]
  %v3140 = vld [vmem:[%s8 + $0x2] sm:$0x1]
  %v3141 = vld [vmem:[%s8 + $0x3] sm:$0x1]
  %v3142 = vld [vmem:[%s8 + $0x4] sm:$0x1]
  %v3143 = vld [vmem:[%s8 + $0x8] sm:$0xff]
  %v3144 = vld [vmem:[%s8 + $0x10] sm:$0xff]
  %v3145 = vld [vmem:[%s8 + $0x18] sm:$0xff]
  %v3146 = vld [vmem:[%s8 + $0x20] sm:$0xff]
  %v3147 = vsel %vm425, %v3134, 0.0
  %3148 = vadd.xlane.f32.xlu0 %v3147
  %v3149 = vpop.xlane.xlu0 %3148
  %v3150 = vsel %vm425, %v3135, 0.0
  %3151 = vadd.xlane.f32.xlu0 %v3150
  %v3152 = vpop.xlane.xlu0 %3151
  %v3153 = vsel %vm425, %v3136, 0.0
  %3154 = vadd.xlane.f32.xlu0 %v3153
  %v3155 = vpop.xlane.xlu0 %3154
  %v3156 = vsel %vm425, %v3137, 0.0
  %3157 = vadd.xlane.f32.xlu0 %v3156
  %v3158 = vpop.xlane.xlu0 %3157
  %v3159 = vmul.f32 %v3149, %v444
  %v3160 = vmul.f32 %v3152, %v444
  %v3161 = vmul.f32 %v3155, %v444
  %v3162 = vmul.f32 %v3158, %v444
  %v3163 = vsub.f32 %v3134, %v3159
  %v3164 = vsub.f32 %v3135, %v3160
  %v3165 = vsub.f32 %v3136, %v3161
  %v3166 = vsub.f32 %v3137, %v3162
  %v3167 = vmul.f32 %v3163, %v3163
  %v3168 = vmul.f32 %v3164, %v3164
  %v3169 = vmul.f32 %v3165, %v3165
  %v3170 = vmul.f32 %v3166, %v3166
  %v3171 = vsel %vm425, %v3167, 0.0
  %3172 = vadd.xlane.f32.xlu0 %v3171
  %v3173 = vpop.xlane.xlu0 %3172
  %v3174 = vsel %vm425, %v3168, 0.0
  %3175 = vadd.xlane.f32.xlu0 %v3174
  %v3176 = vpop.xlane.xlu0 %3175
  %v3177 = vsel %vm425, %v3169, 0.0
  %3178 = vadd.xlane.f32.xlu0 %v3177
  %v3179 = vpop.xlane.xlu0 %3178
  %v3180 = vsel %vm425, %v3170, 0.0
  %3181 = vadd.xlane.f32.xlu0 %v3180
  %v3182 = vpop.xlane.xlu0 %3181
  %v3183 = vmul.f32 %v3173, %v444
  %v3184 = vmul.f32 %v3176, %v444
  %v3185 = vmul.f32 %v3179, %v444
  %v3186 = vmul.f32 %v3182, %v444
  %v3187 = vadd.f32 %v3183, 1e-05
  %v3188 = vadd.f32 %v3184, 1e-05
  %v3189 = vadd.f32 %v3185, 1e-05
  %v3190 = vadd.f32 %v3186, 1e-05
  %v3191 = vrsqrt.pop %v3187
  %v3192 = vmul.f32 %v3191, %v3187
  %v3193 = vmul.f32 %v3192, %v3191
  %v3194 = vmul.f32 0.5, %v3193
  %v3195 = vsub.f32 1.5, %v3194
  %v3196 = vmul.f32 %v3191, %v3195
  %vm3197 = vweird.f32 %v3187
  %vm3198 = vweird.f32 %v3191
  %vm3199 = vmor %vm3197, %vm3198
  %v3200 = vsel %vm3199, %v3191, %v3196
  %v3201 = vrsqrt.pop %v3188
  %v3202 = vmul.f32 %v3201, %v3188
  %v3203 = vmul.f32 %v3202, %v3201
  %v3204 = vmul.f32 0.5, %v3203
  %v3205 = vsub.f32 1.5, %v3204
  %v3206 = vmul.f32 %v3201, %v3205
  %vm3207 = vweird.f32 %v3188
  %vm3208 = vweird.f32 %v3201
  %vm3209 = vmor %vm3207, %vm3208
  %v3210 = vsel %vm3209, %v3201, %v3206
  %v3211 = vrsqrt.pop %v3189
  %v3212 = vmul.f32 %v3211, %v3189
  %v3213 = vmul.f32 %v3212, %v3211
  %v3214 = vmul.f32 0.5, %v3213
  %v3215 = vsub.f32 1.5, %v3214
  %v3216 = vmul.f32 %v3211, %v3215
  %vm3217 = vweird.f32 %v3189
  %vm3218 = vweird.f32 %v3211
  %vm3219 = vmor %vm3217, %vm3218
  %v3220 = vsel %vm3219, %v3211, %v3216
  %v3221 = vrsqrt.pop %v3190
  %v3222 = vmul.f32 %v3221, %v3190
  %v3223 = vmul.f32 %v3222, %v3221
  %v3224 = vmul.f32 0.5, %v3223
  %v3225 = vsub.f32 1.5, %v3224
  %v3226 = vmul.f32 %v3221, %v3225
  %vm3227 = vweird.f32 %v3190
  %vm3228 = vweird.f32 %v3221
  %vm3229 = vmor %vm3227, %vm3228
  %v3230 = vsel %vm3229, %v3221, %v3226
  %v3231 = vmul.f32 %v3163, %v3200
  %v3232 = vmul.f32 %v3164, %v3210
  %v3233 = vmul.f32 %v3165, %v3220
  %v3234 = vmul.f32 %v3166, %v3230
  %v3235 = vperm.slane %v3138, 0
  %v3236 = vmul.f32 %v3231, %v3235
  %v3237 = vmul.f32 %v3232, %v3235
  %v3238 = vmul.f32 %v3233, %v3235
  %v3239 = vmul.f32 %v3234, %v3235
  %v3240 = vperm.slane %v3139, 0
  %v3241 = vadd.f32 %v3236, %v3240
  %v3242 = vadd.f32 %v3237, %v3240
  %v3243 = vadd.f32 %v3238, %v3240
  %v3244 = vadd.f32 %v3239, %v3240
  %v3245 = vsel %vm425, %v3241, 0.0
  %3246 = vadd.xlane.f32.xlu0 %v3245
  %v3247 = vpop.xlane.xlu0 %3246
  %v3248 = vsel %vm425, %v3242, 0.0
  %3249 = vadd.xlane.f32.xlu0 %v3248
  %v3250 = vpop.xlane.xlu0 %3249
  %v3251 = vsel %vm425, %v3243, 0.0
  %3252 = vadd.xlane.f32.xlu0 %v3251
  %v3253 = vpop.xlane.xlu0 %3252
  %v3254 = vsel %vm425, %v3244, 0.0
  %3255 = vadd.xlane.f32.xlu0 %v3254
  %v3256 = vpop.xlane.xlu0 %3255
  %v3257 = vmul.f32 %v3247, %v444
  %v3258 = vmul.f32 %v3250, %v444
  %v3259 = vmul.f32 %v3253, %v444
  %v3260 = vmul.f32 %v3256, %v444
  %v3261 = vsub.f32 %v3241, %v3257
  %v3262 = vsub.f32 %v3242, %v3258
  %v3263 = vsub.f32 %v3243, %v3259
  %v3264 = vsub.f32 %v3244, %v3260
  %v3265 = vmul.f32 %v3261, %v3261
  %v3266 = vmul.f32 %v3262, %v3262
  %v3267 = vmul.f32 %v3263, %v3263
  %v3268 = vmul.f32 %v3264, %v3264
  %v3269 = vsel %vm425, %v3265, 0.0
  %3270 = vadd.xlane.f32.xlu0 %v3269
  %v3271 = vpop.xlane.xlu0 %3270
  %v3272 = vsel %vm425, %v3266, 0.0
  %3273 = vadd.xlane.f32.xlu0 %v3272
  %v3274 = vpop.xlane.xlu0 %3273
  %v3275 = vsel %vm425, %v3267, 0.0
  %3276 = vadd.xlane.f32.xlu0 %v3275
  %v3277 = vpop.xlane.xlu0 %3276
  %v3278 = vsel %vm425, %v3268, 0.0
  %3279 = vadd.xlane.f32.xlu0 %v3278
  %v3280 = vpop.xlane.xlu0 %3279
  %v3281 = vmul.f32 %v3271, %v444
  %v3282 = vmul.f32 %v3274, %v444
  %v3283 = vmul.f32 %v3277, %v444
  %v3284 = vmul.f32 %v3280, %v444
  %v3285 = vadd.f32 %v3281, 1e-05
  %v3286 = vadd.f32 %v3282, 1e-05
  %v3287 = vadd.f32 %v3283, 1e-05
  %v3288 = vadd.f32 %v3284, 1e-05
  %v3289 = vrsqrt.pop %v3285
  %v3290 = vmul.f32 %v3289, %v3285
  %v3291 = vmul.f32 %v3290, %v3289
  %v3292 = vmul.f32 0.5, %v3291
  %v3293 = vsub.f32 1.5, %v3292
  %v3294 = vmul.f32 %v3289, %v3293
  %vm3295 = vweird.f32 %v3285
  %vm3296 = vweird.f32 %v3289
  %vm3297 = vmor %vm3295, %vm3296
  %v3298 = vsel %vm3297, %v3289, %v3294
  %v3299 = vrsqrt.pop %v3286
  %v3300 = vmul.f32 %v3299, %v3286
  %v3301 = vmul.f32 %v3300, %v3299
  %v3302 = vmul.f32 0.5, %v3301
  %v3303 = vsub.f32 1.5, %v3302
  %v3304 = vmul.f32 %v3299, %v3303
  %vm3305 = vweird.f32 %v3286
  %vm3306 = vweird.f32 %v3299
  %vm3307 = vmor %vm3305, %vm3306
  %v3308 = vsel %vm3307, %v3299, %v3304
  %v3309 = vrsqrt.pop %v3287
  %v3310 = vmul.f32 %v3309, %v3287
  %v3311 = vmul.f32 %v3310, %v3309
  %v3312 = vmul.f32 0.5, %v3311
  %v3313 = vsub.f32 1.5, %v3312
  %v3314 = vmul.f32 %v3309, %v3313
  %vm3315 = vweird.f32 %v3287
  %vm3316 = vweird.f32 %v3309
  %vm3317 = vmor %vm3315, %vm3316
  %v3318 = vsel %vm3317, %v3309, %v3314
  %v3319 = vrsqrt.pop %v3288
  %v3320 = vmul.f32 %v3319, %v3288
  %v3321 = vmul.f32 %v3320, %v3319
  %v3322 = vmul.f32 0.5, %v3321
  %v3323 = vsub.f32 1.5, %v3322
  %v3324 = vmul.f32 %v3319, %v3323
  %vm3325 = vweird.f32 %v3288
  %vm3326 = vweird.f32 %v3319
  %vm3327 = vmor %vm3325, %vm3326
  %v3328 = vsel %vm3327, %v3319, %v3324
  %v3329 = vmul.f32 %v3261, %v3298
  %v3330 = vmul.f32 %v3262, %v3308
  %v3331 = vmul.f32 %v3263, %v3318
  %v3332 = vmul.f32 %v3264, %v3328
  %v3333 = vperm.slane %v3140, 0
  %v3334 = vmul.f32 %v3329, %v3333
  %v3335 = vmul.f32 %v3330, %v3333
  %v3336 = vmul.f32 %v3331, %v3333
  %v3337 = vmul.f32 %v3332, %v3333
  %v3338 = vperm.slane %v3141, 0
  %v3339 = vadd.f32 %v3334, %v3338
  %v3340 = vadd.f32 %v3335, %v3338
  %v3341 = vadd.f32 %v3336, %v3338
  %v3342 = vadd.f32 %v3337, %v3338
  %v3343 = vperm.slane %v3142, 0
  %v3345 = vsel %vm425, %v3339, 0
  %v3348 = vsel %vm425, %v3340, 0
  %v3351 = vsel %vm425, %v3341, 0
  %v3354 = vsel %vm425, %v3342, 0
  %3356 = vmatpush.msra.mxu0 0.0
  %3357 = vmatpush.msra.mxu0 0.0
  %3358 = vmatpush.msra.mxu0 0.0
  %3359 = vmatpush.msra.mxu0 0.0
  %3360 = vmatpush.msra.mxu0 0.0
  %3361 = vmatpush.msra.mxu0 0.0
  %3362 = vmatpush.msra.mxu0 0.0
  %3363 = vmatpush.msra.mxu0 0.0
  %3364 = vmatpush.msra.mxu0 0.0
  %3365 = vmatpush.msra.mxu0 0.0
  %3366 = vmatpush.msra.mxu0 0.0
  %3367 = vmatpush.msra.mxu0 0.0
  %3368 = vmatpush.msra.mxu0 %v3146
  %3369 = vmatpush.msra.mxu0 %v3145
  %3370 = vmatpush.msra.mxu0 %v3144
  %3371 = vmatpush.msra.mxu0 %v3143
  %3372 = vmatmul.f32.gmra.mxu0 %v3345
  %v3373 = vpop.f32.mrf.mxu0
  %v3374 = vadd.f32 %v3343, %v3373
  %3375 = vmatmul.f32.gmra.mxu0 %v3348
  %v3376 = vpop.f32.mrf.mxu0
  %v3377 = vadd.f32 %v3343, %v3376
  %3378 = vmatmul.f32.gmra.mxu0 %v3351
  %v3379 = vpop.f32.mrf.mxu0
  %v3380 = vadd.f32 %v3343, %v3379
  %3381 = vmatmul.f32.gmra.mxu0 %v3354
  %v3382 = vpop.f32.mrf.mxu0
  %v3383 = vadd.f32 %v3343, %v3382
  %3384 = vdwg.mxu0
  %v3385 = vmul.f32 %v3374, %v170
  %v3386 = vmul.f32 %v3377, %v170
  %v3387 = vmul.f32 %v3380, %v182
  %v3388 = vmul.f32 %v3383, %v182
  %v3389 = vadd.f32 %v3385, %v105
  %v3390 = vadd.f32 %v3386, %v105
  %v3391 = vadd.f32 %v3387, %v120
  %v3392 = vadd.f32 %v3388, %v120
  %3393 = vst.msk [vmem:[%s9] sm:$0xff] %vm52, %v3389
  %3394 = vst.msk [vmem:[%s9 + $0x8] sm:$0xff] %vm52, %v3390
  %3395 = vst.msk [vmem:[%s9 + $0x10] sm:$0xff] %vm52, %v3391
  %3396 = vst.msk [vmem:[%s9 + $0x18] sm:$0xff] %vm52, %v3392
  // Predicated region
  $region38: #{tpu_custom_call.1} parent=0 // pred_check
    _
  $region39: #{tpu_custom_call.1} parent=0 // pred_check_branch
    %3398 = sbr.rel (0) target = $region41
  $region40: #{tpu_custom_call.1} parent=0 // pred_region
    _
  $region41: #{tpu_custom_call.1} parent=0 // pred_fallthru
    _
  // Predicated region
  $region42: #{tpu_custom_call.1} parent=0 // pred_check
    _
  $region43: #{tpu_custom_call.1} parent=0 // pred_check_branch
    %3400 = sbr.rel (0) target = $region45
  $region44: #{tpu_custom_call.1} parent=0 // pred_region
    _
  $region45: #{tpu_custom_call.1} parent=0 // pred_fallthru
    _

</llo_original>
